<compile_context>
chip_gen: v7x
topology: tpu7x:2x2x1
jax: 0.10.0
libtpu: 0.0.40
codegen_flags: <defaults>
</compile_context>

<pallas_src>
import jax
import jax.numpy as jnp
from jax.experimental import pallas as pl
from jax.experimental.pallas import tpu as pltpu

CPAD = 8  # sublane-friendly pad of the 3 input channels


# ------------------------------------------------------------------ kernel

def _make_encoder_kernel(bb, n, e_dim, m_dim, l1_bf16):
    """bb batch elements per grid step, n points each."""
    bf16, f32 = jnp.bfloat16, jnp.float32
    acc1 = bf16 if l1_bf16 else f32  # first-layer (K=8) accumulate/epilogue dtype

    def kernel(x_ref, w1_ref, b1_ref, w2_ref, b2_ref,
               w3g_ref, w3f_ref, b3_ref, w4_ref, b4_ref,
               wg_ref, bg_ref, mem_ref,
               fg_ref, h_ref, md_ref):
        # ---- first_conv (BN folded): (bb*n, 8) @ (8,128) -> bias+relu -> @ (128,256)
        xb = x_ref[...]                                                      # (bb*n, CPAD) bf16
        h1 = jnp.dot(xb, w1_ref[...], preferred_element_type=acc1)
        h1 = jnp.maximum(h1 + b1_ref[...], 0.0)                             # bf16 epilogue on v6e/v7x
        feat = jnp.dot(h1.astype(bf16), w2_ref[...],
                       preferred_element_type=f32) + b2_ref[...]            # (bb*n, 256) f32

        # ---- per-batch global max over points
        g = jnp.max(feat.reshape(bb, n, -1), axis=1)                        # (bb, 256)

        # ---- second_conv with split w3 (concat eliminated), BN folded; bias pre-summed per batch
        gbias = jnp.dot(g.astype(bf16), w3g_ref[...],
                        preferred_element_type=f32) + b3_ref[...]           # (bb, 512)
        h2 = jnp.dot(feat.astype(bf16), w3f_ref[...],
                     preferred_element_type=f32)                            # (bb*n, 512)
        h2 = jnp.maximum(h2.reshape(bb, n, -1) + gbias[:, None, :],
                         0.0).astype(bf16)                                  # fused relu + cast
        f2 = jnp.dot(h2.reshape(bb * n, -1), w4_ref[...],
                     preferred_element_type=f32) + b4_ref[...]              # (bb*n, E)
        fg = jnp.max(f2.reshape(bb, n, -1), axis=1)                         # (bb, E)
        fg_ref[0] = fg                                                      # lane-dense 256-wide store

        # ---- MemoryModule gating (row-wise -> per chunk; keeps the grid axis "parallel")
        gates = jnp.dot(fg.astype(bf16), wg_ref[...],
                        preferred_element_type=f32) + bg_ref[...]           # (bb, 4M)
        fgate = jax.nn.sigmoid(gates[:, 0 * m_dim:1 * m_dim])
        igate = jax.nn.sigmoid(gates[:, 1 * m_dim:2 * m_dim])
        ogate = jax.nn.sigmoid(gates[:, 2 * m_dim:3 * m_dim])
        cgate = jnp.tanh(gates[:, 3 * m_dim:4 * m_dim])
        md = fgate * mem_ref[...] + igate * cgate                           # (bb, M)
        md_ref[0] = md
        h_ref[0] = ogate * jnp.tanh(md)

    return kernel


# ------------------------------------------------------------------ host-side param prep

def prepare_params(p, l1_dtype):
    """Fold BN into conv weights, split w3, fuse gate weights, cast matmul weights to bf16."""
    bf16, f32 = jnp.bfloat16, jnp.float32
    feat_dim = p["w2"].shape[1]                       # 256 = global-feature half of second_conv input
    w3s = p["w3"] * p["s2"]                           # column-wise BN scale fold
    return dict(
        w1=(p["w1"] * p["s1"]).astype(bf16),
        b1=(p["b1"] * p["s1"] + p["t1"]).astype(l1_dtype),
        w2=p["w2"].astype(bf16), b2=p["b2"].astype(f32),
        w3g=w3s[:feat_dim].astype(bf16),              # rows paired with broadcast global feature
        w3f=w3s[feat_dim:].astype(bf16),              # rows paired with per-point feature
        b3=(p["b3"] * p["s2"] + p["t2"]).astype(f32),
        w4=p["w4"].astype(bf16), b4=p["b4"].astype(f32),
        wg=jnp.concatenate([p["wf"], p["wi"], p["wo"], p["wc"]], axis=1).astype(bf16),
        bg=jnp.concatenate([p["bf"], p["bi"], p["bo"], p["bc"]], axis=1).astype(f32),
        memory=p["memory"].astype(f32),
    )


# ------------------------------------------------------------------ per-generation tuning helpers

def _tpu_generation():
    try:
        kind = jax.devices()[0].device_kind.lower()
    except Exception:
        return 0
    for g in (7, 6, 5, 4):
        if "v%d" % g in kind:
            return g
    return 0


def _vmem_limit_bytes():
    """Scoped-VMEM limit derived from the physical VMEM of this chip (v7x=64MiB, v5e/v6e=128MiB)."""
    try:
        phys = int(pltpu.get_tpu_info().vmem_capacity_bytes)
    except Exception:
        phys = 64 * 1024 * 1024   # conservative fallback = v7x per-core VMEM
    return int(min(max(32 * 1024 * 1024, 0.7 * phys), 100 * 1024 * 1024))


def _choose_block_bs(bs, n, vmem_limit_bytes):
    """Largest divisor of bs whose rows-per-step fits the VMEM budget, targeting >=2048 rows."""
    bytes_per_row = 14 * 1024                          # peak f32 + bf16 intermediates per point-row
    budget = max(vmem_limit_bytes - 6 * 1024 * 1024, 4 * 1024 * 1024)  # reserve for weights/bufs
    max_rows = max(budget // bytes_per_row, n)
    target_rows = 2048
    best = 1
    for bb in range(1, bs + 1):
        if bs % bb != 0:
            continue
        rows = bb * n
        if rows <= max_rows:
            best = bb
            if rows >= target_rows:
                break
        else:
            break
    return best


# ------------------------------------------------------------------ wrapper

def encoder_forward(x, params, flag=True, block_bs=None):
    bs, n, cin = x.shape
    assert cin == 3

    gen = _tpu_generation()
    use_bf16_l1 = gen >= 6                     # bf16 VALU only on v6e/v7x; keep f32 epilogue on v5e
    l1_dtype = jnp.bfloat16 if use_bf16_l1 else jnp.float32

    vmem_limit = _vmem_limit_bytes()
    if block_bs is None:
        block_bs = _choose_block_bs(bs, n, vmem_limit)
    assert bs % block_bs == 0
    steps = bs // block_bs
    assert (block_bs * n) % 8 == 0 or steps == 1, "rows per step must be sublane-aligned"

    prep = prepare_params(params, l1_dtype)
    e_dim = prep["w4"].shape[1]
    m_dim = prep["memory"].shape[1]

    # pad 3 -> CPAD channels (tiny), flatten (bs, n) -> rows, cast to bf16 (halves input DMA bytes)
    # TODO(synk): pad+cast could be folded into the kernel to save one extra HBM pass over x.
    x_flat = jnp.zeros((bs * n, CPAD), jnp.bfloat16)
    x_flat = x_flat.at[:, :3].set(x.reshape(bs * n, 3).astype(jnp.bfloat16))

    weight_names = ("w1", "b1", "w2", "b2", "w3g", "w3f", "b3", "w4", "b4", "wg", "bg", "memory")
    weights = [prep[k] for k in weight_names]

    def _rep(a):
        nd = a.ndim
        return pl.BlockSpec(a.shape, lambda s, _nd=nd: (0,) * _nd)

    kernel = _make_encoder_kernel(block_bs, n, e_dim, m_dim, use_bf16_l1)

    fg3, h3, md3 = pl.pallas_call(
        kernel,
        out_shape=(jax.ShapeDtypeStruct((steps, block_bs, e_dim), jnp.float32),
                   jax.ShapeDtypeStruct((steps, block_bs, m_dim), jnp.float32),
                   jax.ShapeDtypeStruct((steps, block_bs, m_dim), jnp.float32)),
        grid_spec=pltpu.PrefetchScalarGridSpec(
            num_scalar_prefetch=0,
            grid=(steps,),
            in_specs=[pl.BlockSpec((block_bs * n, CPAD), lambda s: (s, 0))]
                     + [_rep(a) for a in weights],
            out_specs=(pl.BlockSpec((1, block_bs, e_dim), lambda s: (s, 0, 0)),
                       pl.BlockSpec((1, block_bs, m_dim), lambda s: (s, 0, 0)),
                       pl.BlockSpec((1, block_bs, m_dim), lambda s: (s, 0, 0))),
        ),
        compiler_params=pltpu.CompilerParams(
            # no cross-step carry anymore -> megacore can shard the batch grid (v7x: 2 TCs)
            dimension_semantics=("parallel",),
            vmem_limit_bytes=vmem_limit,
        ),
    )(x_flat, *weights)

    fg = fg3.reshape(bs, e_dim)
    hmem = h3.reshape(bs, m_dim)
    out = jnp.concatenate([fg, hmem], axis=1)

    if flag:
        new_memory = jnp.max(md3.reshape(bs, m_dim), axis=0, keepdims=True)  # cross-batch max on host
    else:
        new_memory = params["memory"]                                        # memory left unchanged
    return out, new_memory


# ------------------------------------------------------------------ params & reference

def init_params(key, encoder_dim=256, memory_dim=64, cpad=CPAD, eps=1e-5):
    ks = jax.random.split(key, 24)
    p = {}
    # first_conv: Conv1d(3,128,1) -> BN(128) -> ReLU -> Conv1d(128,256,1)
    w1 = 0.1 * jax.random.normal(ks[0], (3, 128), jnp.float32)
    p["w1"] = jnp.zeros((cpad, 128), jnp.float32).at[:3, :].set(w1)
    p["b1"] = 0.1 * jax.random.normal(ks[1], (1, 128), jnp.float32)
    g1 = 1.0 + 0.1 * jax.random.normal(ks[2], (1, 128), jnp.float32)
    be1 = 0.1 * jax.random.normal(ks[3], (1, 128), jnp.float32)
    rm1 = 0.1 * jax.random.normal(ks[4], (1, 128), jnp.float32)
    rv1 = 1.0 + 0.1 * jnp.abs(jax.random.normal(ks[5], (1, 128), jnp.float32))
    p["s1"] = g1 / jnp.sqrt(rv1 + eps)
    p["t1"] = be1 - rm1 * p["s1"]
    p["w2"] = 0.1 * jax.random.normal(ks[6], (128, 256), jnp.float32)
    p["b2"] = 0.1 * jax.random.normal(ks[7], (1, 256), jnp.float32)
    # second_conv: Conv1d(512,512,1) -> BN(512) -> ReLU -> Conv1d(512,E,1)
    p["w3"] = 0.05 * jax.random.normal(ks[8], (512, 512), jnp.float32)
    p["b3"] = 0.1 * jax.random.normal(ks[9], (1, 512), jnp.float32)
    g2 = 1.0 + 0.1 * jax.random.normal(ks[10], (1, 512), jnp.float32)
    be2 = 0.1 * jax.random.normal(ks[11], (1, 512), jnp.float32)
    rm2 = 0.1 * jax.random.normal(ks[12], (1, 512), jnp.float32)
    rv2 = 1.0 + 0.1 * jnp.abs(jax.random.normal(ks[13], (1, 512), jnp.float32))
    p["s2"] = g2 / jnp.sqrt(rv2 + eps)
    p["t2"] = be2 - rm2 * p["s2"]
    p["w4"] = 0.05 * jax.random.normal(ks[14], (512, encoder_dim), jnp.float32)
    p["b4"] = 0.1 * jax.random.normal(ks[15], (1, encoder_dim), jnp.float32)
    # MemoryModule: 4x Linear(E, M) + memory (1, M)
    for name, kw, kb in (("f", 16, 17), ("i", 18, 19), ("o", 20, 21), ("c", 22, 23)):
        p["w" + name] = 0.05 * jax.random.normal(ks[kw], (encoder_dim, memory_dim), jnp.float32)
        p["b" + name] = 0.1 * jax.random.normal(ks[kb], (1, memory_dim), jnp.float32)
    p["memory"] = jax.random.normal(jax.random.PRNGKey(42), (1, memory_dim), jnp.float32)
    return p


def reference_forward(x, p):
    """Pure-JAX f32 reference mirroring the PyTorch forward (eval-mode BN)."""
    bs, n, _ = x.shape
    cpad = p["w1"].shape[0]
    xp = jnp.zeros((bs, n, cpad), jnp.float32).at[:, :, :3].set(x)
    h = jnp.maximum((xp @ p["w1"] + p["b1"]) * p["s1"] + p["t1"], 0.0)
    feat = h @ p["w2"] + p["b2"]                                    # (bs, n, 256)
    g = jnp.max(feat, axis=1, keepdims=True)                        # (bs, 1, 256)
    cat = jnp.concatenate([jnp.broadcast_to(g, feat.shape), feat], axis=2)
    h2 = jnp.maximum((cat @ p["w3"] + p["b3"]) * p["s2"] + p["t2"], 0.0)
    f2 = h2 @ p["w4"] + p["b4"]                                     # (bs, n, E)
    fg = jnp.max(f2, axis=1)                                        # (bs, E)
    f = jax.nn.sigmoid(fg @ p["wf"] + p["bf"])
    i = jax.nn.sigmoid(fg @ p["wi"] + p["bi"])
    o = jax.nn.sigmoid(fg @ p["wo"] + p["bo"])
    c = jnp.tanh(fg @ p["wc"] + p["bc"])
    md = f * p["memory"] + i * c
    hmem = o * jnp.tanh(md)
    return jnp.concatenate([fg, hmem], axis=1), jnp.max(md, axis=0, keepdims=True)


# ------------------------------------------------------------------ main

if __name__ == "__main__":
    ENCODER_DIM = 256
    MEMORY_DIM = 64
    BS, N = 2, 128

    key = jax.random.PRNGKey(0)
    k_x, k_p = jax.random.split(key)
    x = jax.random.normal(k_x, (BS, N, 3), jnp.float32)      # point cloud (bs, n, 3)
    params = init_params(k_p, ENCODER_DIM, MEMORY_DIM)

    out, mem_new = encoder_forward(x, params, flag=True)
    out = jax.block_until_ready(out)
    mem_new = jax.block_until_ready(mem_new)

    ref_out, ref_mem = reference_forward(x, params)
    assert out.shape == (BS, ENCODER_DIM + MEMORY_DIM)
    assert mem_new.shape == (1, MEMORY_DIM)
    # bf16 matmul operands (f32 accumulation) -> loosened tolerance vs the pure-f32 reference
    assert jnp.allclose(out, ref_out, atol=4e-2, rtol=4e-2)
    assert jnp.allclose(mem_new, ref_mem, atol=4e-2, rtol=4e-2)

    print("KERNEL_OK")
</pallas_src>

<mosaic_0001>
module attributes {stable_mosaic.version = 11 : i64} {
  func.func @kernel(%arg0: i32, %arg1: memref<256x8xbf16, #tpu.memory_space<vmem>>, %arg2: memref<8x128xbf16, #tpu.memory_space<vmem>>, %arg3: memref<1x128xf32, #tpu.memory_space<vmem>>, %arg4: memref<128x256xbf16, #tpu.memory_space<vmem>>, %arg5: memref<1x256xf32, #tpu.memory_space<vmem>>, %arg6: memref<256x512xbf16, #tpu.memory_space<vmem>>, %arg7: memref<256x512xbf16, #tpu.memory_space<vmem>>, %arg8: memref<1x512xf32, #tpu.memory_space<vmem>>, %arg9: memref<512x256xbf16, #tpu.memory_space<vmem>>, %arg10: memref<1x256xf32, #tpu.memory_space<vmem>>, %arg11: memref<256x256xbf16, #tpu.memory_space<vmem>>, %arg12: memref<1x256xf32, #tpu.memory_space<vmem>>, %arg13: memref<1x64xf32, #tpu.memory_space<vmem>>, %arg14: memref<1x2x256xf32, #tpu.memory_space<vmem>>, %arg15: memref<1x2x64xf32, #tpu.memory_space<vmem>>, %arg16: memref<1x2x64xf32, #tpu.memory_space<vmem>>) attributes {dimension_semantics = [#tpu.dimension_semantics<parallel>], iteration_bounds = array<i64: 1>, scalar_prefetch = 0 : i64, scratch_operands = 0 : i64, tpu.core_type = #tpu.core_type<tc>, window_params = [{transform_indices = @transform_0, window_bounds = array<i64: 256, 8>}, {pipeline_mode = #tpu.pipeline_mode<synchronous>, transform_indices = @transform_1, window_bounds = array<i64: 8, 128>}, {pipeline_mode = #tpu.pipeline_mode<synchronous>, transform_indices = @transform_2, window_bounds = array<i64: 1, 128>}, {pipeline_mode = #tpu.pipeline_mode<synchronous>, transform_indices = @transform_3, window_bounds = array<i64: 128, 256>}, {pipeline_mode = #tpu.pipeline_mode<synchronous>, transform_indices = @transform_4, window_bounds = array<i64: 1, 256>}, {pipeline_mode = #tpu.pipeline_mode<synchronous>, transform_indices = @transform_5, window_bounds = array<i64: 256, 512>}, {pipeline_mode = #tpu.pipeline_mode<synchronous>, transform_indices = @transform_6, window_bounds = array<i64: 256, 512>}, {pipeline_mode = #tpu.pipeline_mode<synchronous>, transform_indices = @transform_7, window_bounds = array<i64: 1, 512>}, {pipeline_mode = #tpu.pipeline_mode<synchronous>, transform_indices = @transform_8, window_bounds = array<i64: 512, 256>}, {pipeline_mode = #tpu.pipeline_mode<synchronous>, transform_indices = @transform_9, window_bounds = array<i64: 1, 256>}, {pipeline_mode = #tpu.pipeline_mode<synchronous>, transform_indices = @transform_10, window_bounds = array<i64: 256, 256>}, {pipeline_mode = #tpu.pipeline_mode<synchronous>, transform_indices = @transform_11, window_bounds = array<i64: 1, 256>}, {pipeline_mode = #tpu.pipeline_mode<synchronous>, transform_indices = @transform_12, window_bounds = array<i64: 1, 64>}, {transform_indices = @transform_13, window_bounds = array<i64: 1, 2, 256>}, {transform_indices = @transform_14, window_bounds = array<i64: 1, 2, 64>}, {transform_indices = @transform_15, window_bounds = array<i64: 1, 2, 64>}]} {
    %c0 = arith.constant 0 : index
    %c0_0 = arith.constant 0 : index
    %0 = vector.load %arg1[%c0, %c0_0] : memref<256x8xbf16, #tpu.memory_space<vmem>>, vector<256x8xbf16>
    %c0_1 = arith.constant 0 : index
    %c0_2 = arith.constant 0 : index
    %1 = vector.load %arg2[%c0_1, %c0_2] : memref<8x128xbf16, #tpu.memory_space<vmem>>, vector<8x128xbf16>
    %cst = arith.constant dense<0.000000e+00> : vector<256x128xf32>
    %2 = tpu.matmul %0, %1, %cst {dimension_numbers = #tpu.dot_dimension_numbers<[1], [0], [0], [1], [0, 0, 1, 1], [], []>} : vector<256x8xbf16>, vector<8x128xbf16>, vector<256x128xf32> -> vector<256x128xf32>
    %c0_3 = arith.constant 0 : index
    %c0_4 = arith.constant 0 : index
    %3 = vector.load %arg3[%c0_3, %c0_4] : memref<1x128xf32, #tpu.memory_space<vmem>>, vector<1x128xf32>
    %4 = vector.broadcast %3 : vector<1x128xf32> to vector<256x128xf32>
    %5 = arith.addf %2, %4 : vector<256x128xf32>
    %cst_5 = arith.constant 0.000000e+00 : f32
    %6 = vector.broadcast %cst_5 : f32 to vector<256x128xf32>
    %7 = arith.maximumf %5, %6 : vector<256x128xf32>
    %8 = arith.truncf %7 : vector<256x128xf32> to vector<256x128xbf16>
    %c0_6 = arith.constant 0 : index
    %c0_7 = arith.constant 0 : index
    %9 = vector.load %arg4[%c0_6, %c0_7] : memref<128x256xbf16, #tpu.memory_space<vmem>>, vector<128x256xbf16>
    %cst_8 = arith.constant dense<0.000000e+00> : vector<256x256xf32>
    %10 = tpu.matmul %8, %9, %cst_8 {dimension_numbers = #tpu.dot_dimension_numbers<[1], [0], [0], [1], [0, 0, 1, 1], [], []>} : vector<256x128xbf16>, vector<128x256xbf16>, vector<256x256xf32> -> vector<256x256xf32>
    %c0_9 = arith.constant 0 : index
    %c0_10 = arith.constant 0 : index
    %11 = vector.load %arg5[%c0_9, %c0_10] : memref<1x256xf32, #tpu.memory_space<vmem>>, vector<1x256xf32>
    %12 = vector.broadcast %11 : vector<1x256xf32> to vector<256x256xf32>
    %13 = arith.addf %10, %12 : vector<256x256xf32>
    %14 = vector.shape_cast %13 : vector<256x256xf32> to vector<2x128x256xf32>
    %cst_11 = arith.constant dense<0xFF800000> : vector<2x256xf32>
    %15 = vector.multi_reduction <maximumf>, %14, %cst_11 [1] : vector<2x128x256xf32> to vector<2x256xf32>
    %16 = arith.truncf %15 : vector<2x256xf32> to vector<2x256xbf16>
    %c0_12 = arith.constant 0 : index
    %c0_13 = arith.constant 0 : index
    %17 = vector.load %arg6[%c0_12, %c0_13] : memref<256x512xbf16, #tpu.memory_space<vmem>>, vector<256x512xbf16>
    %cst_14 = arith.constant dense<0.000000e+00> : vector<2x512xf32>
    %18 = tpu.matmul %16, %17, %cst_14 {dimension_numbers = #tpu.dot_dimension_numbers<[1], [0], [0], [1], [0, 0, 1, 1], [], []>} : vector<2x256xbf16>, vector<256x512xbf16>, vector<2x512xf32> -> vector<2x512xf32>
    %c0_15 = arith.constant 0 : index
    %c0_16 = arith.constant 0 : index
    %19 = vector.load %arg8[%c0_15, %c0_16] : memref<1x512xf32, #tpu.memory_space<vmem>>, vector<1x512xf32>
    %20 = vector.broadcast %19 : vector<1x512xf32> to vector<2x512xf32>
    %21 = arith.addf %18, %20 : vector<2x512xf32>
    %22 = arith.truncf %13 : vector<256x256xf32> to vector<256x256xbf16>
    %c0_17 = arith.constant 0 : index
    %c0_18 = arith.constant 0 : index
    %23 = vector.load %arg7[%c0_17, %c0_18] : memref<256x512xbf16, #tpu.memory_space<vmem>>, vector<256x512xbf16>
    %cst_19 = arith.constant dense<0.000000e+00> : vector<256x512xf32>
    %24 = tpu.matmul %22, %23, %cst_19 {dimension_numbers = #tpu.dot_dimension_numbers<[1], [0], [0], [1], [0, 0, 1, 1], [], []>} : vector<256x256xbf16>, vector<256x512xbf16>, vector<256x512xf32> -> vector<256x512xf32>
    %25 = vector.shape_cast %24 : vector<256x512xf32> to vector<2x128x512xf32>
    %26 = vector.shape_cast %21 : vector<2x512xf32> to vector<2x1x512xf32>
    %27 = vector.broadcast %26 : vector<2x1x512xf32> to vector<2x128x512xf32>
    %28 = arith.addf %25, %27 : vector<2x128x512xf32>
    %cst_20 = arith.constant 0.000000e+00 : f32
    %29 = vector.broadcast %cst_20 : f32 to vector<2x128x512xf32>
    %30 = arith.maximumf %28, %29 : vector<2x128x512xf32>
    %31 = arith.truncf %30 : vector<2x128x512xf32> to vector<2x128x512xbf16>
    %32 = vector.shape_cast %31 : vector<2x128x512xbf16> to vector<256x512xbf16>
    %c0_21 = arith.constant 0 : index
    %c0_22 = arith.constant 0 : index
    %33 = vector.load %arg9[%c0_21, %c0_22] : memref<512x256xbf16, #tpu.memory_space<vmem>>, vector<512x256xbf16>
    %cst_23 = arith.constant dense<0.000000e+00> : vector<256x256xf32>
    %34 = tpu.matmul %32, %33, %cst_23 {dimension_numbers = #tpu.dot_dimension_numbers<[1], [0], [0], [1], [0, 0, 1, 1], [], []>} : vector<256x512xbf16>, vector<512x256xbf16>, vector<256x256xf32> -> vector<256x256xf32>
    %c0_24 = arith.constant 0 : index
    %c0_25 = arith.constant 0 : index
    %35 = vector.load %arg10[%c0_24, %c0_25] : memref<1x256xf32, #tpu.memory_space<vmem>>, vector<1x256xf32>
    %36 = vector.broadcast %35 : vector<1x256xf32> to vector<256x256xf32>
    %37 = arith.addf %34, %36 : vector<256x256xf32>
    %38 = vector.shape_cast %37 : vector<256x256xf32> to vector<2x128x256xf32>
    %cst_26 = arith.constant dense<0xFF800000> : vector<2x256xf32>
    %39 = vector.multi_reduction <maximumf>, %38, %cst_26 [1] : vector<2x128x256xf32> to vector<2x256xf32>
    %c0_27 = arith.constant 0 : index
    %c0_28 = arith.constant 0 : index
    %c0_29 = arith.constant 0 : index
    %40 = vector.load %arg14[%c0_27, %c0_28, %c0_29] : memref<1x2x256xf32, #tpu.memory_space<vmem>>, vector<1x2x256xf32>
    %41 = vector.shape_cast %40 : vector<1x2x256xf32> to vector<2x256xf32>
    %42 = vector.shape_cast %39 : vector<2x256xf32> to vector<1x2x256xf32>
    tpu.vector_store %arg14[%c0_27, %c0_28, %c0_29], %42 {strides = array<i32>} : memref<1x2x256xf32, #tpu.memory_space<vmem>>, vector<1x2x256xf32>,
    %43 = arith.truncf %39 : vector<2x256xf32> to vector<2x256xbf16>
    %c0_30 = arith.constant 0 : index
    %c0_31 = arith.constant 0 : index
    %44 = vector.load %arg11[%c0_30, %c0_31] : memref<256x256xbf16, #tpu.memory_space<vmem>>, vector<256x256xbf16>
    %cst_32 = arith.constant dense<0.000000e+00> : vector<2x256xf32>
    %45 = tpu.matmul %43, %44, %cst_32 {dimension_numbers = #tpu.dot_dimension_numbers<[1], [0], [0], [1], [0, 0, 1, 1], [], []>} : vector<2x256xbf16>, vector<256x256xbf16>, vector<2x256xf32> -> vector<2x256xf32>
    %c0_33 = arith.constant 0 : index
    %c0_34 = arith.constant 0 : index
    %46 = vector.load %arg12[%c0_33, %c0_34] : memref<1x256xf32, #tpu.memory_space<vmem>>, vector<1x256xf32>
    %47 = vector.broadcast %46 : vector<1x256xf32> to vector<2x256xf32>
    %48 = arith.addf %45, %47 : vector<2x256xf32>
    %49 = vector.extract_strided_slice %48 {offsets = [0, 0], sizes = [2, 64], strides = [1, 1]} : vector<2x256xf32> to vector<2x64xf32>
    %50 = arith.negf %49 : vector<2x64xf32>
    %51 = math.exp %50 : vector<2x64xf32>
    %cst_35 = arith.constant 1.000000e+00 : f32
    %52 = vector.broadcast %cst_35 : f32 to vector<2x64xf32>
    %53 = arith.addf %52, %51 : vector<2x64xf32>
    %54 = arith.divf %52, %53 : vector<2x64xf32>
    %55 = vector.extract_strided_slice %48 {offsets = [0, 64], sizes = [2, 64], strides = [1, 1]} : vector<2x256xf32> to vector<2x64xf32>
    %56 = arith.negf %55 : vector<2x64xf32>
    %57 = math.exp %56 : vector<2x64xf32>
    %cst_36 = arith.constant 1.000000e+00 : f32
    %58 = vector.broadcast %cst_36 : f32 to vector<2x64xf32>
    %59 = arith.addf %58, %57 : vector<2x64xf32>
    %60 = arith.divf %58, %59 : vector<2x64xf32>
    %61 = vector.extract_strided_slice %48 {offsets = [0, 128], sizes = [2, 64], strides = [1, 1]} : vector<2x256xf32> to vector<2x64xf32>
    %62 = arith.negf %61 : vector<2x64xf32>
    %63 = math.exp %62 : vector<2x64xf32>
    %cst_37 = arith.constant 1.000000e+00 : f32
    %64 = vector.broadcast %cst_37 : f32 to vector<2x64xf32>
    %65 = arith.addf %64, %63 : vector<2x64xf32>
    %66 = arith.divf %64, %65 : vector<2x64xf32>
    %67 = vector.extract_strided_slice %48 {offsets = [0, 192], sizes = [2, 64], strides = [1, 1]} : vector<2x256xf32> to vector<2x64xf32>
    %68 = math.tanh %67 : vector<2x64xf32>
    %c0_38 = arith.constant 0 : index
    %c0_39 = arith.constant 0 : index
    %69 = vector.load %arg13[%c0_38, %c0_39] : memref<1x64xf32, #tpu.memory_space<vmem>>, vector<1x64xf32>
    %70 = vector.broadcast %69 : vector<1x64xf32> to vector<2x64xf32>
    %71 = arith.mulf %54, %70 : vector<2x64xf32>
    %72 = arith.mulf %60, %68 : vector<2x64xf32>
    %73 = arith.addf %71, %72 : vector<2x64xf32>
    %c0_40 = arith.constant 0 : index
    %c0_41 = arith.constant 0 : index
    %c0_42 = arith.constant 0 : index
    %74 = vector.load %arg16[%c0_40, %c0_41, %c0_42] : memref<1x2x64xf32, #tpu.memory_space<vmem>>, vector<1x2x64xf32>
    %75 = vector.shape_cast %74 : vector<1x2x64xf32> to vector<2x64xf32>
    %76 = vector.shape_cast %73 : vector<2x64xf32> to vector<1x2x64xf32>
    tpu.vector_store %arg16[%c0_40, %c0_41, %c0_42], %76 {strides = array<i32>} : memref<1x2x64xf32, #tpu.memory_space<vmem>>, vector<1x2x64xf32>,
    %77 = math.tanh %73 : vector<2x64xf32>
    %78 = arith.mulf %66, %77 : vector<2x64xf32>
    %c0_43 = arith.constant 0 : index
    %c0_44 = arith.constant 0 : index
    %c0_45 = arith.constant 0 : index
    %79 = vector.load %arg15[%c0_43, %c0_44, %c0_45] : memref<1x2x64xf32, #tpu.memory_space<vmem>>, vector<1x2x64xf32>
    %80 = vector.shape_cast %79 : vector<1x2x64xf32> to vector<2x64xf32>
    %81 = vector.shape_cast %78 : vector<2x64xf32> to vector<1x2x64xf32>
    tpu.vector_store %arg15[%c0_43, %c0_44, %c0_45], %81 {strides = array<i32>} : memref<1x2x64xf32, #tpu.memory_space<vmem>>, vector<1x2x64xf32>,
    return
  }
  func.func @transform_0(%arg0: i32) -> (i32, i32) {
    %c0_i32 = arith.constant 0 : i32
    %c0_i32_0 = arith.constant 0 : i32
    return %arg0, %c0_i32 : i32, i32
  }
  func.func @transform_1(%arg0: i32) -> (i32, i32) {
    %c0_i32 = arith.constant 0 : i32
    %c0_i32_0 = arith.constant 0 : i32
    %c0_i32_1 = arith.constant 0 : i32
    return %c0_i32, %c0_i32_0 : i32, i32
  }
  func.func @transform_2(%arg0: i32) -> (i32, i32) {
    %c0_i32 = arith.constant 0 : i32
    %c0_i32_0 = arith.constant 0 : i32
    %c0_i32_1 = arith.constant 0 : i32
    return %c0_i32, %c0_i32_0 : i32, i32
  }
  func.func @transform_3(%arg0: i32) -> (i32, i32) {
    %c0_i32 = arith.constant 0 : i32
    %c0_i32_0 = arith.constant 0 : i32
    %c0_i32_1 = arith.constant 0 : i32
    return %c0_i32, %c0_i32_0 : i32, i32
  }
  func.func @transform_4(%arg0: i32) -> (i32, i32) {
    %c0_i32 = arith.constant 0 : i32
    %c0_i32_0 = arith.constant 0 : i32
    %c0_i32_1 = arith.constant 0 : i32
    return %c0_i32, %c0_i32_0 : i32, i32
  }
  func.func @transform_5(%arg0: i32) -> (i32, i32) {
    %c0_i32 = arith.constant 0 : i32
    %c0_i32_0 = arith.constant 0 : i32
    %c0_i32_1 = arith.constant 0 : i32
    return %c0_i32, %c0_i32_0 : i32, i32
  }
  func.func @transform_6(%arg0: i32) -> (i32, i32) {
    %c0_i32 = arith.constant 0 : i32
    %c0_i32_0 = arith.constant 0 : i32
    %c0_i32_1 = arith.constant 0 : i32
    return %c0_i32, %c0_i32_0 : i32, i32
  }
  func.func @transform_7(%arg0: i32) -> (i32, i32) {
    %c0_i32 = arith.constant 0 : i32
    %c0_i32_0 = arith.constant 0 : i32
    %c0_i32_1 = arith.constant 0 : i32
    return %c0_i32, %c0_i32_0 : i32, i32
  }
  func.func @transform_8(%arg0: i32) -> (i32, i32) {
    %c0_i32 = arith.constant 0 : i32
    %c0_i32_0 = arith.constant 0 : i32
    %c0_i32_1 = arith.constant 0 : i32
    return %c0_i32, %c0_i32_0 : i32, i32
  }
  func.func @transform_9(%arg0: i32) -> (i32, i32) {
    %c0_i32 = arith.constant 0 : i32
    %c0_i32_0 = arith.constant 0 : i32
    %c0_i32_1 = arith.constant 0 : i32
    return %c0_i32, %c0_i32_0 : i32, i32
  }
  func.func @transform_10(%arg0: i32) -> (i32, i32) {
    %c0_i32 = arith.constant 0 : i32
    %c0_i32_0 = arith.constant 0 : i32
    %c0_i32_1 = arith.constant 0 : i32
    return %c0_i32, %c0_i32_0 : i32, i32
  }
  func.func @transform_11(%arg0: i32) -> (i32, i32) {
    %c0_i32 = arith.constant 0 : i32
    %c0_i32_0 = arith.constant 0 : i32
    %c0_i32_1 = arith.constant 0 : i32
    return %c0_i32, %c0_i32_0 : i32, i32
  }
  func.func @transform_12(%arg0: i32) -> (i32, i32) {
    %c0_i32 = arith.constant 0 : i32
    %c0_i32_0 = arith.constant 0 : i32
    %c0_i32_1 = arith.constant 0 : i32
    return %c0_i32, %c0_i32_0 : i32, i32
  }
  func.func @transform_13(%arg0: i32) -> (i32, i32, i32) {
    %c0_i32 = arith.constant 0 : i32
    %c0_i32_0 = arith.constant 0 : i32
    %c0_i32_1 = arith.constant 0 : i32
    return %arg0, %c0_i32, %c0_i32_0 : i32, i32, i32
  }
  func.func @transform_14(%arg0: i32) -> (i32, i32, i32) {
    %c0_i32 = arith.constant 0 : i32
    %c0_i32_0 = arith.constant 0 : i32
    %c0_i32_1 = arith.constant 0 : i32
    return %arg0, %c0_i32, %c0_i32_0 : i32, i32, i32
  }
  func.func @transform_15(%arg0: i32) -> (i32, i32, i32) {
    %c0_i32 = arith.constant 0 : i32
    %c0_i32_0 = arith.constant 0 : i32
    %c0_i32_1 = arith.constant 0 : i32
    return %arg0, %c0_i32, %c0_i32_0 : i32, i32, i32
  }
}

</mosaic_0001>

<llo_original>
// kernel: tpu_custom_call.1
$region0: #{tpu_custom_call.1}
  #allocation0 [shape = 'u32[]', space=smem, size = 0x4, offset = 0x4, fixed_abs, tag = 'smem constant byte address 0x4 - core index']
  #allocation1 [shape = 'u32[144,128]{1,0:T(1,128)}', space=vmem, size = 0x12000, scoped, tag = 'internal scratch']
  %s0 = inlined_call_operand.vmem [shape: bf16[256,8], index: 0, kind: input, shape index: {}]
  %s1 = inlined_call_operand.vmem [shape: bf16[8,128], index: 1, kind: input, shape index: {}]
  %s2 = inlined_call_operand.vmem [shape: f32[1,128], index: 2, kind: input, shape index: {}]
  %s3 = inlined_call_operand.vmem [shape: bf16[128,256], index: 3, kind: input, shape index: {}]
  %s4 = inlined_call_operand.vmem [shape: f32[1,256], index: 4, kind: input, shape index: {}]
  %s5 = inlined_call_operand.hbm [shape: bf16[256,512], index: 5, kind: input, shape index: {}]
  %s6 = inlined_call_operand.hbm [shape: bf16[256,512], index: 6, kind: input, shape index: {}]
  %s7 = inlined_call_operand.vmem [shape: f32[1,512], index: 7, kind: input, shape index: {}]
  %s8 = inlined_call_operand.hbm [shape: bf16[512,256], index: 8, kind: input, shape index: {}]
  %s9 = inlined_call_operand.vmem [shape: f32[1,256], index: 9, kind: input, shape index: {}]
  %s10 = inlined_call_operand.hbm [shape: bf16[256,256], index: 10, kind: input, shape index: {}]
  %s11 = inlined_call_operand.vmem [shape: f32[1,256], index: 11, kind: input, shape index: {}]
  %s12 = inlined_call_operand.vmem [shape: f32[1,64], index: 12, kind: input, shape index: {}]
  %s13 = inlined_call_operand.hbm [shape: f32[1,2,256], index: 13, kind: output, shape index: {0}]
  %s14 = inlined_call_operand.hbm [shape: f32[1,2,64], index: 14, kind: output, shape index: {1}]
  %s15 = inlined_call_operand.hbm [shape: f32[1,2,64], index: 15, kind: output, shape index: {2}]
  %16 = xla_tuple %s13, %s14, %s15
  %s17 = sld [smem:[#allocation0]]
  $region94: #{tpu_custom_call.1} parent=0
    _
  %s19 = ssub.s32 1, %s17
  %s20 = scalar_select 0, %s19, %s17
  $region1: #{tpu_custom_call.1} parent=0
    #allocation2 [shape = 'u8[262144]{0}', space=vmem, size = 0x40000, scoped, tag = 'input window, operand 5, single buffered']
    #allocation3 [shape = 's32[1]{0}', space=sflag, size = 0x4, scoped, tag = 'scoped memory for tpu_custom_call.1']
    #allocation4 [shape = 's32[1]{0}', space=sflag, size = 0x4, scoped, tag = 'scoped memory for tpu_custom_call.1']
    #allocation5 [shape = 'u8[262144]{0}', space=vmem, size = 0x40000, scoped, tag = 'input window, operand 6, single buffered']
    #allocation6 [shape = 's32[1]{0}', space=sflag, size = 0x4, scoped, tag = 'scoped memory for tpu_custom_call.1']
    #allocation7 [shape = 'u8[262144]{0}', space=vmem, size = 0x40000, scoped, tag = 'input window, operand 8, single buffered']
    #allocation8 [shape = 'u8[131072]{0}', space=vmem, size = 0x20000, scoped, tag = 'input window, operand 10, single buffered']
    #allocation9 [shape = 's32[1]{0}', space=sflag, size = 0x4, scoped, tag = 'scoped memory for tpu_custom_call.1']
    #allocation10 [shape = 'u8[2048]{0}', space=vmem, size = 0x800, scoped, tag = 'output window, operand 0, single buffered']
    #allocation11 [shape = 'u8[1024]{0}', space=vmem, size = 0x400, scoped, tag = 'output window, operand 1, single buffered']
    #allocation12 [shape = 's32[1]{0}', space=sflag, size = 0x4, scoped, tag = 'scoped memory for tpu_custom_call.1']
    #allocation13 [shape = 'u8[1024]{0}', space=vmem, size = 0x400, scoped, tag = 'output window, operand 2, single buffered']
    %21 = vsyncpa [#allocation3], 0
    %22 = vsyncpa [#allocation6], 0
    %23 = vsyncpa [#allocation9], 0
    %24 = vsyncpa [#allocation4], 0
    %25 = vsyncpa [#allocation12], 0
    // Predicated region
    $region2: #{tpu_custom_call.1} parent=1 // pred_check
      _
    $region3: #{tpu_custom_call.1} parent=1 // pred_check_branch
      %27 = sbr.rel (0) target = $region5
    $region4: #{tpu_custom_call.1} parent=1 // pred_region
      _
    $region5: #{tpu_custom_call.1} parent=1 // pred_fallthru
      _
    // Predicated region
    $region6: #{tpu_custom_call.1} parent=1 // pred_check
      _
    $region7: #{tpu_custom_call.1} parent=1 // pred_check_branch
      %29 = sbr.rel (0) target = $region9
    $region8: #{tpu_custom_call.1} parent=1 // pred_region
      _
    $region9: #{tpu_custom_call.1} parent=1 // pred_fallthru
      _
    // Predicated region
    $region10: #{tpu_custom_call.1} parent=1 // pred_check
      _
    $region11: #{tpu_custom_call.1} parent=1 // pred_check_branch
      %31 = sbr.rel (0) target = $region13
    $region12: #{tpu_custom_call.1} parent=1 // pred_region
      _
    $region13: #{tpu_custom_call.1} parent=1 // pred_fallthru
      _
    // Predicated region
    $region14: #{tpu_custom_call.1} parent=1 // pred_check
      _
    $region15: #{tpu_custom_call.1} parent=1 // pred_check_branch
      %33 = sbr.rel (0) target = $region17
    $region16: #{tpu_custom_call.1} parent=1 // pred_region
      _
    $region17: #{tpu_custom_call.1} parent=1 // pred_fallthru
      _
    // Predicated region
    $region18: #{tpu_custom_call.1} parent=1 // pred_check
      _
    $region19: #{tpu_custom_call.1} parent=1 // pred_check_branch
      %35 = sbr.rel (0) target = $region21
    $region20: #{tpu_custom_call.1} parent=1 // pred_region
      _
    $region21: #{tpu_custom_call.1} parent=1 // pred_fallthru
      _
    // Predicated region
    $region22: #{tpu_custom_call.1} parent=1 // pred_check
      _
    $region23: #{tpu_custom_call.1} parent=1 // pred_check_branch
      %37 = sbr.rel (0) target = $region25
    $region24: #{tpu_custom_call.1} parent=1 // pred_region
      %s39 = ssub.s32 8192, 8192
      %40 = vsyncadd [#allocation3], %s39
      %s41 = sshll.u32 [#allocation2], 4
      %s42 = int_to_ptr.vmem [resolvable:$true] %s41
      %47 = dma.hbm_to_vmem [thread:$0]  %s5, 8192, %s42, [#allocation3], 256, 256, 16
    $region25: #{tpu_custom_call.1} parent=1 // pred_fallthru
      _
    // Predicated region
    $region26: #{tpu_custom_call.1} parent=1 // pred_check
      _
    $region27: #{tpu_custom_call.1} parent=1 // pred_check_branch
      %49 = sbr.rel (0) target = $region29
    $region28: #{tpu_custom_call.1} parent=1 // pred_region
      %s51 = ssub.s32 8192, 8192
      %52 = vsyncadd [#allocation6], %s51
      %s53 = sshll.u32 [#allocation5], 4
      %s54 = int_to_ptr.vmem [resolvable:$true] %s53
      %59 = dma.hbm_to_vmem [thread:$0]  %s6, 8192, %s54, [#allocation6], 256, 256, 16
    $region29: #{tpu_custom_call.1} parent=1 // pred_fallthru
      _
    // Predicated region
    $region30: #{tpu_custom_call.1} parent=1 // pred_check
      _
    $region31: #{tpu_custom_call.1} parent=1 // pred_check_branch
      %61 = sbr.rel (0) target = $region33
    $region32: #{tpu_custom_call.1} parent=1 // pred_region
      _
    $region33: #{tpu_custom_call.1} parent=1 // pred_fallthru
      _
    // Predicated region
    $region34: #{tpu_custom_call.1} parent=1 // pred_check
      _
    $region35: #{tpu_custom_call.1} parent=1 // pred_check_branch
      %63 = sbr.rel (0) target = $region37
    $region36: #{tpu_custom_call.1} parent=1 // pred_region
      %s65 = ssub.s32 8192, 8192
      %66 = vsyncadd [#allocation6], %s65
      %s67 = sshll.u32 [#allocation7], 4
      %s68 = int_to_ptr.vmem [resolvable:$true] %s67
      %73 = dma.hbm_to_vmem [thread:$0]  %s8, 8192, %s68, [#allocation6], 128, 128, 8
    $region37: #{tpu_custom_call.1} parent=1 // pred_fallthru
      _
    // Predicated region
    $region38: #{tpu_custom_call.1} parent=1 // pred_check
      _
    $region39: #{tpu_custom_call.1} parent=1 // pred_check_branch
      %75 = sbr.rel (0) target = $region41
    $region40: #{tpu_custom_call.1} parent=1 // pred_region
      _
    $region41: #{tpu_custom_call.1} parent=1 // pred_fallthru
      _
    // Predicated region
    $region42: #{tpu_custom_call.1} parent=1 // pred_check
      _
    $region43: #{tpu_custom_call.1} parent=1 // pred_check_branch
      %77 = sbr.rel (0) target = $region45
    $region44: #{tpu_custom_call.1} parent=1 // pred_region
      %s79 = ssub.s32 4096, 4096
      %80 = vsyncadd [#allocation9], %s79
      %s81 = sshll.u32 [#allocation8], 4
      %s82 = int_to_ptr.vmem [resolvable:$true] %s81
      %87 = dma.hbm_to_vmem [thread:$0]  %s10, 4096, %s82, [#allocation9], 128, 128, 8
    $region45: #{tpu_custom_call.1} parent=1 // pred_fallthru
      _
    // Predicated region
    $region46: #{tpu_custom_call.1} parent=1 // pred_check
      _
    $region47: #{tpu_custom_call.1} parent=1 // pred_check_branch
      %89 = sbr.rel (0) target = $region49
    $region48: #{tpu_custom_call.1} parent=1 // pred_region
      _
    $region49: #{tpu_custom_call.1} parent=1 // pred_fallthru
      _
    // Predicated region
    $region50: #{tpu_custom_call.1} parent=1 // pred_check
      _
    $region51: #{tpu_custom_call.1} parent=1 // pred_check_branch
      %91 = sbr.rel (0) target = $region53
    $region52: #{tpu_custom_call.1} parent=1 // pred_region
      _
    $region53: #{tpu_custom_call.1} parent=1 // pred_fallthru
      _
    // Predicated region
    $region54: #{tpu_custom_call.1} parent=1 // pred_check
      _
    $region55: #{tpu_custom_call.1} parent=1 // pred_check_branch
      %93 = sbr.rel (0) target = $region57
    $region56: #{tpu_custom_call.1} parent=1 // pred_region
      %94 = dma.done [#allocation3], 8192
    $region57: #{tpu_custom_call.1} parent=1 // pred_fallthru
      _
    // Predicated region
    $region58: #{tpu_custom_call.1} parent=1 // pred_check
      _
    $region59: #{tpu_custom_call.1} parent=1 // pred_check_branch
      %96 = sbr.rel (0) target = $region61
    $region60: #{tpu_custom_call.1} parent=1 // pred_region
      %97 = dma.done [#allocation6], 8192
    $region61: #{tpu_custom_call.1} parent=1 // pred_fallthru
      _
    // Predicated region
    $region62: #{tpu_custom_call.1} parent=1 // pred_check
      _
    $region63: #{tpu_custom_call.1} parent=1 // pred_check_branch
      %99 = sbr.rel (0) target = $region65
    $region64: #{tpu_custom_call.1} parent=1 // pred_region
      %100 = dma.done [#allocation6], 8192
    $region65: #{tpu_custom_call.1} parent=1 // pred_fallthru
      _
    // Predicated region
    $region66: #{tpu_custom_call.1} parent=1 // pred_check
      _
    $region67: #{tpu_custom_call.1} parent=1 // pred_check_branch
      %102 = sbr.rel (0) target = $region69
    $region68: #{tpu_custom_call.1} parent=1 // pred_region
      %103 = dma.done [#allocation9], 4096
    $region69: #{tpu_custom_call.1} parent=1 // pred_fallthru
      _
    %v105 = vld [vmem:[%s0] sm:$0xf]
    %v106 = vld [vmem:[%s0 + $0x4] sm:$0xf]
    %v107 = vld [vmem:[%s0 + $0x8] sm:$0xf]
    %v108 = vld [vmem:[%s0 + $0xc] sm:$0xf]
    %v109 = vld [vmem:[%s0 + $0x10] sm:$0xf]
    %v110 = vld [vmem:[%s0 + $0x14] sm:$0xf]
    %v111 = vld [vmem:[%s0 + $0x18] sm:$0xf]
    %v112 = vld [vmem:[%s0 + $0x1c] sm:$0xf]
    %v113 = vld [vmem:[%s0 + $0x20] sm:$0xf]
    %v114 = vld [vmem:[%s0 + $0x24] sm:$0xf]
    %v115 = vld [vmem:[%s0 + $0x28] sm:$0xf]
    %v116 = vld [vmem:[%s0 + $0x2c] sm:$0xf]
    %v117 = vld [vmem:[%s0 + $0x30] sm:$0xf]
    %v118 = vld [vmem:[%s0 + $0x34] sm:$0xf]
    %v119 = vld [vmem:[%s0 + $0x38] sm:$0xf]
    %v120 = vld [vmem:[%s0 + $0x3c] sm:$0xf]
    %v121 = vld [vmem:[%s0 + $0x40] sm:$0xf]
    %v122 = vld [vmem:[%s0 + $0x44] sm:$0xf]
    %v123 = vld [vmem:[%s0 + $0x48] sm:$0xf]
    %v124 = vld [vmem:[%s0 + $0x4c] sm:$0xf]
    %v125 = vld [vmem:[%s0 + $0x50] sm:$0xf]
    %v126 = vld [vmem:[%s0 + $0x54] sm:$0xf]
    %v127 = vld [vmem:[%s0 + $0x58] sm:$0xf]
    %v128 = vld [vmem:[%s0 + $0x5c] sm:$0xf]
    %v129 = vld [vmem:[%s0 + $0x60] sm:$0xf]
    %v130 = vld [vmem:[%s0 + $0x64] sm:$0xf]
    %v131 = vld [vmem:[%s0 + $0x68] sm:$0xf]
    %v132 = vld [vmem:[%s0 + $0x6c] sm:$0xf]
    %v133 = vld [vmem:[%s0 + $0x70] sm:$0xf]
    %v134 = vld [vmem:[%s0 + $0x74] sm:$0xf]
    %v135 = vld [vmem:[%s0 + $0x78] sm:$0xf]
    %v136 = vld [vmem:[%s0 + $0x7c] sm:$0xf]
    %v137 = vld [vmem:[%s1] sm:$0xf]
    %v138 = vld [vmem:[%s2] sm:$0x1]
    %v140 = vlaneseq
    %v141 = vshrl.u32 %v140, 7
    %v142 = vsub.s32 0, %v141
    %v143 = vrot.slane %v138, %v142
    %v177 = vunpack.c.l.b16 %v105
    %v178 = vunpack.c.l.b16 %v106
    %v179 = vunpack.c.l.b16 %v107
    %v180 = vunpack.c.l.b16 %v108
    %v181 = vunpack.c.l.b16 %v109
    %v182 = vunpack.c.l.b16 %v110
    %v183 = vunpack.c.l.b16 %v111
    %v184 = vunpack.c.l.b16 %v112
    %v185 = vunpack.c.l.b16 %v113
    %v186 = vunpack.c.l.b16 %v114
    %v187 = vunpack.c.l.b16 %v115
    %v188 = vunpack.c.l.b16 %v116
    %v189 = vunpack.c.l.b16 %v117
    %v190 = vunpack.c.l.b16 %v118
    %v191 = vunpack.c.l.b16 %v119
    %v192 = vunpack.c.l.b16 %v120
    %v193 = vunpack.c.l.b16 %v121
    %v194 = vunpack.c.l.b16 %v122
    %v195 = vunpack.c.l.b16 %v123
    %v196 = vunpack.c.l.b16 %v124
    %v197 = vunpack.c.l.b16 %v125
    %v198 = vunpack.c.l.b16 %v126
    %v199 = vunpack.c.l.b16 %v127
    %v200 = vunpack.c.l.b16 %v128
    %v201 = vunpack.c.l.b16 %v129
    %v202 = vunpack.c.l.b16 %v130
    %v203 = vunpack.c.l.b16 %v131
    %v204 = vunpack.c.l.b16 %v132
    %v205 = vunpack.c.l.b16 %v133
    %v206 = vunpack.c.l.b16 %v134
    %v207 = vunpack.c.l.b16 %v135
    %v208 = vunpack.c.l.b16 %v136
    %v209 = vpack.c.b16 %v178, %v177
    %v210 = vpack.c.b16 %v180, %v179
    %v211 = vpack.c.b16 %v182, %v181
    %v212 = vpack.c.b16 %v184, %v183
    %v213 = vpack.c.b16 %v186, %v185
    %v214 = vpack.c.b16 %v188, %v187
    %v215 = vpack.c.b16 %v190, %v189
    %v216 = vpack.c.b16 %v192, %v191
    %v217 = vpack.c.b16 %v194, %v193
    %v218 = vpack.c.b16 %v196, %v195
    %v219 = vpack.c.b16 %v198, %v197
    %v220 = vpack.c.b16 %v200, %v199
    %v221 = vpack.c.b16 %v202, %v201
    %v222 = vpack.c.b16 %v204, %v203
    %v223 = vpack.c.b16 %v206, %v205
    %v224 = vpack.c.b16 %v208, %v207
    %vm225 = vcmask 64512
    %v227 = vsel %vm225, %v209, 0
    %v230 = vsel %vm225, %v210, 0
    %v233 = vsel %vm225, %v211, 0
    %v236 = vsel %vm225, %v212, 0
    %v239 = vsel %vm225, %v213, 0
    %v242 = vsel %vm225, %v214, 0
    %v245 = vsel %vm225, %v215, 0
    %v248 = vsel %vm225, %v216, 0
    %v251 = vsel %vm225, %v217, 0
    %v254 = vsel %vm225, %v218, 0
    %v257 = vsel %vm225, %v219, 0
    %v260 = vsel %vm225, %v220, 0
    %v263 = vsel %vm225, %v221, 0
    %v266 = vsel %vm225, %v222, 0
    %v269 = vsel %vm225, %v223, 0
    %v272 = vsel %vm225, %v224, 0
    %vm274 = vcmask 1043456
    %v276 = vsel %vm274, %v137, 0
    %278 = vmatprep.subr.bf16.mxu0 0
    %279 = vmatpush1.bf16.msra.mxu0 %v276
    %280 = vmatprep.subr.bf16.mxu0 0
    %281 = vmatpush1.bf16.msra.mxu0 0
    %282 = vmatprep.subr.bf16.mxu0 0
    %283 = vmatpush1.bf16.msra.mxu0 0
    %284 = vmatprep.subr.bf16.mxu0 0
    %285 = vmatpush1.bf16.msra.mxu0 0
    %286 = vmatprep.subr.bf16.mxu0 0
    %287 = vmatpush1.bf16.msra.mxu0 0
    %288 = vmatprep.subr.bf16.mxu0 0
    %289 = vmatpush1.bf16.msra.mxu0 0
    %290 = vmatprep.subr.bf16.mxu0 0
    %291 = vmatpush1.bf16.msra.mxu0 0
    %292 = vmatprep.subr.bf16.mxu0 0
    %293 = vmatpush1.bf16.msra.mxu0 0
    %294 = vmatprep.subr.bf16.mxu0 0
    %295 = vmatpush1.bf16.msra.mxu0 0
    %296 = vmatprep.subr.bf16.mxu0 0
    %297 = vmatpush1.bf16.msra.mxu0 0
    %298 = vmatprep.subr.bf16.mxu0 0
    %299 = vmatpush1.bf16.msra.mxu0 0
    %300 = vmatprep.subr.bf16.mxu0 0
    %301 = vmatpush1.bf16.msra.mxu0 0
    %302 = vmatprep.subr.bf16.mxu0 0
    %303 = vmatpush1.bf16.msra.mxu0 0
    %304 = vmatprep.subr.bf16.mxu0 0
    %305 = vmatpush1.bf16.msra.mxu0 0
    %306 = vmatprep.subr.bf16.mxu0 0
    %307 = vmatpush1.bf16.msra.mxu0 0
    %308 = vmatprep.subr.bf16.mxu0 0
    %309 = vmatpush1.bf16.msra.mxu0 0
    %310 = vmatprep.mubr.bf16.mxu0 0
    %311 = vmatmul.mubr.bf16.gmra.mrb[0].mxu0 %v227
    %v312 = vpop.f32.mrb[0].mxu0
    %v313 = vadd.f32 %v143, %v312
    %v314 = vpop.f32.mrb[0].mxu0
    %v315 = vpop.f32.mrb[0].mxu0
    %v316 = vadd.f32 %v143, %v315
    %v317 = vpop.f32.mrb[0].mxu0
    %318 = vmatprep.mubr.bf16.mxu0 0
    %319 = vmatmul.mubr.bf16.gmra.mrb[0].mxu0 %v230
    %v320 = vpop.f32.mrb[0].mxu0
    %v321 = vadd.f32 %v143, %v320
    %v322 = vpop.f32.mrb[0].mxu0
    %v323 = vpop.f32.mrb[0].mxu0
    %v324 = vadd.f32 %v143, %v323
    %v325 = vpop.f32.mrb[0].mxu0
    %326 = vmatprep.mubr.bf16.mxu0 0
    %327 = vmatmul.mubr.bf16.gmra.mrb[0].mxu0 %v233
    %v328 = vpop.f32.mrb[0].mxu0
    %v329 = vadd.f32 %v143, %v328
    %v330 = vpop.f32.mrb[0].mxu0
    %v331 = vpop.f32.mrb[0].mxu0
    %v332 = vadd.f32 %v143, %v331
    %v333 = vpop.f32.mrb[0].mxu0
    %334 = vmatprep.mubr.bf16.mxu0 0
    %335 = vmatmul.mubr.bf16.gmra.mrb[0].mxu0 %v236
    %v336 = vpop.f32.mrb[0].mxu0
    %v337 = vadd.f32 %v143, %v336
    %v338 = vpop.f32.mrb[0].mxu0
    %v339 = vpop.f32.mrb[0].mxu0
    %v340 = vadd.f32 %v143, %v339
    %v341 = vpop.f32.mrb[0].mxu0
    %342 = vmatprep.mubr.bf16.mxu0 0
    %343 = vmatmul.mubr.bf16.gmra.mrb[0].mxu0 %v239
    %v344 = vpop.f32.mrb[0].mxu0
    %v345 = vadd.f32 %v143, %v344
    %v346 = vpop.f32.mrb[0].mxu0
    %v347 = vpop.f32.mrb[0].mxu0
    %v348 = vadd.f32 %v143, %v347
    %v349 = vpop.f32.mrb[0].mxu0
    %350 = vmatprep.mubr.bf16.mxu0 0
    %351 = vmatmul.mubr.bf16.gmra.mrb[0].mxu0 %v242
    %v352 = vpop.f32.mrb[0].mxu0
    %v353 = vadd.f32 %v143, %v352
    %v354 = vpop.f32.mrb[0].mxu0
    %v355 = vpop.f32.mrb[0].mxu0
    %v356 = vadd.f32 %v143, %v355
    %v357 = vpop.f32.mrb[0].mxu0
    %358 = vmatprep.mubr.bf16.mxu0 0
    %359 = vmatmul.mubr.bf16.gmra.mrb[0].mxu0 %v245
    %v360 = vpop.f32.mrb[0].mxu0
    %v361 = vadd.f32 %v143, %v360
    %v362 = vpop.f32.mrb[0].mxu0
    %v363 = vpop.f32.mrb[0].mxu0
    %v364 = vadd.f32 %v143, %v363
    %v365 = vpop.f32.mrb[0].mxu0
    %366 = vmatprep.mubr.bf16.mxu0 0
    %367 = vmatmul.mubr.bf16.gmra.mrb[0].mxu0 %v248
    %v368 = vpop.f32.mrb[0].mxu0
    %v369 = vadd.f32 %v143, %v368
    %v370 = vpop.f32.mrb[0].mxu0
    %v371 = vpop.f32.mrb[0].mxu0
    %v372 = vadd.f32 %v143, %v371
    %v373 = vpop.f32.mrb[0].mxu0
    %374 = vmatprep.mubr.bf16.mxu0 0
    %375 = vmatmul.mubr.bf16.gmra.mrb[0].mxu0 %v251
    %v376 = vpop.f32.mrb[0].mxu0
    %v377 = vadd.f32 %v143, %v376
    %v378 = vpop.f32.mrb[0].mxu0
    %v379 = vpop.f32.mrb[0].mxu0
    %v380 = vadd.f32 %v143, %v379
    %v381 = vpop.f32.mrb[0].mxu0
    %382 = vmatprep.mubr.bf16.mxu0 0
    %383 = vmatmul.mubr.bf16.gmra.mrb[0].mxu0 %v254
    %v384 = vpop.f32.mrb[0].mxu0
    %v385 = vadd.f32 %v143, %v384
    %v386 = vpop.f32.mrb[0].mxu0
    %v387 = vpop.f32.mrb[0].mxu0
    %v388 = vadd.f32 %v143, %v387
    %v389 = vpop.f32.mrb[0].mxu0
    %390 = vmatprep.mubr.bf16.mxu0 0
    %391 = vmatmul.mubr.bf16.gmra.mrb[0].mxu0 %v257
    %v392 = vpop.f32.mrb[0].mxu0
    %v393 = vadd.f32 %v143, %v392
    %v394 = vpop.f32.mrb[0].mxu0
    %v395 = vpop.f32.mrb[0].mxu0
    %v396 = vadd.f32 %v143, %v395
    %v397 = vpop.f32.mrb[0].mxu0
    %398 = vmatprep.mubr.bf16.mxu0 0
    %399 = vmatmul.mubr.bf16.gmra.mrb[0].mxu0 %v260
    %v400 = vpop.f32.mrb[0].mxu0
    %v401 = vadd.f32 %v143, %v400
    %v402 = vpop.f32.mrb[0].mxu0
    %v403 = vpop.f32.mrb[0].mxu0
    %v404 = vadd.f32 %v143, %v403
    %v405 = vpop.f32.mrb[0].mxu0
    %406 = vmatprep.mubr.bf16.mxu0 0
    %407 = vmatmul.mubr.bf16.gmra.mrb[0].mxu0 %v263
    %v408 = vpop.f32.mrb[0].mxu0
    %v409 = vadd.f32 %v143, %v408
    %v410 = vpop.f32.mrb[0].mxu0
    %v411 = vpop.f32.mrb[0].mxu0
    %v412 = vadd.f32 %v143, %v411
    %v413 = vpop.f32.mrb[0].mxu0
    %414 = vmatprep.mubr.bf16.mxu0 0
    %415 = vmatmul.mubr.bf16.gmra.mrb[0].mxu0 %v266
    %v416 = vpop.f32.mrb[0].mxu0
    %v417 = vadd.f32 %v143, %v416
    %v418 = vpop.f32.mrb[0].mxu0
    %v419 = vpop.f32.mrb[0].mxu0
    %v420 = vadd.f32 %v143, %v419
    %v421 = vpop.f32.mrb[0].mxu0
    %422 = vmatprep.mubr.bf16.mxu0 0
    %423 = vmatmul.mubr.bf16.gmra.mrb[0].mxu0 %v269
    %v424 = vpop.f32.mrb[0].mxu0
    %v425 = vadd.f32 %v143, %v424
    %v426 = vpop.f32.mrb[0].mxu0
    %v427 = vpop.f32.mrb[0].mxu0
    %v428 = vadd.f32 %v143, %v427
    %v429 = vpop.f32.mrb[0].mxu0
    %430 = vmatprep.mubr.bf16.mxu0 0
    %431 = vmatmul.mubr.bf16.gmra.mrb[0].mxu0 %v272
    %v432 = vpop.f32.mrb[0].mxu0
    %v433 = vadd.f32 %v143, %v432
    %v434 = vpop.f32.mrb[0].mxu0
    %v435 = vpop.f32.mrb[0].mxu0
    %v436 = vadd.f32 %v143, %v435
    %v437 = vpop.f32.mrb[0].mxu0
    %438 = vdwg.mxu0
    %v439 = vmax.f32 %v313, 0.0
    %v440 = vmax.f32 %v316, 0.0
    %v441 = vmax.f32 %v321, 0.0
    %v442 = vmax.f32 %v324, 0.0
    %v443 = vmax.f32 %v329, 0.0
    %v444 = vmax.f32 %v332, 0.0
    %v445 = vmax.f32 %v337, 0.0
    %v446 = vmax.f32 %v340, 0.0
    %v447 = vmax.f32 %v345, 0.0
    %v448 = vmax.f32 %v348, 0.0
    %v449 = vmax.f32 %v353, 0.0
    %v450 = vmax.f32 %v356, 0.0
    %v451 = vmax.f32 %v361, 0.0
    %v452 = vmax.f32 %v364, 0.0
    %v453 = vmax.f32 %v369, 0.0
    %v454 = vmax.f32 %v372, 0.0
    %v455 = vmax.f32 %v377, 0.0
    %v456 = vmax.f32 %v380, 0.0
    %v457 = vmax.f32 %v385, 0.0
    %v458 = vmax.f32 %v388, 0.0
    %v459 = vmax.f32 %v393, 0.0
    %v460 = vmax.f32 %v396, 0.0
    %v461 = vmax.f32 %v401, 0.0
    %v462 = vmax.f32 %v404, 0.0
    %v463 = vmax.f32 %v409, 0.0
    %v464 = vmax.f32 %v412, 0.0
    %v465 = vmax.f32 %v417, 0.0
    %v466 = vmax.f32 %v420, 0.0
    %v467 = vmax.f32 %v425, 0.0
    %v468 = vmax.f32 %v428, 0.0
    %v469 = vmax.f32 %v433, 0.0
    %v470 = vmax.f32 %v436, 0.0
    %v471 = vpack.c.bf16 %v440, %v439
    %v472 = vpack.c.bf16 %v442, %v441
    %v473 = vpack.c.bf16 %v444, %v443
    %v474 = vpack.c.bf16 %v446, %v445
    %v475 = vpack.c.bf16 %v448, %v447
    %v476 = vpack.c.bf16 %v450, %v449
    %v477 = vpack.c.bf16 %v452, %v451
    %v478 = vpack.c.bf16 %v454, %v453
    %v479 = vpack.c.bf16 %v456, %v455
    %v480 = vpack.c.bf16 %v458, %v457
    %v481 = vpack.c.bf16 %v460, %v459
    %v482 = vpack.c.bf16 %v462, %v461
    %v483 = vpack.c.bf16 %v464, %v463
    %v484 = vpack.c.bf16 %v466, %v465
    %v485 = vpack.c.bf16 %v468, %v467
    %v486 = vpack.c.bf16 %v470, %v469
    %v487 = vld [vmem:[%s3] sm:$0xff]
    %v488 = vld [vmem:[%s3 + $0x8] sm:$0xff]
    %v489 = vld [vmem:[%s3 + $0x10] sm:$0xff]
    %v490 = vld [vmem:[%s3 + $0x18] sm:$0xff]
    %v491 = vld [vmem:[%s3 + $0x20] sm:$0xff]
    %v492 = vld [vmem:[%s3 + $0x28] sm:$0xff]
    %v493 = vld [vmem:[%s3 + $0x30] sm:$0xff]
    %v494 = vld [vmem:[%s3 + $0x38] sm:$0xff]
    %v495 = vld [vmem:[%s3 + $0x40] sm:$0xff]
    %v496 = vld [vmem:[%s3 + $0x48] sm:$0xff]
    %v497 = vld [vmem:[%s3 + $0x50] sm:$0xff]
    %v498 = vld [vmem:[%s3 + $0x58] sm:$0xff]
    %v499 = vld [vmem:[%s3 + $0x60] sm:$0xff]
    %v500 = vld [vmem:[%s3 + $0x68] sm:$0xff]
    %v501 = vld [vmem:[%s3 + $0x70] sm:$0xff]
    %v502 = vld [vmem:[%s3 + $0x78] sm:$0xff]
    %v503 = vld [vmem:[%s4] sm:$0x3]
    %v505 = vlaneseq
    %v506 = vshrl.u32 %v505, 7
    %v507 = vsub.s32 0, %v506
    %v508 = vrot.slane %v503, %v507
    %v509 = vlaneseq
    %v510 = vshrl.u32 %v509, 7
    %v511 = vsub.s32 1, %v510
    %v512 = vrot.slane %v503, %v511
    %v531 = vunpack.c.l.b16 %v487
    %v532 = vunpack.c.h.b16 %v487
    %v533 = vunpack.c.l.b16 %v488
    %v534 = vunpack.c.h.b16 %v488
    %v535 = vunpack.c.l.b16 %v489
    %v536 = vunpack.c.h.b16 %v489
    %v537 = vunpack.c.l.b16 %v490
    %v538 = vunpack.c.h.b16 %v490
    %v539 = vunpack.c.l.b16 %v491
    %v540 = vunpack.c.h.b16 %v491
    %v541 = vunpack.c.l.b16 %v492
    %v542 = vunpack.c.h.b16 %v492
    %v543 = vunpack.c.l.b16 %v493
    %v544 = vunpack.c.h.b16 %v493
    %v545 = vunpack.c.l.b16 %v494
    %v546 = vunpack.c.h.b16 %v494
    %v547 = vunpack.c.l.b16 %v495
    %v548 = vunpack.c.h.b16 %v495
    %v549 = vunpack.c.l.b16 %v496
    %v550 = vunpack.c.h.b16 %v496
    %v551 = vunpack.c.l.b16 %v497
    %v552 = vunpack.c.h.b16 %v497
    %v553 = vunpack.c.l.b16 %v498
    %v554 = vunpack.c.h.b16 %v498
    %v555 = vunpack.c.l.b16 %v499
    %v556 = vunpack.c.h.b16 %v499
    %v557 = vunpack.c.l.b16 %v500
    %v558 = vunpack.c.h.b16 %v500
    %v559 = vunpack.c.l.b16 %v501
    %v560 = vunpack.c.h.b16 %v501
    %v561 = vunpack.c.l.b16 %v502
    %v562 = vunpack.c.h.b16 %v502
    %v563 = vpack.c.b16 %v533, %v531
    %v564 = vpack.c.b16 %v534, %v532
    %v565 = vpack.c.b16 %v537, %v535
    %v566 = vpack.c.b16 %v538, %v536
    %v567 = vpack.c.b16 %v541, %v539
    %v568 = vpack.c.b16 %v542, %v540
    %v569 = vpack.c.b16 %v545, %v543
    %v570 = vpack.c.b16 %v546, %v544
    %v571 = vpack.c.b16 %v549, %v547
    %v572 = vpack.c.b16 %v550, %v548
    %v573 = vpack.c.b16 %v553, %v551
    %v574 = vpack.c.b16 %v554, %v552
    %v575 = vpack.c.b16 %v557, %v555
    %v576 = vpack.c.b16 %v558, %v556
    %v577 = vpack.c.b16 %v561, %v559
    %v578 = vpack.c.b16 %v562, %v560
    %595 = vmatprep.subr.bf16.mxu0 %v564
    %596 = vmatpush1.bf16.msra.mxu0 %v563
    %597 = vmatprep.subr.bf16.mxu0 %v566
    %598 = vmatpush1.bf16.msra.mxu0 %v565
    %599 = vmatprep.subr.bf16.mxu0 %v568
    %600 = vmatpush1.bf16.msra.mxu0 %v567
    %601 = vmatprep.subr.bf16.mxu0 %v570
    %602 = vmatpush1.bf16.msra.mxu0 %v569
    %603 = vmatprep.subr.bf16.mxu0 %v572
    %604 = vmatpush1.bf16.msra.mxu0 %v571
    %605 = vmatprep.subr.bf16.mxu0 %v574
    %606 = vmatpush1.bf16.msra.mxu0 %v573
    %607 = vmatprep.subr.bf16.mxu0 %v576
    %608 = vmatpush1.bf16.msra.mxu0 %v575
    %609 = vmatprep.subr.bf16.mxu0 %v578
    %610 = vmatpush1.bf16.msra.mxu0 %v577
    %611 = vmatprep.subr.bf16.mxu0 0
    %612 = vmatpush1.bf16.msra.mxu0 0
    %613 = vmatprep.subr.bf16.mxu0 0
    %614 = vmatpush1.bf16.msra.mxu0 0
    %615 = vmatprep.subr.bf16.mxu0 0
    %616 = vmatpush1.bf16.msra.mxu0 0
    %617 = vmatprep.subr.bf16.mxu0 0
    %618 = vmatpush1.bf16.msra.mxu0 0
    %619 = vmatprep.subr.bf16.mxu0 0
    %620 = vmatpush1.bf16.msra.mxu0 0
    %621 = vmatprep.subr.bf16.mxu0 0
    %622 = vmatpush1.bf16.msra.mxu0 0
    %623 = vmatprep.subr.bf16.mxu0 0
    %624 = vmatpush1.bf16.msra.mxu0 0
    %625 = vmatprep.subr.bf16.mxu0 0
    %626 = vmatpush1.bf16.msra.mxu0 0
    %627 = vmatprep.mubr.bf16.mxu0 0
    %628 = vmatmul.mubr.bf16.gmra.mrb[0].mxu0 %v471
    %v629 = vpop.f32.mrb[0].mxu0
    %v630 = vadd.f32 %v508, %v629
    %v631 = vpop.f32.mrb[0].mxu0
    %v632 = vadd.f32 %v512, %v631
    %v633 = vpop.f32.mrb[0].mxu0
    %v634 = vadd.f32 %v508, %v633
    %v635 = vpop.f32.mrb[0].mxu0
    %v636 = vadd.f32 %v512, %v635
    %637 = vmatprep.mubr.bf16.mxu0 0
    %638 = vmatmul.mubr.bf16.gmra.mrb[0].mxu0 %v472
    %v639 = vpop.f32.mrb[0].mxu0
    %v640 = vadd.f32 %v508, %v639
    %v641 = vpop.f32.mrb[0].mxu0
    %v642 = vadd.f32 %v512, %v641
    %v643 = vpop.f32.mrb[0].mxu0
    %v644 = vadd.f32 %v508, %v643
    %v645 = vpop.f32.mrb[0].mxu0
    %v646 = vadd.f32 %v512, %v645
    %647 = vmatprep.mubr.bf16.mxu0 0
    %648 = vmatmul.mubr.bf16.gmra.mrb[0].mxu0 %v473
    %v649 = vpop.f32.mrb[0].mxu0
    %v650 = vadd.f32 %v508, %v649
    %v651 = vpop.f32.mrb[0].mxu0
    %v652 = vadd.f32 %v512, %v651
    %v653 = vpop.f32.mrb[0].mxu0
    %v654 = vadd.f32 %v508, %v653
    %v655 = vpop.f32.mrb[0].mxu0
    %v656 = vadd.f32 %v512, %v655
    %657 = vmatprep.mubr.bf16.mxu0 0
    %658 = vmatmul.mubr.bf16.gmra.mrb[0].mxu0 %v474
    %v659 = vpop.f32.mrb[0].mxu0
    %v660 = vadd.f32 %v508, %v659
    %v661 = vpop.f32.mrb[0].mxu0
    %v662 = vadd.f32 %v512, %v661
    %v663 = vpop.f32.mrb[0].mxu0
    %v664 = vadd.f32 %v508, %v663
    %v665 = vpop.f32.mrb[0].mxu0
    %v666 = vadd.f32 %v512, %v665
    %667 = vmatprep.mubr.bf16.mxu0 0
    %668 = vmatmul.mubr.bf16.gmra.mrb[0].mxu0 %v475
    %v669 = vpop.f32.mrb[0].mxu0
    %v670 = vadd.f32 %v508, %v669
    %v671 = vpop.f32.mrb[0].mxu0
    %v672 = vadd.f32 %v512, %v671
    %v673 = vpop.f32.mrb[0].mxu0
    %v674 = vadd.f32 %v508, %v673
    %v675 = vpop.f32.mrb[0].mxu0
    %v676 = vadd.f32 %v512, %v675
    %677 = vmatprep.mubr.bf16.mxu0 0
    %678 = vmatmul.mubr.bf16.gmra.mrb[0].mxu0 %v476
    %v679 = vpop.f32.mrb[0].mxu0
    %v680 = vadd.f32 %v508, %v679
    %v681 = vpop.f32.mrb[0].mxu0
    %v682 = vadd.f32 %v512, %v681
    %v683 = vpop.f32.mrb[0].mxu0
    %v684 = vadd.f32 %v508, %v683
    %v685 = vpop.f32.mrb[0].mxu0
    %v686 = vadd.f32 %v512, %v685
    %687 = vmatprep.mubr.bf16.mxu0 0
    %688 = vmatmul.mubr.bf16.gmra.mrb[0].mxu0 %v477
    %v689 = vpop.f32.mrb[0].mxu0
    %v690 = vadd.f32 %v508, %v689
    %v691 = vpop.f32.mrb[0].mxu0
    %v692 = vadd.f32 %v512, %v691
    %v693 = vpop.f32.mrb[0].mxu0
    %v694 = vadd.f32 %v508, %v693
    %v695 = vpop.f32.mrb[0].mxu0
    %v696 = vadd.f32 %v512, %v695
    %697 = vmatprep.mubr.bf16.mxu0 0
    %698 = vmatmul.mubr.bf16.gmra.mrb[0].mxu0 %v478
    %v699 = vpop.f32.mrb[0].mxu0
    %v700 = vadd.f32 %v508, %v699
    %v701 = vpop.f32.mrb[0].mxu0
    %v702 = vadd.f32 %v512, %v701
    %v703 = vpop.f32.mrb[0].mxu0
    %v704 = vadd.f32 %v508, %v703
    %v705 = vpop.f32.mrb[0].mxu0
    %v706 = vadd.f32 %v512, %v705
    %707 = vmatprep.mubr.bf16.mxu0 0
    %708 = vmatmul.mubr.bf16.gmra.mrb[0].mxu0 %v479
    %v709 = vpop.f32.mrb[0].mxu0
    %v710 = vadd.f32 %v508, %v709
    %v711 = vpop.f32.mrb[0].mxu0
    %v712 = vadd.f32 %v512, %v711
    %v713 = vpop.f32.mrb[0].mxu0
    %v714 = vadd.f32 %v508, %v713
    %v715 = vpop.f32.mrb[0].mxu0
    %v716 = vadd.f32 %v512, %v715
    %717 = vmatprep.mubr.bf16.mxu0 0
    %718 = vmatmul.mubr.bf16.gmra.mrb[0].mxu0 %v480
    %v719 = vpop.f32.mrb[0].mxu0
    %v720 = vadd.f32 %v508, %v719
    %v721 = vpop.f32.mrb[0].mxu0
    %v722 = vadd.f32 %v512, %v721
    %v723 = vpop.f32.mrb[0].mxu0
    %v724 = vadd.f32 %v508, %v723
    %v725 = vpop.f32.mrb[0].mxu0
    %v726 = vadd.f32 %v512, %v725
    %727 = vmatprep.mubr.bf16.mxu0 0
    %728 = vmatmul.mubr.bf16.gmra.mrb[0].mxu0 %v481
    %v729 = vpop.f32.mrb[0].mxu0
    %v730 = vadd.f32 %v508, %v729
    %v731 = vpop.f32.mrb[0].mxu0
    %v732 = vadd.f32 %v512, %v731
    %v733 = vpop.f32.mrb[0].mxu0
    %v734 = vadd.f32 %v508, %v733
    %v735 = vpop.f32.mrb[0].mxu0
    %v736 = vadd.f32 %v512, %v735
    %737 = vmatprep.mubr.bf16.mxu0 0
    %738 = vmatmul.mubr.bf16.gmra.mrb[0].mxu0 %v482
    %v739 = vpop.f32.mrb[0].mxu0
    %v740 = vadd.f32 %v508, %v739
    %v741 = vpop.f32.mrb[0].mxu0
    %v742 = vadd.f32 %v512, %v741
    %v743 = vpop.f32.mrb[0].mxu0
    %v744 = vadd.f32 %v508, %v743
    %v745 = vpop.f32.mrb[0].mxu0
    %v746 = vadd.f32 %v512, %v745
    %747 = vmatprep.mubr.bf16.mxu0 0
    %748 = vmatmul.mubr.bf16.gmra.mrb[0].mxu0 %v483
    %v749 = vpop.f32.mrb[0].mxu0
    %v750 = vadd.f32 %v508, %v749
    %v751 = vpop.f32.mrb[0].mxu0
    %v752 = vadd.f32 %v512, %v751
    %v753 = vpop.f32.mrb[0].mxu0
    %v754 = vadd.f32 %v508, %v753
    %v755 = vpop.f32.mrb[0].mxu0
    %v756 = vadd.f32 %v512, %v755
    %757 = vmatprep.mubr.bf16.mxu0 0
    %758 = vmatmul.mubr.bf16.gmra.mrb[0].mxu0 %v484
    %v759 = vpop.f32.mrb[0].mxu0
    %v760 = vadd.f32 %v508, %v759
    %v761 = vpop.f32.mrb[0].mxu0
    %v762 = vadd.f32 %v512, %v761
    %v763 = vpop.f32.mrb[0].mxu0
    %v764 = vadd.f32 %v508, %v763
    %v765 = vpop.f32.mrb[0].mxu0
    %v766 = vadd.f32 %v512, %v765
    %767 = vmatprep.mubr.bf16.mxu0 0
    %768 = vmatmul.mubr.bf16.gmra.mrb[0].mxu0 %v485
    %v769 = vpop.f32.mrb[0].mxu0
    %v770 = vadd.f32 %v508, %v769
    %v771 = vpop.f32.mrb[0].mxu0
    %v772 = vadd.f32 %v512, %v771
    %v773 = vpop.f32.mrb[0].mxu0
    %v774 = vadd.f32 %v508, %v773
    %v775 = vpop.f32.mrb[0].mxu0
    %v776 = vadd.f32 %v512, %v775
    %777 = vmatprep.mubr.bf16.mxu0 0
    %778 = vmatmul.mubr.bf16.gmra.mrb[0].mxu0 %v486
    %v779 = vpop.f32.mrb[0].mxu0
    %v780 = vadd.f32 %v508, %v779
    %v781 = vpop.f32.mrb[0].mxu0
    %v782 = vadd.f32 %v512, %v781
    %v783 = vpop.f32.mrb[0].mxu0
    %v784 = vadd.f32 %v508, %v783
    %v785 = vpop.f32.mrb[0].mxu0
    %v786 = vadd.f32 %v512, %v785
    %787 = vdwg.mxu0
    %v788 = vmax.f32 %v630, %v634
    %v789 = vmax.f32 %v788, %v640
    %v790 = vmax.f32 %v789, %v644
    %v791 = vmax.f32 %v790, %v650
    %v792 = vmax.f32 %v791, %v654
    %v793 = vmax.f32 %v792, %v660
    %v794 = vmax.f32 %v793, %v664
    %v795 = vmax.f32 %v794, %v670
    %v796 = vmax.f32 %v795, %v674
    %v797 = vmax.f32 %v796, %v680
    %v798 = vmax.f32 %v797, %v684
    %v799 = vmax.f32 %v798, %v690
    %v800 = vmax.f32 %v799, %v694
    %v801 = vmax.f32 %v800, %v700
    %v802 = vmax.f32 %v801, %v704
    %v803 = vrot.slane %v802, 4
    %v804 = vmax.f32 %v802, %v803
    %v805 = vrot.slane %v804, 2
    %v806 = vmax.f32 %v804, %v805
    %v807 = vrot.slane %v806, 1
    %v808 = vmax.f32 %v806, %v807
    %v809 = vmax.f32 %v632, %v636
    %v810 = vmax.f32 %v809, %v642
    %v811 = vmax.f32 %v810, %v646
    %v812 = vmax.f32 %v811, %v652
    %v813 = vmax.f32 %v812, %v656
    %v814 = vmax.f32 %v813, %v662
    %v815 = vmax.f32 %v814, %v666
    %v816 = vmax.f32 %v815, %v672
    %v817 = vmax.f32 %v816, %v676
    %v818 = vmax.f32 %v817, %v682
    %v819 = vmax.f32 %v818, %v686
    %v820 = vmax.f32 %v819, %v692
    %v821 = vmax.f32 %v820, %v696
    %v822 = vmax.f32 %v821, %v702
    %v823 = vmax.f32 %v822, %v706
    %v824 = vrot.slane %v823, 4
    %v825 = vmax.f32 %v823, %v824
    %v826 = vrot.slane %v825, 2
    %v827 = vmax.f32 %v825, %v826
    %v828 = vrot.slane %v827, 1
    %v829 = vmax.f32 %v827, %v828
    %v830 = vmax.f32 %v710, %v714
    %v831 = vmax.f32 %v830, %v720
    %v832 = vmax.f32 %v831, %v724
    %v833 = vmax.f32 %v832, %v730
    %v834 = vmax.f32 %v833, %v734
    %v835 = vmax.f32 %v834, %v740
    %v836 = vmax.f32 %v835, %v744
    %v837 = vmax.f32 %v836, %v750
    %v838 = vmax.f32 %v837, %v754
    %v839 = vmax.f32 %v838, %v760
    %v840 = vmax.f32 %v839, %v764
    %v841 = vmax.f32 %v840, %v770
    %v842 = vmax.f32 %v841, %v774
    %v843 = vmax.f32 %v842, %v780
    %v844 = vmax.f32 %v843, %v784
    %v845 = vrot.slane %v844, 4
    %v846 = vmax.f32 %v844, %v845
    %v847 = vrot.slane %v846, 2
    %v848 = vmax.f32 %v846, %v847
    %v849 = vrot.slane %v848, 1
    %v850 = vmax.f32 %v848, %v849
    %v851 = vmax.f32 %v712, %v716
    %v852 = vmax.f32 %v851, %v722
    %v853 = vmax.f32 %v852, %v726
    %v854 = vmax.f32 %v853, %v732
    %v855 = vmax.f32 %v854, %v736
    %v856 = vmax.f32 %v855, %v742
    %v857 = vmax.f32 %v856, %v746
    %v858 = vmax.f32 %v857, %v752
    %v859 = vmax.f32 %v858, %v756
    %v860 = vmax.f32 %v859, %v762
    %v861 = vmax.f32 %v860, %v766
    %v862 = vmax.f32 %v861, %v772
    %v863 = vmax.f32 %v862, %v776
    %v864 = vmax.f32 %v863, %v782
    %v865 = vmax.f32 %v864, %v786
    %v866 = vrot.slane %v865, 4
    %v867 = vmax.f32 %v865, %v866
    %v868 = vrot.slane %v867, 2
    %v869 = vmax.f32 %v867, %v868
    %v870 = vrot.slane %v869, 1
    %v871 = vmax.f32 %v869, %v870
    %v872 = vpack.c.bf16 %v808, %v808
    %v873 = vpack.c.bf16 %v829, %v829
    %v874 = vpack.c.bf16 %v850, %v850
    %v875 = vpack.c.bf16 %v871, %v871
    %v876 = vld [vmem:[#allocation2] sm:$0xff]
    %v877 = vld [vmem:[#allocation2 + $0x8] sm:$0xff]
    %v878 = vld [vmem:[#allocation2 + $0x10] sm:$0xff]
    %v879 = vld [vmem:[#allocation2 + $0x18] sm:$0xff]
    %v880 = vld [vmem:[#allocation2 + $0x20] sm:$0xff]
    %v881 = vld [vmem:[#allocation2 + $0x28] sm:$0xff]
    %v882 = vld [vmem:[#allocation2 + $0x30] sm:$0xff]
    %v883 = vld [vmem:[#allocation2 + $0x38] sm:$0xff]
    %v884 = vld [vmem:[#allocation2 + $0x40] sm:$0xff]
    %v885 = vld [vmem:[#allocation2 + $0x48] sm:$0xff]
    %v886 = vld [vmem:[#allocation2 + $0x50] sm:$0xff]
    %v887 = vld [vmem:[#allocation2 + $0x58] sm:$0xff]
    %v888 = vld [vmem:[#allocation2 + $0x60] sm:$0xff]
    %v889 = vld [vmem:[#allocation2 + $0x68] sm:$0xff]
    %v890 = vld [vmem:[#allocation2 + $0x70] sm:$0xff]
    %v891 = vld [vmem:[#allocation2 + $0x78] sm:$0xff]
    %v892 = vld [vmem:[#allocation2 + $0x80] sm:$0xff]
    %v893 = vld [vmem:[#allocation2 + $0x88] sm:$0xff]
    %v894 = vld [vmem:[#allocation2 + $0x90] sm:$0xff]
    %v895 = vld [vmem:[#allocation2 + $0x98] sm:$0xff]
    %v896 = vld [vmem:[#allocation2 + $0xa0] sm:$0xff]
    %v897 = vld [vmem:[#allocation2 + $0xa8] sm:$0xff]
    %v898 = vld [vmem:[#allocation2 + $0xb0] sm:$0xff]
    %v899 = vld [vmem:[#allocation2 + $0xb8] sm:$0xff]
    %v900 = vld [vmem:[#allocation2 + $0xc0] sm:$0xff]
    %v901 = vld [vmem:[#allocation2 + $0xc8] sm:$0xff]
    %v902 = vld [vmem:[#allocation2 + $0xd0] sm:$0xff]
    %v903 = vld [vmem:[#allocation2 + $0xd8] sm:$0xff]
    %v904 = vld [vmem:[#allocation2 + $0xe0] sm:$0xff]
    %v905 = vld [vmem:[#allocation2 + $0xe8] sm:$0xff]
    %v906 = vld [vmem:[#allocation2 + $0xf0] sm:$0xff]
    %v907 = vld [vmem:[#allocation2 + $0xf8] sm:$0xff]
    %v908 = vld [vmem:[#allocation2 + $0x100] sm:$0xff]
    %v909 = vld [vmem:[#allocation2 + $0x108] sm:$0xff]
    %v910 = vld [vmem:[#allocation2 + $0x110] sm:$0xff]
    %v911 = vld [vmem:[#allocation2 + $0x118] sm:$0xff]
    %v912 = vld [vmem:[#allocation2 + $0x120] sm:$0xff]
    %v913 = vld [vmem:[#allocation2 + $0x128] sm:$0xff]
    %v914 = vld [vmem:[#allocation2 + $0x130] sm:$0xff]
    %v915 = vld [vmem:[#allocation2 + $0x138] sm:$0xff]
    %v916 = vld [vmem:[#allocation2 + $0x140] sm:$0xff]
    %v917 = vld [vmem:[#allocation2 + $0x148] sm:$0xff]
    %v918 = vld [vmem:[#allocation2 + $0x150] sm:$0xff]
    %v919 = vld [vmem:[#allocation2 + $0x158] sm:$0xff]
    %v920 = vld [vmem:[#allocation2 + $0x160] sm:$0xff]
    %v921 = vld [vmem:[#allocation2 + $0x168] sm:$0xff]
    %v922 = vld [vmem:[#allocation2 + $0x170] sm:$0xff]
    %v923 = vld [vmem:[#allocation2 + $0x178] sm:$0xff]
    %v924 = vld [vmem:[#allocation2 + $0x180] sm:$0xff]
    %v925 = vld [vmem:[#allocation2 + $0x188] sm:$0xff]
    %v926 = vld [vmem:[#allocation2 + $0x190] sm:$0xff]
    %v927 = vld [vmem:[#allocation2 + $0x198] sm:$0xff]
    %v928 = vld [vmem:[#allocation2 + $0x1a0] sm:$0xff]
    %v929 = vld [vmem:[#allocation2 + $0x1a8] sm:$0xff]
    %v930 = vld [vmem:[#allocation2 + $0x1b0] sm:$0xff]
    %v931 = vld [vmem:[#allocation2 + $0x1b8] sm:$0xff]
    %v932 = vld [vmem:[#allocation2 + $0x1c0] sm:$0xff]
    %v933 = vld [vmem:[#allocation2 + $0x1c8] sm:$0xff]
    %v934 = vld [vmem:[#allocation2 + $0x1d0] sm:$0xff]
    %v935 = vld [vmem:[#allocation2 + $0x1d8] sm:$0xff]
    %v936 = vld [vmem:[#allocation2 + $0x1e0] sm:$0xff]
    %v937 = vld [vmem:[#allocation2 + $0x1e8] sm:$0xff]
    %v938 = vld [vmem:[#allocation2 + $0x1f0] sm:$0xff]
    %v939 = vld [vmem:[#allocation2 + $0x1f8] sm:$0xff]
    %v940 = vld [vmem:[%s7] sm:$0xf]
    %v942 = vlaneseq
    %v943 = vshrl.u32 %v942, 7
    %v944 = vsub.s32 0, %v943
    %v945 = vrot.slane %v940, %v944
    %v946 = vlaneseq
    %v947 = vshrl.u32 %v946, 7
    %v948 = vsub.s32 1, %v947
    %v949 = vrot.slane %v940, %v948
    %v950 = vlaneseq
    %v951 = vshrl.u32 %v950, 7
    %v952 = vsub.s32 2, %v951
    %v953 = vrot.slane %v940, %v952
    %v954 = vlaneseq
    %v955 = vshrl.u32 %v954, 7
    %v956 = vsub.s32 3, %v955
    %v957 = vrot.slane %v940, %v956
    %v966 = vunpack.c.l.b16 %v872
    %v967 = vunpack.c.l.b16 %v873
    %v968 = vunpack.c.l.b16 %v874
    %v969 = vunpack.c.l.b16 %v875
    %vm970 = vcmask 1041409
    %v971 = vsel %vm970, %v968, %v966
    %v972 = vsel %vm970, %v969, %v967
    %v973 = vpack.c.b16 %v971, %v971
    %v974 = vpack.c.b16 %v972, %v972
    %v1041 = vunpack.c.l.b16 %v876
    %v1042 = vunpack.c.h.b16 %v876
    %v1043 = vunpack.c.l.b16 %v877
    %v1044 = vunpack.c.h.b16 %v877
    %v1045 = vunpack.c.l.b16 %v878
    %v1046 = vunpack.c.h.b16 %v878
    %v1047 = vunpack.c.l.b16 %v879
    %v1048 = vunpack.c.h.b16 %v879
    %v1049 = vunpack.c.l.b16 %v880
    %v1050 = vunpack.c.h.b16 %v880
    %v1051 = vunpack.c.l.b16 %v881
    %v1052 = vunpack.c.h.b16 %v881
    %v1053 = vunpack.c.l.b16 %v882
    %v1054 = vunpack.c.h.b16 %v882
    %v1055 = vunpack.c.l.b16 %v883
    %v1056 = vunpack.c.h.b16 %v883
    %v1057 = vunpack.c.l.b16 %v884
    %v1058 = vunpack.c.h.b16 %v884
    %v1059 = vunpack.c.l.b16 %v885
    %v1060 = vunpack.c.h.b16 %v885
    %v1061 = vunpack.c.l.b16 %v886
    %v1062 = vunpack.c.h.b16 %v886
    %v1063 = vunpack.c.l.b16 %v887
    %v1064 = vunpack.c.h.b16 %v887
    %v1065 = vunpack.c.l.b16 %v888
    %v1066 = vunpack.c.h.b16 %v888
    %v1067 = vunpack.c.l.b16 %v889
    %v1068 = vunpack.c.h.b16 %v889
    %v1069 = vunpack.c.l.b16 %v890
    %v1070 = vunpack.c.h.b16 %v890
    %v1071 = vunpack.c.l.b16 %v891
    %v1072 = vunpack.c.h.b16 %v891
    %v1073 = vunpack.c.l.b16 %v892
    %v1074 = vunpack.c.h.b16 %v892
    %v1075 = vunpack.c.l.b16 %v893
    %v1076 = vunpack.c.h.b16 %v893
    %v1077 = vunpack.c.l.b16 %v894
    %v1078 = vunpack.c.h.b16 %v894
    %v1079 = vunpack.c.l.b16 %v895
    %v1080 = vunpack.c.h.b16 %v895
    %v1081 = vunpack.c.l.b16 %v896
    %v1082 = vunpack.c.h.b16 %v896
    %v1083 = vunpack.c.l.b16 %v897
    %v1084 = vunpack.c.h.b16 %v897
    %v1085 = vunpack.c.l.b16 %v898
    %v1086 = vunpack.c.h.b16 %v898
    %v1087 = vunpack.c.l.b16 %v899
    %v1088 = vunpack.c.h.b16 %v899
    %v1089 = vunpack.c.l.b16 %v900
    %v1090 = vunpack.c.h.b16 %v900
    %v1091 = vunpack.c.l.b16 %v901
    %v1092 = vunpack.c.h.b16 %v901
    %v1093 = vunpack.c.l.b16 %v902
    %v1094 = vunpack.c.h.b16 %v902
    %v1095 = vunpack.c.l.b16 %v903
    %v1096 = vunpack.c.h.b16 %v903
    %v1097 = vunpack.c.l.b16 %v904
    %v1098 = vunpack.c.h.b16 %v904
    %v1099 = vunpack.c.l.b16 %v905
    %v1100 = vunpack.c.h.b16 %v905
    %v1101 = vunpack.c.l.b16 %v906
    %v1102 = vunpack.c.h.b16 %v906
    %v1103 = vunpack.c.l.b16 %v907
    %v1104 = vunpack.c.h.b16 %v907
    %v1105 = vunpack.c.l.b16 %v908
    %v1106 = vunpack.c.h.b16 %v908
    %v1107 = vunpack.c.l.b16 %v909
    %v1108 = vunpack.c.h.b16 %v909
    %v1109 = vunpack.c.l.b16 %v910
    %v1110 = vunpack.c.h.b16 %v910
    %v1111 = vunpack.c.l.b16 %v911
    %v1112 = vunpack.c.h.b16 %v911
    %v1113 = vunpack.c.l.b16 %v912
    %v1114 = vunpack.c.h.b16 %v912
    %v1115 = vunpack.c.l.b16 %v913
    %v1116 = vunpack.c.h.b16 %v913
    %v1117 = vunpack.c.l.b16 %v914
    %v1118 = vunpack.c.h.b16 %v914
    %v1119 = vunpack.c.l.b16 %v915
    %v1120 = vunpack.c.h.b16 %v915
    %v1121 = vunpack.c.l.b16 %v916
    %v1122 = vunpack.c.h.b16 %v916
    %v1123 = vunpack.c.l.b16 %v917
    %v1124 = vunpack.c.h.b16 %v917
    %v1125 = vunpack.c.l.b16 %v918
    %v1126 = vunpack.c.h.b16 %v918
    %v1127 = vunpack.c.l.b16 %v919
    %v1128 = vunpack.c.h.b16 %v919
    %v1129 = vunpack.c.l.b16 %v920
    %v1130 = vunpack.c.h.b16 %v920
    %v1131 = vunpack.c.l.b16 %v921
    %v1132 = vunpack.c.h.b16 %v921
    %v1133 = vunpack.c.l.b16 %v922
    %v1134 = vunpack.c.h.b16 %v922
    %v1135 = vunpack.c.l.b16 %v923
    %v1136 = vunpack.c.h.b16 %v923
    %v1137 = vunpack.c.l.b16 %v924
    %v1138 = vunpack.c.h.b16 %v924
    %v1139 = vunpack.c.l.b16 %v925
    %v1140 = vunpack.c.h.b16 %v925
    %v1141 = vunpack.c.l.b16 %v926
    %v1142 = vunpack.c.h.b16 %v926
    %v1143 = vunpack.c.l.b16 %v927
    %v1144 = vunpack.c.h.b16 %v927
    %v1145 = vunpack.c.l.b16 %v928
    %v1146 = vunpack.c.h.b16 %v928
    %v1147 = vunpack.c.l.b16 %v929
    %v1148 = vunpack.c.h.b16 %v929
    %v1149 = vunpack.c.l.b16 %v930
    %v1150 = vunpack.c.h.b16 %v930
    %v1151 = vunpack.c.l.b16 %v931
    %v1152 = vunpack.c.h.b16 %v931
    %v1153 = vunpack.c.l.b16 %v932
    %v1154 = vunpack.c.h.b16 %v932
    %v1155 = vunpack.c.l.b16 %v933
    %v1156 = vunpack.c.h.b16 %v933
    %v1157 = vunpack.c.l.b16 %v934
    %v1158 = vunpack.c.h.b16 %v934
    %v1159 = vunpack.c.l.b16 %v935
    %v1160 = vunpack.c.h.b16 %v935
    %v1161 = vunpack.c.l.b16 %v936
    %v1162 = vunpack.c.h.b16 %v936
    %v1163 = vunpack.c.l.b16 %v937
    %v1164 = vunpack.c.h.b16 %v937
    %v1165 = vunpack.c.l.b16 %v938
    %v1166 = vunpack.c.h.b16 %v938
    %v1167 = vunpack.c.l.b16 %v939
    %v1168 = vunpack.c.h.b16 %v939
    %v1169 = vpack.c.b16 %v1045, %v1041
    %v1170 = vpack.c.b16 %v1046, %v1042
    %v1171 = vpack.c.b16 %v1047, %v1043
    %v1172 = vpack.c.b16 %v1048, %v1044
    %v1173 = vpack.c.b16 %v1053, %v1049
    %v1174 = vpack.c.b16 %v1054, %v1050
    %v1175 = vpack.c.b16 %v1055, %v1051
    %v1176 = vpack.c.b16 %v1056, %v1052
    %v1177 = vpack.c.b16 %v1061, %v1057
    %v1178 = vpack.c.b16 %v1062, %v1058
    %v1179 = vpack.c.b16 %v1063, %v1059
    %v1180 = vpack.c.b16 %v1064, %v1060
    %v1181 = vpack.c.b16 %v1069, %v1065
    %v1182 = vpack.c.b16 %v1070, %v1066
    %v1183 = vpack.c.b16 %v1071, %v1067
    %v1184 = vpack.c.b16 %v1072, %v1068
    %v1185 = vpack.c.b16 %v1077, %v1073
    %v1186 = vpack.c.b16 %v1078, %v1074
    %v1187 = vpack.c.b16 %v1079, %v1075
    %v1188 = vpack.c.b16 %v1080, %v1076
    %v1189 = vpack.c.b16 %v1085, %v1081
    %v1190 = vpack.c.b16 %v1086, %v1082
    %v1191 = vpack.c.b16 %v1087, %v1083
    %v1192 = vpack.c.b16 %v1088, %v1084
    %v1193 = vpack.c.b16 %v1093, %v1089
    %v1194 = vpack.c.b16 %v1094, %v1090
    %v1195 = vpack.c.b16 %v1095, %v1091
    %v1196 = vpack.c.b16 %v1096, %v1092
    %v1197 = vpack.c.b16 %v1101, %v1097
    %v1198 = vpack.c.b16 %v1102, %v1098
    %v1199 = vpack.c.b16 %v1103, %v1099
    %v1200 = vpack.c.b16 %v1104, %v1100
    %v1201 = vpack.c.b16 %v1109, %v1105
    %v1202 = vpack.c.b16 %v1110, %v1106
    %v1203 = vpack.c.b16 %v1111, %v1107
    %v1204 = vpack.c.b16 %v1112, %v1108
    %v1205 = vpack.c.b16 %v1117, %v1113
    %v1206 = vpack.c.b16 %v1118, %v1114
    %v1207 = vpack.c.b16 %v1119, %v1115
    %v1208 = vpack.c.b16 %v1120, %v1116
    %v1209 = vpack.c.b16 %v1125, %v1121
    %v1210 = vpack.c.b16 %v1126, %v1122
    %v1211 = vpack.c.b16 %v1127, %v1123
    %v1212 = vpack.c.b16 %v1128, %v1124
    %v1213 = vpack.c.b16 %v1133, %v1129
    %v1214 = vpack.c.b16 %v1134, %v1130
    %v1215 = vpack.c.b16 %v1135, %v1131
    %v1216 = vpack.c.b16 %v1136, %v1132
    %v1217 = vpack.c.b16 %v1141, %v1137
    %v1218 = vpack.c.b16 %v1142, %v1138
    %v1219 = vpack.c.b16 %v1143, %v1139
    %v1220 = vpack.c.b16 %v1144, %v1140
    %v1221 = vpack.c.b16 %v1149, %v1145
    %v1222 = vpack.c.b16 %v1150, %v1146
    %v1223 = vpack.c.b16 %v1151, %v1147
    %v1224 = vpack.c.b16 %v1152, %v1148
    %v1225 = vpack.c.b16 %v1157, %v1153
    %v1226 = vpack.c.b16 %v1158, %v1154
    %v1227 = vpack.c.b16 %v1159, %v1155
    %v1228 = vpack.c.b16 %v1160, %v1156
    %v1229 = vpack.c.b16 %v1165, %v1161
    %v1230 = vpack.c.b16 %v1166, %v1162
    %v1231 = vpack.c.b16 %v1167, %v1163
    %v1232 = vpack.c.b16 %v1168, %v1164
    %1297 = vmatprep.subr.bf16.mxu0 %v1170
    %1298 = vmatpush1.bf16.msra.mxu0 %v1169
    %1299 = vmatprep.subr.bf16.mxu0 %v1174
    %1300 = vmatpush1.bf16.msra.mxu0 %v1173
    %1301 = vmatprep.subr.bf16.mxu0 %v1178
    %1302 = vmatpush1.bf16.msra.mxu0 %v1177
    %1303 = vmatprep.subr.bf16.mxu0 %v1182
    %1304 = vmatpush1.bf16.msra.mxu0 %v1181
    %1305 = vmatprep.subr.bf16.mxu0 %v1186
    %1306 = vmatpush1.bf16.msra.mxu0 %v1185
    %1307 = vmatprep.subr.bf16.mxu0 %v1190
    %1308 = vmatpush1.bf16.msra.mxu0 %v1189
    %1309 = vmatprep.subr.bf16.mxu0 %v1194
    %1310 = vmatpush1.bf16.msra.mxu0 %v1193
    %1311 = vmatprep.subr.bf16.mxu0 %v1198
    %1312 = vmatpush1.bf16.msra.mxu0 %v1197
    %1313 = vmatprep.subr.bf16.mxu0 %v1202
    %1314 = vmatpush1.bf16.msra.mxu0 %v1201
    %1315 = vmatprep.subr.bf16.mxu0 %v1206
    %1316 = vmatpush1.bf16.msra.mxu0 %v1205
    %1317 = vmatprep.subr.bf16.mxu0 %v1210
    %1318 = vmatpush1.bf16.msra.mxu0 %v1209
    %1319 = vmatprep.subr.bf16.mxu0 %v1214
    %1320 = vmatpush1.bf16.msra.mxu0 %v1213
    %1321 = vmatprep.subr.bf16.mxu0 %v1218
    %1322 = vmatpush1.bf16.msra.mxu0 %v1217
    %1323 = vmatprep.subr.bf16.mxu0 %v1222
    %1324 = vmatpush1.bf16.msra.mxu0 %v1221
    %1325 = vmatprep.subr.bf16.mxu0 %v1226
    %1326 = vmatpush1.bf16.msra.mxu0 %v1225
    %1327 = vmatprep.subr.bf16.mxu0 %v1230
    %1328 = vmatpush1.bf16.msra.mxu0 %v1229
    %1329 = vmatprep.mubr.bf16.mxu0 %v974
    %1330 = vmatmul.mubr.bf16.gmra.mrb[0].mxu0 %v973
    %v1331 = vpop.f32.mrb[0].mxu0
    %v1332 = vadd.f32 %v945, %v1331
    %v1333 = vpop.f32.mrb[0].mxu0
    %v1334 = vadd.f32 %v949, %v1333
    %v1335 = vpop.f32.mrb[0].mxu0
    %v1336 = vpop.f32.mrb[0].mxu0
    %1337 = vdwg.mxu0
    %1338 = vmatprep.subr.bf16.mxu0 %v1172
    %1339 = vmatpush1.bf16.msra.mxu0 %v1171
    %1340 = vmatprep.subr.bf16.mxu0 %v1176
    %1341 = vmatpush1.bf16.msra.mxu0 %v1175
    %1342 = vmatprep.subr.bf16.mxu0 %v1180
    %1343 = vmatpush1.bf16.msra.mxu0 %v1179
    %1344 = vmatprep.subr.bf16.mxu0 %v1184
    %1345 = vmatpush1.bf16.msra.mxu0 %v1183
    %1346 = vmatprep.subr.bf16.mxu0 %v1188
    %1347 = vmatpush1.bf16.msra.mxu0 %v1187
    %1348 = vmatprep.subr.bf16.mxu0 %v1192
    %1349 = vmatpush1.bf16.msra.mxu0 %v1191
    %1350 = vmatprep.subr.bf16.mxu0 %v1196
    %1351 = vmatpush1.bf16.msra.mxu0 %v1195
    %1352 = vmatprep.subr.bf16.mxu0 %v1200
    %1353 = vmatpush1.bf16.msra.mxu0 %v1199
    %1354 = vmatprep.subr.bf16.mxu0 %v1204
    %1355 = vmatpush1.bf16.msra.mxu0 %v1203
    %1356 = vmatprep.subr.bf16.mxu0 %v1208
    %1357 = vmatpush1.bf16.msra.mxu0 %v1207
    %1358 = vmatprep.subr.bf16.mxu0 %v1212
    %1359 = vmatpush1.bf16.msra.mxu0 %v1211
    %1360 = vmatprep.subr.bf16.mxu0 %v1216
    %1361 = vmatpush1.bf16.msra.mxu0 %v1215
    %1362 = vmatprep.subr.bf16.mxu0 %v1220
    %1363 = vmatpush1.bf16.msra.mxu0 %v1219
    %1364 = vmatprep.subr.bf16.mxu0 %v1224
    %1365 = vmatpush1.bf16.msra.mxu0 %v1223
    %1366 = vmatprep.subr.bf16.mxu0 %v1228
    %1367 = vmatpush1.bf16.msra.mxu0 %v1227
    %1368 = vmatprep.subr.bf16.mxu0 %v1232
    %1369 = vmatpush1.bf16.msra.mxu0 %v1231
    %1370 = vmatprep.mubr.bf16.mxu0 %v974
    %1371 = vmatmul.mubr.bf16.gmra.mrb[0].mxu0 %v973
    %v1372 = vpop.f32.mrb[0].mxu0
    %v1373 = vadd.f32 %v953, %v1372
    %v1374 = vpop.f32.mrb[0].mxu0
    %v1375 = vadd.f32 %v957, %v1374
    %v1376 = vpop.f32.mrb[0].mxu0
    %v1377 = vpop.f32.mrb[0].mxu0
    %1378 = vdwg.mxu0
    %v1379 = vpack.c.bf16 %v634, %v630
    %v1380 = vpack.c.bf16 %v636, %v632
    %v1381 = vpack.c.bf16 %v644, %v640
    %v1382 = vpack.c.bf16 %v646, %v642
    %v1383 = vpack.c.bf16 %v654, %v650
    %v1384 = vpack.c.bf16 %v656, %v652
    %v1385 = vpack.c.bf16 %v664, %v660
    %v1386 = vpack.c.bf16 %v666, %v662
    %v1387 = vpack.c.bf16 %v674, %v670
    %v1388 = vpack.c.bf16 %v676, %v672
    %v1389 = vpack.c.bf16 %v684, %v680
    %v1390 = vpack.c.bf16 %v686, %v682
    %v1391 = vpack.c.bf16 %v694, %v690
    %v1392 = vpack.c.bf16 %v696, %v692
    %v1393 = vpack.c.bf16 %v704, %v700
    %v1394 = vpack.c.bf16 %v706, %v702
    %v1395 = vpack.c.bf16 %v714, %v710
    %v1396 = vpack.c.bf16 %v716, %v712
    %v1397 = vpack.c.bf16 %v724, %v720
    %v1398 = vpack.c.bf16 %v726, %v722
    %v1399 = vpack.c.bf16 %v734, %v730
    %v1400 = vpack.c.bf16 %v736, %v732
    %v1401 = vpack.c.bf16 %v744, %v740
    %v1402 = vpack.c.bf16 %v746, %v742
    %v1403 = vpack.c.bf16 %v754, %v750
    %v1404 = vpack.c.bf16 %v756, %v752
    %v1405 = vpack.c.bf16 %v764, %v760
    %v1406 = vpack.c.bf16 %v766, %v762
    %v1407 = vpack.c.bf16 %v774, %v770
    %v1408 = vpack.c.bf16 %v776, %v772
    %v1409 = vpack.c.bf16 %v784, %v780
    %v1410 = vpack.c.bf16 %v786, %v782
    %v1411 = vld [vmem:[#allocation5] sm:$0xff]
    %v1412 = vld [vmem:[#allocation5 + $0x8] sm:$0xff]
    %v1413 = vld [vmem:[#allocation5 + $0x10] sm:$0xff]
    %v1414 = vld [vmem:[#allocation5 + $0x18] sm:$0xff]
    %v1415 = vld [vmem:[#allocation5 + $0x20] sm:$0xff]
    %v1416 = vld [vmem:[#allocation5 + $0x28] sm:$0xff]
    %v1417 = vld [vmem:[#allocation5 + $0x30] sm:$0xff]
    %v1418 = vld [vmem:[#allocation5 + $0x38] sm:$0xff]
    %v1419 = vld [vmem:[#allocation5 + $0x40] sm:$0xff]
    %v1420 = vld [vmem:[#allocation5 + $0x48] sm:$0xff]
    %v1421 = vld [vmem:[#allocation5 + $0x50] sm:$0xff]
    %v1422 = vld [vmem:[#allocation5 + $0x58] sm:$0xff]
    %v1423 = vld [vmem:[#allocation5 + $0x60] sm:$0xff]
    %v1424 = vld [vmem:[#allocation5 + $0x68] sm:$0xff]
    %v1425 = vld [vmem:[#allocation5 + $0x70] sm:$0xff]
    %v1426 = vld [vmem:[#allocation5 + $0x78] sm:$0xff]
    %v1427 = vld [vmem:[#allocation5 + $0x80] sm:$0xff]
    %v1428 = vld [vmem:[#allocation5 + $0x88] sm:$0xff]
    %v1429 = vld [vmem:[#allocation5 + $0x90] sm:$0xff]
    %v1430 = vld [vmem:[#allocation5 + $0x98] sm:$0xff]
    %v1431 = vld [vmem:[#allocation5 + $0xa0] sm:$0xff]
    %v1432 = vld [vmem:[#allocation5 + $0xa8] sm:$0xff]
    %v1433 = vld [vmem:[#allocation5 + $0xb0] sm:$0xff]
    %v1434 = vld [vmem:[#allocation5 + $0xb8] sm:$0xff]
    %v1435 = vld [vmem:[#allocation5 + $0xc0] sm:$0xff]
    %v1436 = vld [vmem:[#allocation5 + $0xc8] sm:$0xff]
    %v1437 = vld [vmem:[#allocation5 + $0xd0] sm:$0xff]
    %v1438 = vld [vmem:[#allocation5 + $0xd8] sm:$0xff]
    %v1439 = vld [vmem:[#allocation5 + $0xe0] sm:$0xff]
    %v1440 = vld [vmem:[#allocation5 + $0xe8] sm:$0xff]
    %v1441 = vld [vmem:[#allocation5 + $0xf0] sm:$0xff]
    %v1442 = vld [vmem:[#allocation5 + $0xf8] sm:$0xff]
    %v1443 = vld [vmem:[#allocation5 + $0x100] sm:$0xff]
    %v1444 = vld [vmem:[#allocation5 + $0x108] sm:$0xff]
    %v1445 = vld [vmem:[#allocation5 + $0x110] sm:$0xff]
    %v1446 = vld [vmem:[#allocation5 + $0x118] sm:$0xff]
    %v1447 = vld [vmem:[#allocation5 + $0x120] sm:$0xff]
    %v1448 = vld [vmem:[#allocation5 + $0x128] sm:$0xff]
    %v1449 = vld [vmem:[#allocation5 + $0x130] sm:$0xff]
    %v1450 = vld [vmem:[#allocation5 + $0x138] sm:$0xff]
    %v1451 = vld [vmem:[#allocation5 + $0x140] sm:$0xff]
    %v1452 = vld [vmem:[#allocation5 + $0x148] sm:$0xff]
    %v1453 = vld [vmem:[#allocation5 + $0x150] sm:$0xff]
    %v1454 = vld [vmem:[#allocation5 + $0x158] sm:$0xff]
    %v1455 = vld [vmem:[#allocation5 + $0x160] sm:$0xff]
    %v1456 = vld [vmem:[#allocation5 + $0x168] sm:$0xff]
    %v1457 = vld [vmem:[#allocation5 + $0x170] sm:$0xff]
    %v1458 = vld [vmem:[#allocation5 + $0x178] sm:$0xff]
    %v1459 = vld [vmem:[#allocation5 + $0x180] sm:$0xff]
    %v1460 = vld [vmem:[#allocation5 + $0x188] sm:$0xff]
    %v1461 = vld [vmem:[#allocation5 + $0x190] sm:$0xff]
    %v1462 = vld [vmem:[#allocation5 + $0x198] sm:$0xff]
    %v1463 = vld [vmem:[#allocation5 + $0x1a0] sm:$0xff]
    %v1464 = vld [vmem:[#allocation5 + $0x1a8] sm:$0xff]
    %v1465 = vld [vmem:[#allocation5 + $0x1b0] sm:$0xff]
    %v1466 = vld [vmem:[#allocation5 + $0x1b8] sm:$0xff]
    %v1467 = vld [vmem:[#allocation5 + $0x1c0] sm:$0xff]
    %v1468 = vld [vmem:[#allocation5 + $0x1c8] sm:$0xff]
    %v1469 = vld [vmem:[#allocation5 + $0x1d0] sm:$0xff]
    %v1470 = vld [vmem:[#allocation5 + $0x1d8] sm:$0xff]
    %v1471 = vld [vmem:[#allocation5 + $0x1e0] sm:$0xff]
    %v1472 = vld [vmem:[#allocation5 + $0x1e8] sm:$0xff]
    %v1473 = vld [vmem:[#allocation5 + $0x1f0] sm:$0xff]
    %v1474 = vld [vmem:[#allocation5 + $0x1f8] sm:$0xff]
    %v1539 = vunpack.c.l.b16 %v1411
    %v1540 = vunpack.c.h.b16 %v1411
    %v1541 = vunpack.c.l.b16 %v1412
    %v1542 = vunpack.c.h.b16 %v1412
    %v1543 = vunpack.c.l.b16 %v1413
    %v1544 = vunpack.c.h.b16 %v1413
    %v1545 = vunpack.c.l.b16 %v1414
    %v1546 = vunpack.c.h.b16 %v1414
    %v1547 = vunpack.c.l.b16 %v1415
    %v1548 = vunpack.c.h.b16 %v1415
    %v1549 = vunpack.c.l.b16 %v1416
    %v1550 = vunpack.c.h.b16 %v1416
    %v1551 = vunpack.c.l.b16 %v1417
    %v1552 = vunpack.c.h.b16 %v1417
    %v1553 = vunpack.c.l.b16 %v1418
    %v1554 = vunpack.c.h.b16 %v1418
    %v1555 = vunpack.c.l.b16 %v1419
    %v1556 = vunpack.c.h.b16 %v1419
    %v1557 = vunpack.c.l.b16 %v1420
    %v1558 = vunpack.c.h.b16 %v1420
    %v1559 = vunpack.c.l.b16 %v1421
    %v1560 = vunpack.c.h.b16 %v1421
    %v1561 = vunpack.c.l.b16 %v1422
    %v1562 = vunpack.c.h.b16 %v1422
    %v1563 = vunpack.c.l.b16 %v1423
    %v1564 = vunpack.c.h.b16 %v1423
    %v1565 = vunpack.c.l.b16 %v1424
    %v1566 = vunpack.c.h.b16 %v1424
    %v1567 = vunpack.c.l.b16 %v1425
    %v1568 = vunpack.c.h.b16 %v1425
    %v1569 = vunpack.c.l.b16 %v1426
    %v1570 = vunpack.c.h.b16 %v1426
    %v1571 = vunpack.c.l.b16 %v1427
    %v1572 = vunpack.c.h.b16 %v1427
    %v1573 = vunpack.c.l.b16 %v1428
    %v1574 = vunpack.c.h.b16 %v1428
    %v1575 = vunpack.c.l.b16 %v1429
    %v1576 = vunpack.c.h.b16 %v1429
    %v1577 = vunpack.c.l.b16 %v1430
    %v1578 = vunpack.c.h.b16 %v1430
    %v1579 = vunpack.c.l.b16 %v1431
    %v1580 = vunpack.c.h.b16 %v1431
    %v1581 = vunpack.c.l.b16 %v1432
    %v1582 = vunpack.c.h.b16 %v1432
    %v1583 = vunpack.c.l.b16 %v1433
    %v1584 = vunpack.c.h.b16 %v1433
    %v1585 = vunpack.c.l.b16 %v1434
    %v1586 = vunpack.c.h.b16 %v1434
    %v1587 = vunpack.c.l.b16 %v1435
    %v1588 = vunpack.c.h.b16 %v1435
    %v1589 = vunpack.c.l.b16 %v1436
    %v1590 = vunpack.c.h.b16 %v1436
    %v1591 = vunpack.c.l.b16 %v1437
    %v1592 = vunpack.c.h.b16 %v1437
    %v1593 = vunpack.c.l.b16 %v1438
    %v1594 = vunpack.c.h.b16 %v1438
    %v1595 = vunpack.c.l.b16 %v1439
    %v1596 = vunpack.c.h.b16 %v1439
    %v1597 = vunpack.c.l.b16 %v1440
    %v1598 = vunpack.c.h.b16 %v1440
    %v1599 = vunpack.c.l.b16 %v1441
    %v1600 = vunpack.c.h.b16 %v1441
    %v1601 = vunpack.c.l.b16 %v1442
    %v1602 = vunpack.c.h.b16 %v1442
    %v1603 = vunpack.c.l.b16 %v1443
    %v1604 = vunpack.c.h.b16 %v1443
    %v1605 = vunpack.c.l.b16 %v1444
    %v1606 = vunpack.c.h.b16 %v1444
    %v1607 = vunpack.c.l.b16 %v1445
    %v1608 = vunpack.c.h.b16 %v1445
    %v1609 = vunpack.c.l.b16 %v1446
    %v1610 = vunpack.c.h.b16 %v1446
    %v1611 = vunpack.c.l.b16 %v1447
    %v1612 = vunpack.c.h.b16 %v1447
    %v1613 = vunpack.c.l.b16 %v1448
    %v1614 = vunpack.c.h.b16 %v1448
    %v1615 = vunpack.c.l.b16 %v1449
    %v1616 = vunpack.c.h.b16 %v1449
    %v1617 = vunpack.c.l.b16 %v1450
    %v1618 = vunpack.c.h.b16 %v1450
    %v1619 = vunpack.c.l.b16 %v1451
    %v1620 = vunpack.c.h.b16 %v1451
    %v1621 = vunpack.c.l.b16 %v1452
    %v1622 = vunpack.c.h.b16 %v1452
    %v1623 = vunpack.c.l.b16 %v1453
    %v1624 = vunpack.c.h.b16 %v1453
    %v1625 = vunpack.c.l.b16 %v1454
    %v1626 = vunpack.c.h.b16 %v1454
    %v1627 = vunpack.c.l.b16 %v1455
    %v1628 = vunpack.c.h.b16 %v1455
    %v1629 = vunpack.c.l.b16 %v1456
    %v1630 = vunpack.c.h.b16 %v1456
    %v1631 = vunpack.c.l.b16 %v1457
    %v1632 = vunpack.c.h.b16 %v1457
    %v1633 = vunpack.c.l.b16 %v1458
    %v1634 = vunpack.c.h.b16 %v1458
    %v1635 = vunpack.c.l.b16 %v1459
    %v1636 = vunpack.c.h.b16 %v1459
    %v1637 = vunpack.c.l.b16 %v1460
    %v1638 = vunpack.c.h.b16 %v1460
    %v1639 = vunpack.c.l.b16 %v1461
    %v1640 = vunpack.c.h.b16 %v1461
    %v1641 = vunpack.c.l.b16 %v1462
    %v1642 = vunpack.c.h.b16 %v1462
    %v1643 = vunpack.c.l.b16 %v1463
    %v1644 = vunpack.c.h.b16 %v1463
    %v1645 = vunpack.c.l.b16 %v1464
    %v1646 = vunpack.c.h.b16 %v1464
    %v1647 = vunpack.c.l.b16 %v1465
    %v1648 = vunpack.c.h.b16 %v1465
    %v1649 = vunpack.c.l.b16 %v1466
    %v1650 = vunpack.c.h.b16 %v1466
    %v1651 = vunpack.c.l.b16 %v1467
    %v1652 = vunpack.c.h.b16 %v1467
    %v1653 = vunpack.c.l.b16 %v1468
    %v1654 = vunpack.c.h.b16 %v1468
    %v1655 = vunpack.c.l.b16 %v1469
    %v1656 = vunpack.c.h.b16 %v1469
    %v1657 = vunpack.c.l.b16 %v1470
    %v1658 = vunpack.c.h.b16 %v1470
    %v1659 = vunpack.c.l.b16 %v1471
    %v1660 = vunpack.c.h.b16 %v1471
    %v1661 = vunpack.c.l.b16 %v1472
    %v1662 = vunpack.c.h.b16 %v1472
    %v1663 = vunpack.c.l.b16 %v1473
    %v1664 = vunpack.c.h.b16 %v1473
    %v1665 = vunpack.c.l.b16 %v1474
    %v1666 = vunpack.c.h.b16 %v1474
    %v1667 = vpack.c.b16 %v1543, %v1539
    %v1668 = vpack.c.b16 %v1544, %v1540
    %v1669 = vpack.c.b16 %v1545, %v1541
    %v1670 = vpack.c.b16 %v1546, %v1542
    %v1671 = vpack.c.b16 %v1551, %v1547
    %v1672 = vpack.c.b16 %v1552, %v1548
    %v1673 = vpack.c.b16 %v1553, %v1549
    %v1674 = vpack.c.b16 %v1554, %v1550
    %v1675 = vpack.c.b16 %v1559, %v1555
    %v1676 = vpack.c.b16 %v1560, %v1556
    %v1677 = vpack.c.b16 %v1561, %v1557
    %v1678 = vpack.c.b16 %v1562, %v1558
    %v1679 = vpack.c.b16 %v1567, %v1563
    %v1680 = vpack.c.b16 %v1568, %v1564
    %v1681 = vpack.c.b16 %v1569, %v1565
    %v1682 = vpack.c.b16 %v1570, %v1566
    %v1683 = vpack.c.b16 %v1575, %v1571
    %v1684 = vpack.c.b16 %v1576, %v1572
    %v1685 = vpack.c.b16 %v1577, %v1573
    %v1686 = vpack.c.b16 %v1578, %v1574
    %v1687 = vpack.c.b16 %v1583, %v1579
    %v1688 = vpack.c.b16 %v1584, %v1580
    %v1689 = vpack.c.b16 %v1585, %v1581
    %v1690 = vpack.c.b16 %v1586, %v1582
    %v1691 = vpack.c.b16 %v1591, %v1587
    %v1692 = vpack.c.b16 %v1592, %v1588
    %v1693 = vpack.c.b16 %v1593, %v1589
    %v1694 = vpack.c.b16 %v1594, %v1590
    %v1695 = vpack.c.b16 %v1599, %v1595
    %v1696 = vpack.c.b16 %v1600, %v1596
    %v1697 = vpack.c.b16 %v1601, %v1597
    %v1698 = vpack.c.b16 %v1602, %v1598
    %v1699 = vpack.c.b16 %v1607, %v1603
    %v1700 = vpack.c.b16 %v1608, %v1604
    %v1701 = vpack.c.b16 %v1609, %v1605
    %v1702 = vpack.c.b16 %v1610, %v1606
    %v1703 = vpack.c.b16 %v1615, %v1611
    %v1704 = vpack.c.b16 %v1616, %v1612
    %v1705 = vpack.c.b16 %v1617, %v1613
    %v1706 = vpack.c.b16 %v1618, %v1614
    %v1707 = vpack.c.b16 %v1623, %v1619
    %v1708 = vpack.c.b16 %v1624, %v1620
    %v1709 = vpack.c.b16 %v1625, %v1621
    %v1710 = vpack.c.b16 %v1626, %v1622
    %v1711 = vpack.c.b16 %v1631, %v1627
    %v1712 = vpack.c.b16 %v1632, %v1628
    %v1713 = vpack.c.b16 %v1633, %v1629
    %v1714 = vpack.c.b16 %v1634, %v1630
    %v1715 = vpack.c.b16 %v1639, %v1635
    %v1716 = vpack.c.b16 %v1640, %v1636
    %v1717 = vpack.c.b16 %v1641, %v1637
    %v1718 = vpack.c.b16 %v1642, %v1638
    %v1719 = vpack.c.b16 %v1647, %v1643
    %v1720 = vpack.c.b16 %v1648, %v1644
    %v1721 = vpack.c.b16 %v1649, %v1645
    %v1722 = vpack.c.b16 %v1650, %v1646
    %v1723 = vpack.c.b16 %v1655, %v1651
    %v1724 = vpack.c.b16 %v1656, %v1652
    %v1725 = vpack.c.b16 %v1657, %v1653
    %v1726 = vpack.c.b16 %v1658, %v1654
    %v1727 = vpack.c.b16 %v1663, %v1659
    %v1728 = vpack.c.b16 %v1664, %v1660
    %v1729 = vpack.c.b16 %v1665, %v1661
    %v1730 = vpack.c.b16 %v1666, %v1662
    %1795 = vmatprep.subr.bf16.mxu0 %v1668
    %1796 = vmatpush1.bf16.msra.mxu0 %v1667
    %1797 = vmatprep.subr.bf16.mxu0 %v1672
    %1798 = vmatpush1.bf16.msra.mxu0 %v1671
    %1799 = vmatprep.subr.bf16.mxu0 %v1676
    %1800 = vmatpush1.bf16.msra.mxu0 %v1675
    %1801 = vmatprep.subr.bf16.mxu0 %v1680
    %1802 = vmatpush1.bf16.msra.mxu0 %v1679
    %1803 = vmatprep.subr.bf16.mxu0 %v1684
    %1804 = vmatpush1.bf16.msra.mxu0 %v1683
    %1805 = vmatprep.subr.bf16.mxu0 %v1688
    %1806 = vmatpush1.bf16.msra.mxu0 %v1687
    %1807 = vmatprep.subr.bf16.mxu0 %v1692
    %1808 = vmatpush1.bf16.msra.mxu0 %v1691
    %1809 = vmatprep.subr.bf16.mxu0 %v1696
    %1810 = vmatpush1.bf16.msra.mxu0 %v1695
    %1811 = vmatprep.subr.bf16.mxu0 %v1700
    %1812 = vmatpush1.bf16.msra.mxu0 %v1699
    %1813 = vmatprep.subr.bf16.mxu0 %v1704
    %1814 = vmatpush1.bf16.msra.mxu0 %v1703
    %1815 = vmatprep.subr.bf16.mxu0 %v1708
    %1816 = vmatpush1.bf16.msra.mxu0 %v1707
    %1817 = vmatprep.subr.bf16.mxu0 %v1712
    %1818 = vmatpush1.bf16.msra.mxu0 %v1711
    %1819 = vmatprep.subr.bf16.mxu0 %v1716
    %1820 = vmatpush1.bf16.msra.mxu0 %v1715
    %1821 = vmatprep.subr.bf16.mxu0 %v1720
    %1822 = vmatpush1.bf16.msra.mxu0 %v1719
    %1823 = vmatprep.subr.bf16.mxu0 %v1724
    %1824 = vmatpush1.bf16.msra.mxu0 %v1723
    %1825 = vmatprep.subr.bf16.mxu0 %v1728
    %1826 = vmatpush1.bf16.msra.mxu0 %v1727
    %1827 = vmatprep.mubr.bf16.mxu0 %v1380
    %1828 = vmatmul.mubr.bf16.gmra.mrb[0].mxu0 %v1379
    %v1829 = vpop.f32.mrb[0].mxu0
    %v1830 = vadd.f32 0.0, %v1829
    %v1831 = vpop.f32.mrb[0].mxu0
    %v1832 = vadd.f32 0.0, %v1831
    %v1833 = vpop.f32.mrb[0].mxu0
    %v1834 = vadd.f32 0.0, %v1833
    %v1835 = vpop.f32.mrb[0].mxu0
    %v1836 = vadd.f32 0.0, %v1835
    %1837 = vmatprep.mubr.bf16.mxu0 %v1382
    %1838 = vmatmul.mubr.bf16.gmra.mrb[0].mxu0 %v1381
    %v1839 = vpop.f32.mrb[0].mxu0
    %v1840 = vadd.f32 0.0, %v1839
    %v1841 = vpop.f32.mrb[0].mxu0
    %v1842 = vadd.f32 0.0, %v1841
    %v1843 = vpop.f32.mrb[0].mxu0
    %v1844 = vadd.f32 0.0, %v1843
    %v1845 = vpop.f32.mrb[0].mxu0
    %v1846 = vadd.f32 0.0, %v1845
    %1847 = vmatprep.mubr.bf16.mxu0 %v1384
    %1848 = vmatmul.mubr.bf16.gmra.mrb[0].mxu0 %v1383
    %v1849 = vpop.f32.mrb[0].mxu0
    %v1850 = vadd.f32 0.0, %v1849
    %v1851 = vpop.f32.mrb[0].mxu0
    %v1852 = vadd.f32 0.0, %v1851
    %v1853 = vpop.f32.mrb[0].mxu0
    %v1854 = vadd.f32 0.0, %v1853
    %v1855 = vpop.f32.mrb[0].mxu0
    %v1856 = vadd.f32 0.0, %v1855
    %1857 = vmatprep.mubr.bf16.mxu0 %v1386
    %1858 = vmatmul.mubr.bf16.gmra.mrb[0].mxu0 %v1385
    %v1859 = vpop.f32.mrb[0].mxu0
    %v1860 = vadd.f32 0.0, %v1859
    %v1861 = vpop.f32.mrb[0].mxu0
    %v1862 = vadd.f32 0.0, %v1861
    %v1863 = vpop.f32.mrb[0].mxu0
    %v1864 = vadd.f32 0.0, %v1863
    %v1865 = vpop.f32.mrb[0].mxu0
    %v1866 = vadd.f32 0.0, %v1865
    %1867 = vmatprep.mubr.bf16.mxu0 %v1388
    %1868 = vmatmul.mubr.bf16.gmra.mrb[0].mxu0 %v1387
    %v1869 = vpop.f32.mrb[0].mxu0
    %v1870 = vadd.f32 0.0, %v1869
    %v1871 = vpop.f32.mrb[0].mxu0
    %v1872 = vadd.f32 0.0, %v1871
    %v1873 = vpop.f32.mrb[0].mxu0
    %v1874 = vadd.f32 0.0, %v1873
    %v1875 = vpop.f32.mrb[0].mxu0
    %v1876 = vadd.f32 0.0, %v1875
    %1877 = vmatprep.mubr.bf16.mxu0 %v1390
    %1878 = vmatmul.mubr.bf16.gmra.mrb[0].mxu0 %v1389
    %v1879 = vpop.f32.mrb[0].mxu0
    %v1880 = vadd.f32 0.0, %v1879
    %v1881 = vpop.f32.mrb[0].mxu0
    %v1882 = vadd.f32 0.0, %v1881
    %v1883 = vpop.f32.mrb[0].mxu0
    %v1884 = vadd.f32 0.0, %v1883
    %v1885 = vpop.f32.mrb[0].mxu0
    %v1886 = vadd.f32 0.0, %v1885
    %1887 = vmatprep.mubr.bf16.mxu0 %v1392
    %1888 = vmatmul.mubr.bf16.gmra.mrb[0].mxu0 %v1391
    %v1889 = vpop.f32.mrb[0].mxu0
    %v1890 = vadd.f32 0.0, %v1889
    %v1891 = vpop.f32.mrb[0].mxu0
    %v1892 = vadd.f32 0.0, %v1891
    %v1893 = vpop.f32.mrb[0].mxu0
    %v1894 = vadd.f32 0.0, %v1893
    %v1895 = vpop.f32.mrb[0].mxu0
    %v1896 = vadd.f32 0.0, %v1895
    %1897 = vmatprep.mubr.bf16.mxu0 %v1394
    %1898 = vmatmul.mubr.bf16.gmra.mrb[0].mxu0 %v1393
    %v1899 = vpop.f32.mrb[0].mxu0
    %v1900 = vadd.f32 0.0, %v1899
    %v1901 = vpop.f32.mrb[0].mxu0
    %v1902 = vadd.f32 0.0, %v1901
    %v1903 = vpop.f32.mrb[0].mxu0
    %v1904 = vadd.f32 0.0, %v1903
    %v1905 = vpop.f32.mrb[0].mxu0
    %v1906 = vadd.f32 0.0, %v1905
    %1907 = vmatprep.mubr.bf16.mxu0 %v1396
    %1908 = vmatmul.mubr.bf16.gmra.mrb[0].mxu0 %v1395
    %v1909 = vpop.f32.mrb[0].mxu0
    %v1910 = vadd.f32 0.0, %v1909
    %v1911 = vpop.f32.mrb[0].mxu0
    %v1912 = vadd.f32 0.0, %v1911
    %v1913 = vpop.f32.mrb[0].mxu0
    %v1914 = vadd.f32 0.0, %v1913
    %v1915 = vpop.f32.mrb[0].mxu0
    %v1916 = vadd.f32 0.0, %v1915
    %1917 = vmatprep.mubr.bf16.mxu0 %v1398
    %1918 = vmatmul.mubr.bf16.gmra.mrb[0].mxu0 %v1397
    %v1919 = vpop.f32.mrb[0].mxu0
    %v1920 = vadd.f32 0.0, %v1919
    %v1921 = vpop.f32.mrb[0].mxu0
    %v1922 = vadd.f32 0.0, %v1921
    %v1923 = vpop.f32.mrb[0].mxu0
    %v1924 = vadd.f32 0.0, %v1923
    %v1925 = vpop.f32.mrb[0].mxu0
    %v1926 = vadd.f32 0.0, %v1925
    %1927 = vmatprep.mubr.bf16.mxu0 %v1400
    %1928 = vmatmul.mubr.bf16.gmra.mrb[0].mxu0 %v1399
    %v1929 = vpop.f32.mrb[0].mxu0
    %v1930 = vadd.f32 0.0, %v1929
    %v1931 = vpop.f32.mrb[0].mxu0
    %v1932 = vadd.f32 0.0, %v1931
    %v1933 = vpop.f32.mrb[0].mxu0
    %v1934 = vadd.f32 0.0, %v1933
    %v1935 = vpop.f32.mrb[0].mxu0
    %v1936 = vadd.f32 0.0, %v1935
    %1937 = vmatprep.mubr.bf16.mxu0 %v1402
    %1938 = vmatmul.mubr.bf16.gmra.mrb[0].mxu0 %v1401
    %v1939 = vpop.f32.mrb[0].mxu0
    %v1940 = vadd.f32 0.0, %v1939
    %v1941 = vpop.f32.mrb[0].mxu0
    %v1942 = vadd.f32 0.0, %v1941
    %v1943 = vpop.f32.mrb[0].mxu0
    %v1944 = vadd.f32 0.0, %v1943
    %v1945 = vpop.f32.mrb[0].mxu0
    %v1946 = vadd.f32 0.0, %v1945
    %1947 = vmatprep.mubr.bf16.mxu0 %v1404
    %1948 = vmatmul.mubr.bf16.gmra.mrb[0].mxu0 %v1403
    %v1949 = vpop.f32.mrb[0].mxu0
    %v1950 = vadd.f32 0.0, %v1949
    %v1951 = vpop.f32.mrb[0].mxu0
    %v1952 = vadd.f32 0.0, %v1951
    %v1953 = vpop.f32.mrb[0].mxu0
    %v1954 = vadd.f32 0.0, %v1953
    %v1955 = vpop.f32.mrb[0].mxu0
    %v1956 = vadd.f32 0.0, %v1955
    %1957 = vmatprep.mubr.bf16.mxu0 %v1406
    %1958 = vmatmul.mubr.bf16.gmra.mrb[0].mxu0 %v1405
    %v1959 = vpop.f32.mrb[0].mxu0
    %v1960 = vadd.f32 0.0, %v1959
    %v1961 = vpop.f32.mrb[0].mxu0
    %v1962 = vadd.f32 0.0, %v1961
    %v1963 = vpop.f32.mrb[0].mxu0
    %v1964 = vadd.f32 0.0, %v1963
    %v1965 = vpop.f32.mrb[0].mxu0
    %v1966 = vadd.f32 0.0, %v1965
    %1967 = vmatprep.mubr.bf16.mxu0 %v1408
    %1968 = vmatmul.mubr.bf16.gmra.mrb[0].mxu0 %v1407
    %v1969 = vpop.f32.mrb[0].mxu0
    %v1970 = vadd.f32 0.0, %v1969
    %v1971 = vpop.f32.mrb[0].mxu0
    %v1972 = vadd.f32 0.0, %v1971
    %v1973 = vpop.f32.mrb[0].mxu0
    %v1974 = vadd.f32 0.0, %v1973
    %v1975 = vpop.f32.mrb[0].mxu0
    %v1976 = vadd.f32 0.0, %v1975
    %1977 = vmatprep.mubr.bf16.mxu0 %v1410
    %1978 = vmatmul.mubr.bf16.gmra.mrb[0].mxu0 %v1409
    %v1979 = vpop.f32.mrb[0].mxu0
    %v1980 = vadd.f32 0.0, %v1979
    %v1981 = vpop.f32.mrb[0].mxu0
    %v1982 = vadd.f32 0.0, %v1981
    %v1983 = vpop.f32.mrb[0].mxu0
    %v1984 = vadd.f32 0.0, %v1983
    %v1985 = vpop.f32.mrb[0].mxu0
    %v1986 = vadd.f32 0.0, %v1985
    %1987 = vdwg.mxu0
    %1988 = vmatprep.subr.bf16.mxu0 %v1670
    %1989 = vmatpush1.bf16.msra.mxu0 %v1669
    %1990 = vmatprep.subr.bf16.mxu0 %v1674
    %1991 = vmatpush1.bf16.msra.mxu0 %v1673
    %1992 = vmatprep.subr.bf16.mxu0 %v1678
    %1993 = vmatpush1.bf16.msra.mxu0 %v1677
    %1994 = vmatprep.subr.bf16.mxu0 %v1682
    %1995 = vmatpush1.bf16.msra.mxu0 %v1681
    %1996 = vmatprep.subr.bf16.mxu0 %v1686
    %1997 = vmatpush1.bf16.msra.mxu0 %v1685
    %1998 = vmatprep.subr.bf16.mxu0 %v1690
    %1999 = vmatpush1.bf16.msra.mxu0 %v1689
    %2000 = vmatprep.subr.bf16.mxu0 %v1694
    %2001 = vmatpush1.bf16.msra.mxu0 %v1693
    %2002 = vmatprep.subr.bf16.mxu0 %v1698
    %2003 = vmatpush1.bf16.msra.mxu0 %v1697
    %2004 = vmatprep.subr.bf16.mxu0 %v1702
    %2005 = vmatpush1.bf16.msra.mxu0 %v1701
    %2006 = vmatprep.subr.bf16.mxu0 %v1706
    %2007 = vmatpush1.bf16.msra.mxu0 %v1705
    %2008 = vmatprep.subr.bf16.mxu0 %v1710
    %2009 = vmatpush1.bf16.msra.mxu0 %v1709
    %2010 = vmatprep.subr.bf16.mxu0 %v1714
    %2011 = vmatpush1.bf16.msra.mxu0 %v1713
    %2012 = vmatprep.subr.bf16.mxu0 %v1718
    %2013 = vmatpush1.bf16.msra.mxu0 %v1717
    %2014 = vmatprep.subr.bf16.mxu0 %v1722
    %2015 = vmatpush1.bf16.msra.mxu0 %v1721
    %2016 = vmatprep.subr.bf16.mxu0 %v1726
    %2017 = vmatpush1.bf16.msra.mxu0 %v1725
    %2018 = vmatprep.subr.bf16.mxu0 %v1730
    %2019 = vmatpush1.bf16.msra.mxu0 %v1729
    %2020 = vmatprep.mubr.bf16.mxu0 %v1380
    %2021 = vmatmul.mubr.bf16.gmra.mrb[0].mxu0 %v1379
    %v2022 = vpop.f32.mrb[0].mxu0
    %v2023 = vadd.f32 0.0, %v2022
    %v2024 = vpop.f32.mrb[0].mxu0
    %v2025 = vadd.f32 0.0, %v2024
    %v2026 = vpop.f32.mrb[0].mxu0
    %v2027 = vadd.f32 0.0, %v2026
    %v2028 = vpop.f32.mrb[0].mxu0
    %v2029 = vadd.f32 0.0, %v2028
    %2030 = vmatprep.mubr.bf16.mxu0 %v1382
    %2031 = vmatmul.mubr.bf16.gmra.mrb[0].mxu0 %v1381
    %v2032 = vpop.f32.mrb[0].mxu0
    %v2033 = vadd.f32 0.0, %v2032
    %v2034 = vpop.f32.mrb[0].mxu0
    %v2035 = vadd.f32 0.0, %v2034
    %v2036 = vpop.f32.mrb[0].mxu0
    %v2037 = vadd.f32 0.0, %v2036
    %v2038 = vpop.f32.mrb[0].mxu0
    %v2039 = vadd.f32 0.0, %v2038
    %2040 = vmatprep.mubr.bf16.mxu0 %v1384
    %2041 = vmatmul.mubr.bf16.gmra.mrb[0].mxu0 %v1383
    %v2042 = vpop.f32.mrb[0].mxu0
    %v2043 = vadd.f32 0.0, %v2042
    %v2044 = vpop.f32.mrb[0].mxu0
    %v2045 = vadd.f32 0.0, %v2044
    %v2046 = vpop.f32.mrb[0].mxu0
    %v2047 = vadd.f32 0.0, %v2046
    %v2048 = vpop.f32.mrb[0].mxu0
    %v2049 = vadd.f32 0.0, %v2048
    %2050 = vmatprep.mubr.bf16.mxu0 %v1386
    %2051 = vmatmul.mubr.bf16.gmra.mrb[0].mxu0 %v1385
    %v2052 = vpop.f32.mrb[0].mxu0
    %v2053 = vadd.f32 0.0, %v2052
    %v2054 = vpop.f32.mrb[0].mxu0
    %v2055 = vadd.f32 0.0, %v2054
    %v2056 = vpop.f32.mrb[0].mxu0
    %v2057 = vadd.f32 0.0, %v2056
    %v2058 = vpop.f32.mrb[0].mxu0
    %v2059 = vadd.f32 0.0, %v2058
    %2060 = vmatprep.mubr.bf16.mxu0 %v1388
    %2061 = vmatmul.mubr.bf16.gmra.mrb[0].mxu0 %v1387
    %v2062 = vpop.f32.mrb[0].mxu0
    %v2063 = vadd.f32 0.0, %v2062
    %v2064 = vpop.f32.mrb[0].mxu0
    %v2065 = vadd.f32 0.0, %v2064
    %v2066 = vpop.f32.mrb[0].mxu0
    %v2067 = vadd.f32 0.0, %v2066
    %v2068 = vpop.f32.mrb[0].mxu0
    %v2069 = vadd.f32 0.0, %v2068
    %2070 = vmatprep.mubr.bf16.mxu0 %v1390
    %2071 = vmatmul.mubr.bf16.gmra.mrb[0].mxu0 %v1389
    %v2072 = vpop.f32.mrb[0].mxu0
    %v2073 = vadd.f32 0.0, %v2072
    %v2074 = vpop.f32.mrb[0].mxu0
    %v2075 = vadd.f32 0.0, %v2074
    %v2076 = vpop.f32.mrb[0].mxu0
    %v2077 = vadd.f32 0.0, %v2076
    %v2078 = vpop.f32.mrb[0].mxu0
    %v2079 = vadd.f32 0.0, %v2078
    %2080 = vmatprep.mubr.bf16.mxu0 %v1392
    %2081 = vmatmul.mubr.bf16.gmra.mrb[0].mxu0 %v1391
    %v2082 = vpop.f32.mrb[0].mxu0
    %v2083 = vadd.f32 0.0, %v2082
    %v2084 = vpop.f32.mrb[0].mxu0
    %v2085 = vadd.f32 0.0, %v2084
    %v2086 = vpop.f32.mrb[0].mxu0
    %v2087 = vadd.f32 0.0, %v2086
    %v2088 = vpop.f32.mrb[0].mxu0
    %v2089 = vadd.f32 0.0, %v2088
    %2090 = vmatprep.mubr.bf16.mxu0 %v1394
    %2091 = vmatmul.mubr.bf16.gmra.mrb[0].mxu0 %v1393
    %v2092 = vpop.f32.mrb[0].mxu0
    %v2093 = vadd.f32 0.0, %v2092
    %v2094 = vpop.f32.mrb[0].mxu0
    %v2095 = vadd.f32 0.0, %v2094
    %v2096 = vpop.f32.mrb[0].mxu0
    %v2097 = vadd.f32 0.0, %v2096
    %v2098 = vpop.f32.mrb[0].mxu0
    %v2099 = vadd.f32 0.0, %v2098
    %2100 = vmatprep.mubr.bf16.mxu0 %v1396
    %2101 = vmatmul.mubr.bf16.gmra.mrb[0].mxu0 %v1395
    %v2102 = vpop.f32.mrb[0].mxu0
    %v2103 = vadd.f32 0.0, %v2102
    %v2104 = vpop.f32.mrb[0].mxu0
    %v2105 = vadd.f32 0.0, %v2104
    %v2106 = vpop.f32.mrb[0].mxu0
    %v2107 = vadd.f32 0.0, %v2106
    %v2108 = vpop.f32.mrb[0].mxu0
    %v2109 = vadd.f32 0.0, %v2108
    %2110 = vmatprep.mubr.bf16.mxu0 %v1398
    %2111 = vmatmul.mubr.bf16.gmra.mrb[0].mxu0 %v1397
    %v2112 = vpop.f32.mrb[0].mxu0
    %v2113 = vadd.f32 0.0, %v2112
    %v2114 = vpop.f32.mrb[0].mxu0
    %v2115 = vadd.f32 0.0, %v2114
    %v2116 = vpop.f32.mrb[0].mxu0
    %v2117 = vadd.f32 0.0, %v2116
    %v2118 = vpop.f32.mrb[0].mxu0
    %v2119 = vadd.f32 0.0, %v2118
    %2120 = vmatprep.mubr.bf16.mxu0 %v1400
    %2121 = vmatmul.mubr.bf16.gmra.mrb[0].mxu0 %v1399
    %v2122 = vpop.f32.mrb[0].mxu0
    %v2123 = vadd.f32 0.0, %v2122
    %v2124 = vpop.f32.mrb[0].mxu0
    %v2125 = vadd.f32 0.0, %v2124
    %v2126 = vpop.f32.mrb[0].mxu0
    %v2127 = vadd.f32 0.0, %v2126
    %v2128 = vpop.f32.mrb[0].mxu0
    %v2129 = vadd.f32 0.0, %v2128
    %2130 = vmatprep.mubr.bf16.mxu0 %v1402
    %2131 = vmatmul.mubr.bf16.gmra.mrb[0].mxu0 %v1401
    %v2132 = vpop.f32.mrb[0].mxu0
    %v2133 = vadd.f32 0.0, %v2132
    %v2134 = vpop.f32.mrb[0].mxu0
    %v2135 = vadd.f32 0.0, %v2134
    %v2136 = vpop.f32.mrb[0].mxu0
    %v2137 = vadd.f32 0.0, %v2136
    %v2138 = vpop.f32.mrb[0].mxu0
    %v2139 = vadd.f32 0.0, %v2138
    %2140 = vmatprep.mubr.bf16.mxu0 %v1404
    %2141 = vmatmul.mubr.bf16.gmra.mrb[0].mxu0 %v1403
    %v2142 = vpop.f32.mrb[0].mxu0
    %v2143 = vadd.f32 0.0, %v2142
    %v2144 = vpop.f32.mrb[0].mxu0
    %v2145 = vadd.f32 0.0, %v2144
    %v2146 = vpop.f32.mrb[0].mxu0
    %v2147 = vadd.f32 0.0, %v2146
    %v2148 = vpop.f32.mrb[0].mxu0
    %v2149 = vadd.f32 0.0, %v2148
    %2150 = vmatprep.mubr.bf16.mxu0 %v1406
    %2151 = vmatmul.mubr.bf16.gmra.mrb[0].mxu0 %v1405
    %v2152 = vpop.f32.mrb[0].mxu0
    %v2153 = vadd.f32 0.0, %v2152
    %v2154 = vpop.f32.mrb[0].mxu0
    %v2155 = vadd.f32 0.0, %v2154
    %v2156 = vpop.f32.mrb[0].mxu0
    %v2157 = vadd.f32 0.0, %v2156
    %v2158 = vpop.f32.mrb[0].mxu0
    %v2159 = vadd.f32 0.0, %v2158
    %2160 = vmatprep.mubr.bf16.mxu0 %v1408
    %2161 = vmatmul.mubr.bf16.gmra.mrb[0].mxu0 %v1407
    %v2162 = vpop.f32.mrb[0].mxu0
    %v2163 = vadd.f32 0.0, %v2162
    %v2164 = vpop.f32.mrb[0].mxu0
    %v2165 = vadd.f32 0.0, %v2164
    %v2166 = vpop.f32.mrb[0].mxu0
    %v2167 = vadd.f32 0.0, %v2166
    %v2168 = vpop.f32.mrb[0].mxu0
    %v2169 = vadd.f32 0.0, %v2168
    %2170 = vmatprep.mubr.bf16.mxu0 %v1410
    %2171 = vmatmul.mubr.bf16.gmra.mrb[0].mxu0 %v1409
    %v2172 = vpop.f32.mrb[0].mxu0
    %v2173 = vadd.f32 0.0, %v2172
    %v2174 = vpop.f32.mrb[0].mxu0
    %v2175 = vadd.f32 0.0, %v2174
    %v2176 = vpop.f32.mrb[0].mxu0
    %v2177 = vadd.f32 0.0, %v2176
    %v2178 = vpop.f32.mrb[0].mxu0
    %v2179 = vadd.f32 0.0, %v2178
    %2180 = vdwg.mxu0
    %v2185 = vcombine.low %v1332, %v1334
    %v2186 = vcombine.low %v1373, %v1375
    %v2188 = vunpack.c.l.s4 1966171168
    %v2189 = vunpack.c.0.s8 %v2188
    %v2190 = vlaneseq
    %v2191 = vshrl.u32 %v2190, 7
    %v2192 = vsub.s32 %v2189, %v2191
    %v2193 = vrot.slane %v2185, %v2192
    %v2195 = vunpack.c.l.s4 1966171168
    %v2196 = vunpack.c.0.s8 %v2195
    %v2197 = vlaneseq
    %v2198 = vshrl.u32 %v2197, 7
    %v2199 = vsub.s32 %v2196, %v2198
    %v2200 = vrot.slane %v2186, %v2199
    %v2201 = vcombine.low %v2193, %v2200
    %v2202 = vcombine.high %v2193, %v2200
    %v2204 = vunpack.c.l.s4 1966171168
    %v2205 = vunpack.c.0.s8 %v2204
    %v2206 = vlaneseq
    %v2207 = vshrl.u32 %v2206, 7
    %v2208 = vsub.s32 %v2205, %v2207
    %v2209 = vrot.slane %v2201, %v2208
    %v2211 = vunpack.c.l.s4 1966171168
    %v2212 = vunpack.c.0.s8 %v2211
    %v2213 = vlaneseq
    %v2214 = vshrl.u32 %v2213, 7
    %v2215 = vsub.s32 %v2212, %v2214
    %v2216 = vrot.slane %v2202, %v2215
    %v2217 = vlaneseq
    %v2218 = vshrl.u32 %v2217, 7
    %v2219 = vsub.s32 0, %v2218
    %v2220 = vrot.slane %v2209, %v2219
    %v2221 = vlaneseq
    %v2222 = vshrl.u32 %v2221, 7
    %v2223 = vsub.s32 1, %v2222
    %v2224 = vrot.slane %v2209, %v2223
    %v2225 = vlaneseq
    %v2226 = vshrl.u32 %v2225, 7
    %v2227 = vsub.s32 2, %v2226
    %v2228 = vrot.slane %v2209, %v2227
    %v2229 = vlaneseq
    %v2230 = vshrl.u32 %v2229, 7
    %v2231 = vsub.s32 3, %v2230
    %v2232 = vrot.slane %v2209, %v2231
    %v2233 = vlaneseq
    %v2234 = vshrl.u32 %v2233, 7
    %v2235 = vsub.s32 0, %v2234
    %v2236 = vrot.slane %v2216, %v2235
    %v2237 = vlaneseq
    %v2238 = vshrl.u32 %v2237, 7
    %v2239 = vsub.s32 1, %v2238
    %v2240 = vrot.slane %v2216, %v2239
    %v2241 = vlaneseq
    %v2242 = vshrl.u32 %v2241, 7
    %v2243 = vsub.s32 2, %v2242
    %v2244 = vrot.slane %v2216, %v2243
    %v2245 = vlaneseq
    %v2246 = vshrl.u32 %v2245, 7
    %v2247 = vsub.s32 3, %v2246
    %v2248 = vrot.slane %v2216, %v2247
    %v2257 = vadd.f32 %v1830, %v2220
    %v2258 = vadd.f32 %v1832, %v2224
    %v2259 = vadd.f32 %v2023, %v2228
    %v2260 = vadd.f32 %v2025, %v2232
    %v2261 = vadd.f32 %v1834, %v2220
    %v2262 = vadd.f32 %v1836, %v2224
    %v2263 = vadd.f32 %v2027, %v2228
    %v2264 = vadd.f32 %v2029, %v2232
    %v2265 = vadd.f32 %v1840, %v2220
    %v2266 = vadd.f32 %v1842, %v2224
    %v2267 = vadd.f32 %v2033, %v2228
    %v2268 = vadd.f32 %v2035, %v2232
    %v2269 = vadd.f32 %v1844, %v2220
    %v2270 = vadd.f32 %v1846, %v2224
    %v2271 = vadd.f32 %v2037, %v2228
    %v2272 = vadd.f32 %v2039, %v2232
    %v2273 = vadd.f32 %v1850, %v2220
    %v2274 = vadd.f32 %v1852, %v2224
    %v2275 = vadd.f32 %v2043, %v2228
    %v2276 = vadd.f32 %v2045, %v2232
    %v2277 = vadd.f32 %v1854, %v2220
    %v2278 = vadd.f32 %v1856, %v2224
    %v2279 = vadd.f32 %v2047, %v2228
    %v2280 = vadd.f32 %v2049, %v2232
    %v2281 = vadd.f32 %v1860, %v2220
    %v2282 = vadd.f32 %v1862, %v2224
    %v2283 = vadd.f32 %v2053, %v2228
    %v2284 = vadd.f32 %v2055, %v2232
    %v2285 = vadd.f32 %v1864, %v2220
    %v2286 = vadd.f32 %v1866, %v2224
    %v2287 = vadd.f32 %v2057, %v2228
    %v2288 = vadd.f32 %v2059, %v2232
    %v2289 = vadd.f32 %v1870, %v2220
    %v2290 = vadd.f32 %v1872, %v2224
    %v2291 = vadd.f32 %v2063, %v2228
    %v2292 = vadd.f32 %v2065, %v2232
    %v2293 = vadd.f32 %v1874, %v2220
    %v2294 = vadd.f32 %v1876, %v2224
    %v2295 = vadd.f32 %v2067, %v2228
    %v2296 = vadd.f32 %v2069, %v2232
    %v2297 = vadd.f32 %v1880, %v2220
    %v2298 = vadd.f32 %v1882, %v2224
    %v2299 = vadd.f32 %v2073, %v2228
    %v2300 = vadd.f32 %v2075, %v2232
    %v2301 = vadd.f32 %v1884, %v2220
    %v2302 = vadd.f32 %v1886, %v2224
    %v2303 = vadd.f32 %v2077, %v2228
    %v2304 = vadd.f32 %v2079, %v2232
    %v2305 = vadd.f32 %v1890, %v2220
    %v2306 = vadd.f32 %v1892, %v2224
    %v2307 = vadd.f32 %v2083, %v2228
    %v2308 = vadd.f32 %v2085, %v2232
    %v2309 = vadd.f32 %v1894, %v2220
    %v2310 = vadd.f32 %v1896, %v2224
    %v2311 = vadd.f32 %v2087, %v2228
    %v2312 = vadd.f32 %v2089, %v2232
    %v2313 = vadd.f32 %v1900, %v2220
    %v2314 = vadd.f32 %v1902, %v2224
    %v2315 = vadd.f32 %v2093, %v2228
    %v2316 = vadd.f32 %v2095, %v2232
    %v2317 = vadd.f32 %v1904, %v2220
    %v2318 = vadd.f32 %v1906, %v2224
    %v2319 = vadd.f32 %v2097, %v2228
    %v2320 = vadd.f32 %v2099, %v2232
    %v2321 = vadd.f32 %v1910, %v2236
    %v2322 = vadd.f32 %v1912, %v2240
    %v2323 = vadd.f32 %v2103, %v2244
    %v2324 = vadd.f32 %v2105, %v2248
    %v2325 = vadd.f32 %v1914, %v2236
    %v2326 = vadd.f32 %v1916, %v2240
    %v2327 = vadd.f32 %v2107, %v2244
    %v2328 = vadd.f32 %v2109, %v2248
    %v2329 = vadd.f32 %v1920, %v2236
    %v2330 = vadd.f32 %v1922, %v2240
    %v2331 = vadd.f32 %v2113, %v2244
    %v2332 = vadd.f32 %v2115, %v2248
    %v2333 = vadd.f32 %v1924, %v2236
    %v2334 = vadd.f32 %v1926, %v2240
    %v2335 = vadd.f32 %v2117, %v2244
    %v2336 = vadd.f32 %v2119, %v2248
    %v2337 = vadd.f32 %v1930, %v2236
    %v2338 = vadd.f32 %v1932, %v2240
    %v2339 = vadd.f32 %v2123, %v2244
    %v2340 = vadd.f32 %v2125, %v2248
    %v2341 = vadd.f32 %v1934, %v2236
    %v2342 = vadd.f32 %v1936, %v2240
    %v2343 = vadd.f32 %v2127, %v2244
    %v2344 = vadd.f32 %v2129, %v2248
    %v2345 = vadd.f32 %v1940, %v2236
    %v2346 = vadd.f32 %v1942, %v2240
    %v2347 = vadd.f32 %v2133, %v2244
    %v2348 = vadd.f32 %v2135, %v2248
    %v2349 = vadd.f32 %v1944, %v2236
    %v2350 = vadd.f32 %v1946, %v2240
    %v2351 = vadd.f32 %v2137, %v2244
    %v2352 = vadd.f32 %v2139, %v2248
    %v2353 = vadd.f32 %v1950, %v2236
    %v2354 = vadd.f32 %v1952, %v2240
    %v2355 = vadd.f32 %v2143, %v2244
    %v2356 = vadd.f32 %v2145, %v2248
    %v2357 = vadd.f32 %v1954, %v2236
    %v2358 = vadd.f32 %v1956, %v2240
    %v2359 = vadd.f32 %v2147, %v2244
    %v2360 = vadd.f32 %v2149, %v2248
    %v2361 = vadd.f32 %v1960, %v2236
    %v2362 = vadd.f32 %v1962, %v2240
    %v2363 = vadd.f32 %v2153, %v2244
    %v2364 = vadd.f32 %v2155, %v2248
    %v2365 = vadd.f32 %v1964, %v2236
    %v2366 = vadd.f32 %v1966, %v2240
    %v2367 = vadd.f32 %v2157, %v2244
    %v2368 = vadd.f32 %v2159, %v2248
    %v2369 = vadd.f32 %v1970, %v2236
    %v2370 = vadd.f32 %v1972, %v2240
    %v2371 = vadd.f32 %v2163, %v2244
    %v2372 = vadd.f32 %v2165, %v2248
    %v2373 = vadd.f32 %v1974, %v2236
    %v2374 = vadd.f32 %v1976, %v2240
    %v2375 = vadd.f32 %v2167, %v2244
    %v2376 = vadd.f32 %v2169, %v2248
    %v2377 = vadd.f32 %v1980, %v2236
    %v2378 = vadd.f32 %v1982, %v2240
    %v2379 = vadd.f32 %v2173, %v2244
    %v2380 = vadd.f32 %v2175, %v2248
    %v2381 = vadd.f32 %v1984, %v2236
    %v2382 = vadd.f32 %v1986, %v2240
    %v2383 = vadd.f32 %v2177, %v2244
    %v2384 = vadd.f32 %v2179, %v2248
    %v2385 = vmax.f32 %v2257, 0.0
    %v2386 = vmax.f32 %v2258, 0.0
    %v2387 = vmax.f32 %v2259, 0.0
    %v2388 = vmax.f32 %v2260, 0.0
    %v2389 = vmax.f32 %v2261, 0.0
    %v2390 = vmax.f32 %v2262, 0.0
    %v2391 = vmax.f32 %v2263, 0.0
    %v2392 = vmax.f32 %v2264, 0.0
    %v2393 = vmax.f32 %v2265, 0.0
    %v2394 = vmax.f32 %v2266, 0.0
    %v2395 = vmax.f32 %v2267, 0.0
    %v2396 = vmax.f32 %v2268, 0.0
    %v2397 = vmax.f32 %v2269, 0.0
    %v2398 = vmax.f32 %v2270, 0.0
    %v2399 = vmax.f32 %v2271, 0.0
    %v2400 = vmax.f32 %v2272, 0.0
    %v2401 = vmax.f32 %v2273, 0.0
    %v2402 = vmax.f32 %v2274, 0.0
    %v2403 = vmax.f32 %v2275, 0.0
    %v2404 = vmax.f32 %v2276, 0.0
    %v2405 = vmax.f32 %v2277, 0.0
    %v2406 = vmax.f32 %v2278, 0.0
    %v2407 = vmax.f32 %v2279, 0.0
    %v2408 = vmax.f32 %v2280, 0.0
    %v2409 = vmax.f32 %v2281, 0.0
    %v2410 = vmax.f32 %v2282, 0.0
    %v2411 = vmax.f32 %v2283, 0.0
    %v2412 = vmax.f32 %v2284, 0.0
    %v2413 = vmax.f32 %v2285, 0.0
    %v2414 = vmax.f32 %v2286, 0.0
    %v2415 = vmax.f32 %v2287, 0.0
    %v2416 = vmax.f32 %v2288, 0.0
    %v2417 = vmax.f32 %v2289, 0.0
    %v2418 = vmax.f32 %v2290, 0.0
    %v2419 = vmax.f32 %v2291, 0.0
    %v2420 = vmax.f32 %v2292, 0.0
    %v2421 = vmax.f32 %v2293, 0.0
    %v2422 = vmax.f32 %v2294, 0.0
    %v2423 = vmax.f32 %v2295, 0.0
    %v2424 = vmax.f32 %v2296, 0.0
    %v2425 = vmax.f32 %v2297, 0.0
    %v2426 = vmax.f32 %v2298, 0.0
    %v2427 = vmax.f32 %v2299, 0.0
    %v2428 = vmax.f32 %v2300, 0.0
    %v2429 = vmax.f32 %v2301, 0.0
    %v2430 = vmax.f32 %v2302, 0.0
    %v2431 = vmax.f32 %v2303, 0.0
    %v2432 = vmax.f32 %v2304, 0.0
    %v2433 = vmax.f32 %v2305, 0.0
    %v2434 = vmax.f32 %v2306, 0.0
    %v2435 = vmax.f32 %v2307, 0.0
    %v2436 = vmax.f32 %v2308, 0.0
    %v2437 = vmax.f32 %v2309, 0.0
    %v2438 = vmax.f32 %v2310, 0.0
    %v2439 = vmax.f32 %v2311, 0.0
    %v2440 = vmax.f32 %v2312, 0.0
    %v2441 = vmax.f32 %v2313, 0.0
    %v2442 = vmax.f32 %v2314, 0.0
    %v2443 = vmax.f32 %v2315, 0.0
    %v2444 = vmax.f32 %v2316, 0.0
    %v2445 = vmax.f32 %v2317, 0.0
    %v2446 = vmax.f32 %v2318, 0.0
    %v2447 = vmax.f32 %v2319, 0.0
    %v2448 = vmax.f32 %v2320, 0.0
    %v2449 = vmax.f32 %v2321, 0.0
    %v2450 = vmax.f32 %v2322, 0.0
    %v2451 = vmax.f32 %v2323, 0.0
    %v2452 = vmax.f32 %v2324, 0.0
    %v2453 = vmax.f32 %v2325, 0.0
    %v2454 = vmax.f32 %v2326, 0.0
    %v2455 = vmax.f32 %v2327, 0.0
    %v2456 = vmax.f32 %v2328, 0.0
    %v2457 = vmax.f32 %v2329, 0.0
    %v2458 = vmax.f32 %v2330, 0.0
    %v2459 = vmax.f32 %v2331, 0.0
    %v2460 = vmax.f32 %v2332, 0.0
    %v2461 = vmax.f32 %v2333, 0.0
    %v2462 = vmax.f32 %v2334, 0.0
    %v2463 = vmax.f32 %v2335, 0.0
    %v2464 = vmax.f32 %v2336, 0.0
    %v2465 = vmax.f32 %v2337, 0.0
    %v2466 = vmax.f32 %v2338, 0.0
    %v2467 = vmax.f32 %v2339, 0.0
    %v2468 = vmax.f32 %v2340, 0.0
    %v2469 = vmax.f32 %v2341, 0.0
    %v2470 = vmax.f32 %v2342, 0.0
    %v2471 = vmax.f32 %v2343, 0.0
    %v2472 = vmax.f32 %v2344, 0.0
    %v2473 = vmax.f32 %v2345, 0.0
    %v2474 = vmax.f32 %v2346, 0.0
    %v2475 = vmax.f32 %v2347, 0.0
    %v2476 = vmax.f32 %v2348, 0.0
    %v2477 = vmax.f32 %v2349, 0.0
    %v2478 = vmax.f32 %v2350, 0.0
    %v2479 = vmax.f32 %v2351, 0.0
    %v2480 = vmax.f32 %v2352, 0.0
    %v2481 = vmax.f32 %v2353, 0.0
    %v2482 = vmax.f32 %v2354, 0.0
    %v2483 = vmax.f32 %v2355, 0.0
    %v2484 = vmax.f32 %v2356, 0.0
    %v2485 = vmax.f32 %v2357, 0.0
    %v2486 = vmax.f32 %v2358, 0.0
    %v2487 = vmax.f32 %v2359, 0.0
    %v2488 = vmax.f32 %v2360, 0.0
    %v2489 = vmax.f32 %v2361, 0.0
    %v2490 = vmax.f32 %v2362, 0.0
    %v2491 = vmax.f32 %v2363, 0.0
    %v2492 = vmax.f32 %v2364, 0.0
    %v2493 = vmax.f32 %v2365, 0.0
    %v2494 = vmax.f32 %v2366, 0.0
    %v2495 = vmax.f32 %v2367, 0.0
    %v2496 = vmax.f32 %v2368, 0.0
    %v2497 = vmax.f32 %v2369, 0.0
    %v2498 = vmax.f32 %v2370, 0.0
    %v2499 = vmax.f32 %v2371, 0.0
    %v2500 = vmax.f32 %v2372, 0.0
    %v2501 = vmax.f32 %v2373, 0.0
    %v2502 = vmax.f32 %v2374, 0.0
    %v2503 = vmax.f32 %v2375, 0.0
    %v2504 = vmax.f32 %v2376, 0.0
    %v2505 = vmax.f32 %v2377, 0.0
    %v2506 = vmax.f32 %v2378, 0.0
    %v2507 = vmax.f32 %v2379, 0.0
    %v2508 = vmax.f32 %v2380, 0.0
    %v2509 = vmax.f32 %v2381, 0.0
    %v2510 = vmax.f32 %v2382, 0.0
    %v2511 = vmax.f32 %v2383, 0.0
    %v2512 = vmax.f32 %v2384, 0.0
    %v2513 = vpack.c.bf16 %v2389, %v2385
    %v2514 = vpack.c.bf16 %v2390, %v2386
    %v2515 = vpack.c.bf16 %v2391, %v2387
    %v2516 = vpack.c.bf16 %v2392, %v2388
    %v2517 = vpack.c.bf16 %v2397, %v2393
    %v2518 = vpack.c.bf16 %v2398, %v2394
    %v2519 = vpack.c.bf16 %v2399, %v2395
    %v2520 = vpack.c.bf16 %v2400, %v2396
    %v2521 = vpack.c.bf16 %v2405, %v2401
    %v2522 = vpack.c.bf16 %v2406, %v2402
    %v2523 = vpack.c.bf16 %v2407, %v2403
    %v2524 = vpack.c.bf16 %v2408, %v2404
    %v2525 = vpack.c.bf16 %v2413, %v2409
    %v2526 = vpack.c.bf16 %v2414, %v2410
    %v2527 = vpack.c.bf16 %v2415, %v2411
    %v2528 = vpack.c.bf16 %v2416, %v2412
    %v2529 = vpack.c.bf16 %v2421, %v2417
    %v2530 = vpack.c.bf16 %v2422, %v2418
    %v2531 = vpack.c.bf16 %v2423, %v2419
    %v2532 = vpack.c.bf16 %v2424, %v2420
    %v2533 = vpack.c.bf16 %v2429, %v2425
    %v2534 = vpack.c.bf16 %v2430, %v2426
    %v2535 = vpack.c.bf16 %v2431, %v2427
    %v2536 = vpack.c.bf16 %v2432, %v2428
    %v2537 = vpack.c.bf16 %v2437, %v2433
    %v2538 = vpack.c.bf16 %v2438, %v2434
    %v2539 = vpack.c.bf16 %v2439, %v2435
    %v2540 = vpack.c.bf16 %v2440, %v2436
    %v2541 = vpack.c.bf16 %v2445, %v2441
    %v2542 = vpack.c.bf16 %v2446, %v2442
    %v2543 = vpack.c.bf16 %v2447, %v2443
    %v2544 = vpack.c.bf16 %v2448, %v2444
    %v2545 = vpack.c.bf16 %v2453, %v2449
    %v2546 = vpack.c.bf16 %v2454, %v2450
    %v2547 = vpack.c.bf16 %v2455, %v2451
    %v2548 = vpack.c.bf16 %v2456, %v2452
    %v2549 = vpack.c.bf16 %v2461, %v2457
    %v2550 = vpack.c.bf16 %v2462, %v2458
    %v2551 = vpack.c.bf16 %v2463, %v2459
    %v2552 = vpack.c.bf16 %v2464, %v2460
    %v2553 = vpack.c.bf16 %v2469, %v2465
    %v2554 = vpack.c.bf16 %v2470, %v2466
    %v2555 = vpack.c.bf16 %v2471, %v2467
    %v2556 = vpack.c.bf16 %v2472, %v2468
    %v2557 = vpack.c.bf16 %v2477, %v2473
    %v2558 = vpack.c.bf16 %v2478, %v2474
    %v2559 = vpack.c.bf16 %v2479, %v2475
    %v2560 = vpack.c.bf16 %v2480, %v2476
    %v2561 = vpack.c.bf16 %v2485, %v2481
    %v2562 = vpack.c.bf16 %v2486, %v2482
    %v2563 = vpack.c.bf16 %v2487, %v2483
    %v2564 = vpack.c.bf16 %v2488, %v2484
    %v2565 = vpack.c.bf16 %v2493, %v2489
    %v2566 = vpack.c.bf16 %v2494, %v2490
    %v2567 = vpack.c.bf16 %v2495, %v2491
    %v2568 = vpack.c.bf16 %v2496, %v2492
    %v2569 = vpack.c.bf16 %v2501, %v2497
    %v2570 = vpack.c.bf16 %v2502, %v2498
    %v2571 = vpack.c.bf16 %v2503, %v2499
    %v2572 = vpack.c.bf16 %v2504, %v2500
    %v2573 = vpack.c.bf16 %v2509, %v2505
    %v2574 = vpack.c.bf16 %v2510, %v2506
    %v2575 = vpack.c.bf16 %v2511, %v2507
    %v2576 = vpack.c.bf16 %v2512, %v2508
    %v2577 = vld [vmem:[#allocation7] sm:$0xff]
    %v2578 = vld [vmem:[#allocation7 + $0x8] sm:$0xff]
    %v2579 = vld [vmem:[#allocation7 + $0x10] sm:$0xff]
    %v2580 = vld [vmem:[#allocation7 + $0x18] sm:$0xff]
    %v2581 = vld [vmem:[#allocation7 + $0x20] sm:$0xff]
    %v2582 = vld [vmem:[#allocation7 + $0x28] sm:$0xff]
    %v2583 = vld [vmem:[#allocation7 + $0x30] sm:$0xff]
    %v2584 = vld [vmem:[#allocation7 + $0x38] sm:$0xff]
    %v2585 = vld [vmem:[#allocation7 + $0x40] sm:$0xff]
    %v2586 = vld [vmem:[#allocation7 + $0x48] sm:$0xff]
    %v2587 = vld [vmem:[#allocation7 + $0x50] sm:$0xff]
    %v2588 = vld [vmem:[#allocation7 + $0x58] sm:$0xff]
    %v2589 = vld [vmem:[#allocation7 + $0x60] sm:$0xff]
    %v2590 = vld [vmem:[#allocation7 + $0x68] sm:$0xff]
    %v2591 = vld [vmem:[#allocation7 + $0x70] sm:$0xff]
    %v2592 = vld [vmem:[#allocation7 + $0x78] sm:$0xff]
    %v2593 = vld [vmem:[#allocation7 + $0x80] sm:$0xff]
    %v2594 = vld [vmem:[#allocation7 + $0x88] sm:$0xff]
    %v2595 = vld [vmem:[#allocation7 + $0x90] sm:$0xff]
    %v2596 = vld [vmem:[#allocation7 + $0x98] sm:$0xff]
    %v2597 = vld [vmem:[#allocation7 + $0xa0] sm:$0xff]
    %v2598 = vld [vmem:[#allocation7 + $0xa8] sm:$0xff]
    %v2599 = vld [vmem:[#allocation7 + $0xb0] sm:$0xff]
    %v2600 = vld [vmem:[#allocation7 + $0xb8] sm:$0xff]
    %v2601 = vld [vmem:[#allocation7 + $0xc0] sm:$0xff]
    %v2602 = vld [vmem:[#allocation7 + $0xc8] sm:$0xff]
    %v2603 = vld [vmem:[#allocation7 + $0xd0] sm:$0xff]
    %v2604 = vld [vmem:[#allocation7 + $0xd8] sm:$0xff]
    %v2605 = vld [vmem:[#allocation7 + $0xe0] sm:$0xff]
    %v2606 = vld [vmem:[#allocation7 + $0xe8] sm:$0xff]
    %v2607 = vld [vmem:[#allocation7 + $0xf0] sm:$0xff]
    %v2608 = vld [vmem:[#allocation7 + $0xf8] sm:$0xff]
    %v2609 = vld [vmem:[#allocation7 + $0x100] sm:$0xff]
    %v2610 = vld [vmem:[#allocation7 + $0x108] sm:$0xff]
    %v2611 = vld [vmem:[#allocation7 + $0x110] sm:$0xff]
    %v2612 = vld [vmem:[#allocation7 + $0x118] sm:$0xff]
    %v2613 = vld [vmem:[#allocation7 + $0x120] sm:$0xff]
    %v2614 = vld [vmem:[#allocation7 + $0x128] sm:$0xff]
    %v2615 = vld [vmem:[#allocation7 + $0x130] sm:$0xff]
    %v2616 = vld [vmem:[#allocation7 + $0x138] sm:$0xff]
    %v2617 = vld [vmem:[#allocation7 + $0x140] sm:$0xff]
    %v2618 = vld [vmem:[#allocation7 + $0x148] sm:$0xff]
    %v2619 = vld [vmem:[#allocation7 + $0x150] sm:$0xff]
    %v2620 = vld [vmem:[#allocation7 + $0x158] sm:$0xff]
    %v2621 = vld [vmem:[#allocation7 + $0x160] sm:$0xff]
    %v2622 = vld [vmem:[#allocation7 + $0x168] sm:$0xff]
    %v2623 = vld [vmem:[#allocation7 + $0x170] sm:$0xff]
    %v2624 = vld [vmem:[#allocation7 + $0x178] sm:$0xff]
    %v2625 = vld [vmem:[#allocation7 + $0x180] sm:$0xff]
    %v2626 = vld [vmem:[#allocation7 + $0x188] sm:$0xff]
    %v2627 = vld [vmem:[#allocation7 + $0x190] sm:$0xff]
    %v2628 = vld [vmem:[#allocation7 + $0x198] sm:$0xff]
    %v2629 = vld [vmem:[#allocation7 + $0x1a0] sm:$0xff]
    %v2630 = vld [vmem:[#allocation7 + $0x1a8] sm:$0xff]
    %v2631 = vld [vmem:[#allocation7 + $0x1b0] sm:$0xff]
    %v2632 = vld [vmem:[#allocation7 + $0x1b8] sm:$0xff]
    %v2633 = vld [vmem:[#allocation7 + $0x1c0] sm:$0xff]
    %v2634 = vld [vmem:[#allocation7 + $0x1c8] sm:$0xff]
    %v2635 = vld [vmem:[#allocation7 + $0x1d0] sm:$0xff]
    %v2636 = vld [vmem:[#allocation7 + $0x1d8] sm:$0xff]
    %v2637 = vld [vmem:[#allocation7 + $0x1e0] sm:$0xff]
    %v2638 = vld [vmem:[#allocation7 + $0x1e8] sm:$0xff]
    %v2639 = vld [vmem:[#allocation7 + $0x1f0] sm:$0xff]
    %v2640 = vld [vmem:[#allocation7 + $0x1f8] sm:$0xff]
    %v2641 = vld [vmem:[%s9] sm:$0x3]
    %v2643 = vlaneseq
    %v2644 = vshrl.u32 %v2643, 7
    %v2645 = vsub.s32 0, %v2644
    %v2646 = vrot.slane %v2641, %v2645
    %v2647 = vlaneseq
    %v2648 = vshrl.u32 %v2647, 7
    %v2649 = vsub.s32 1, %v2648
    %v2650 = vrot.slane %v2641, %v2649
    %v2717 = vunpack.c.l.b16 %v2577
    %v2718 = vunpack.c.h.b16 %v2577
    %v2719 = vunpack.c.l.b16 %v2578
    %v2720 = vunpack.c.h.b16 %v2578
    %v2721 = vunpack.c.l.b16 %v2579
    %v2722 = vunpack.c.h.b16 %v2579
    %v2723 = vunpack.c.l.b16 %v2580
    %v2724 = vunpack.c.h.b16 %v2580
    %v2725 = vunpack.c.l.b16 %v2581
    %v2726 = vunpack.c.h.b16 %v2581
    %v2727 = vunpack.c.l.b16 %v2582
    %v2728 = vunpack.c.h.b16 %v2582
    %v2729 = vunpack.c.l.b16 %v2583
    %v2730 = vunpack.c.h.b16 %v2583
    %v2731 = vunpack.c.l.b16 %v2584
    %v2732 = vunpack.c.h.b16 %v2584
    %v2733 = vunpack.c.l.b16 %v2585
    %v2734 = vunpack.c.h.b16 %v2585
    %v2735 = vunpack.c.l.b16 %v2586
    %v2736 = vunpack.c.h.b16 %v2586
    %v2737 = vunpack.c.l.b16 %v2587
    %v2738 = vunpack.c.h.b16 %v2587
    %v2739 = vunpack.c.l.b16 %v2588
    %v2740 = vunpack.c.h.b16 %v2588
    %v2741 = vunpack.c.l.b16 %v2589
    %v2742 = vunpack.c.h.b16 %v2589
    %v2743 = vunpack.c.l.b16 %v2590
    %v2744 = vunpack.c.h.b16 %v2590
    %v2745 = vunpack.c.l.b16 %v2591
    %v2746 = vunpack.c.h.b16 %v2591
    %v2747 = vunpack.c.l.b16 %v2592
    %v2748 = vunpack.c.h.b16 %v2592
    %v2749 = vunpack.c.l.b16 %v2593
    %v2750 = vunpack.c.h.b16 %v2593
    %v2751 = vunpack.c.l.b16 %v2594
    %v2752 = vunpack.c.h.b16 %v2594
    %v2753 = vunpack.c.l.b16 %v2595
    %v2754 = vunpack.c.h.b16 %v2595
    %v2755 = vunpack.c.l.b16 %v2596
    %v2756 = vunpack.c.h.b16 %v2596
    %v2757 = vunpack.c.l.b16 %v2597
    %v2758 = vunpack.c.h.b16 %v2597
    %v2759 = vunpack.c.l.b16 %v2598
    %v2760 = vunpack.c.h.b16 %v2598
    %v2761 = vunpack.c.l.b16 %v2599
    %v2762 = vunpack.c.h.b16 %v2599
    %v2763 = vunpack.c.l.b16 %v2600
    %v2764 = vunpack.c.h.b16 %v2600
    %v2765 = vunpack.c.l.b16 %v2601
    %v2766 = vunpack.c.h.b16 %v2601
    %v2767 = vunpack.c.l.b16 %v2602
    %v2768 = vunpack.c.h.b16 %v2602
    %v2769 = vunpack.c.l.b16 %v2603
    %v2770 = vunpack.c.h.b16 %v2603
    %v2771 = vunpack.c.l.b16 %v2604
    %v2772 = vunpack.c.h.b16 %v2604
    %v2773 = vunpack.c.l.b16 %v2605
    %v2774 = vunpack.c.h.b16 %v2605
    %v2775 = vunpack.c.l.b16 %v2606
    %v2776 = vunpack.c.h.b16 %v2606
    %v2777 = vunpack.c.l.b16 %v2607
    %v2778 = vunpack.c.h.b16 %v2607
    %v2779 = vunpack.c.l.b16 %v2608
    %v2780 = vunpack.c.h.b16 %v2608
    %v2781 = vunpack.c.l.b16 %v2609
    %v2782 = vunpack.c.h.b16 %v2609
    %v2783 = vunpack.c.l.b16 %v2610
    %v2784 = vunpack.c.h.b16 %v2610
    %v2785 = vunpack.c.l.b16 %v2611
    %v2786 = vunpack.c.h.b16 %v2611
    %v2787 = vunpack.c.l.b16 %v2612
    %v2788 = vunpack.c.h.b16 %v2612
    %v2789 = vunpack.c.l.b16 %v2613
    %v2790 = vunpack.c.h.b16 %v2613
    %v2791 = vunpack.c.l.b16 %v2614
    %v2792 = vunpack.c.h.b16 %v2614
    %v2793 = vunpack.c.l.b16 %v2615
    %v2794 = vunpack.c.h.b16 %v2615
    %v2795 = vunpack.c.l.b16 %v2616
    %v2796 = vunpack.c.h.b16 %v2616
    %v2797 = vunpack.c.l.b16 %v2617
    %v2798 = vunpack.c.h.b16 %v2617
    %v2799 = vunpack.c.l.b16 %v2618
    %v2800 = vunpack.c.h.b16 %v2618
    %v2801 = vunpack.c.l.b16 %v2619
    %v2802 = vunpack.c.h.b16 %v2619
    %v2803 = vunpack.c.l.b16 %v2620
    %v2804 = vunpack.c.h.b16 %v2620
    %v2805 = vunpack.c.l.b16 %v2621
    %v2806 = vunpack.c.h.b16 %v2621
    %v2807 = vunpack.c.l.b16 %v2622
    %v2808 = vunpack.c.h.b16 %v2622
    %v2809 = vunpack.c.l.b16 %v2623
    %v2810 = vunpack.c.h.b16 %v2623
    %v2811 = vunpack.c.l.b16 %v2624
    %v2812 = vunpack.c.h.b16 %v2624
    %v2813 = vunpack.c.l.b16 %v2625
    %v2814 = vunpack.c.h.b16 %v2625
    %v2815 = vunpack.c.l.b16 %v2626
    %v2816 = vunpack.c.h.b16 %v2626
    %v2817 = vunpack.c.l.b16 %v2627
    %v2818 = vunpack.c.h.b16 %v2627
    %v2819 = vunpack.c.l.b16 %v2628
    %v2820 = vunpack.c.h.b16 %v2628
    %v2821 = vunpack.c.l.b16 %v2629
    %v2822 = vunpack.c.h.b16 %v2629
    %v2823 = vunpack.c.l.b16 %v2630
    %v2824 = vunpack.c.h.b16 %v2630
    %v2825 = vunpack.c.l.b16 %v2631
    %v2826 = vunpack.c.h.b16 %v2631
    %v2827 = vunpack.c.l.b16 %v2632
    %v2828 = vunpack.c.h.b16 %v2632
    %v2829 = vunpack.c.l.b16 %v2633
    %v2830 = vunpack.c.h.b16 %v2633
    %v2831 = vunpack.c.l.b16 %v2634
    %v2832 = vunpack.c.h.b16 %v2634
    %v2833 = vunpack.c.l.b16 %v2635
    %v2834 = vunpack.c.h.b16 %v2635
    %v2835 = vunpack.c.l.b16 %v2636
    %v2836 = vunpack.c.h.b16 %v2636
    %v2837 = vunpack.c.l.b16 %v2637
    %v2838 = vunpack.c.h.b16 %v2637
    %v2839 = vunpack.c.l.b16 %v2638
    %v2840 = vunpack.c.h.b16 %v2638
    %v2841 = vunpack.c.l.b16 %v2639
    %v2842 = vunpack.c.h.b16 %v2639
    %v2843 = vunpack.c.l.b16 %v2640
    %v2844 = vunpack.c.h.b16 %v2640
    %v2845 = vpack.c.b16 %v2719, %v2717
    %v2846 = vpack.c.b16 %v2720, %v2718
    %v2847 = vpack.c.b16 %v2723, %v2721
    %v2848 = vpack.c.b16 %v2724, %v2722
    %v2849 = vpack.c.b16 %v2727, %v2725
    %v2850 = vpack.c.b16 %v2728, %v2726
    %v2851 = vpack.c.b16 %v2731, %v2729
    %v2852 = vpack.c.b16 %v2732, %v2730
    %v2853 = vpack.c.b16 %v2735, %v2733
    %v2854 = vpack.c.b16 %v2736, %v2734
    %v2855 = vpack.c.b16 %v2739, %v2737
    %v2856 = vpack.c.b16 %v2740, %v2738
    %v2857 = vpack.c.b16 %v2743, %v2741
    %v2858 = vpack.c.b16 %v2744, %v2742
    %v2859 = vpack.c.b16 %v2747, %v2745
    %v2860 = vpack.c.b16 %v2748, %v2746
    %v2861 = vpack.c.b16 %v2751, %v2749
    %v2862 = vpack.c.b16 %v2752, %v2750
    %v2863 = vpack.c.b16 %v2755, %v2753
    %v2864 = vpack.c.b16 %v2756, %v2754
    %v2865 = vpack.c.b16 %v2759, %v2757
    %v2866 = vpack.c.b16 %v2760, %v2758
    %v2867 = vpack.c.b16 %v2763, %v2761
    %v2868 = vpack.c.b16 %v2764, %v2762
    %v2869 = vpack.c.b16 %v2767, %v2765
    %v2870 = vpack.c.b16 %v2768, %v2766
    %v2871 = vpack.c.b16 %v2771, %v2769
    %v2872 = vpack.c.b16 %v2772, %v2770
    %v2873 = vpack.c.b16 %v2775, %v2773
    %v2874 = vpack.c.b16 %v2776, %v2774
    %v2875 = vpack.c.b16 %v2779, %v2777
    %v2876 = vpack.c.b16 %v2780, %v2778
    %v2877 = vpack.c.b16 %v2783, %v2781
    %v2878 = vpack.c.b16 %v2784, %v2782
    %v2879 = vpack.c.b16 %v2787, %v2785
    %v2880 = vpack.c.b16 %v2788, %v2786
    %v2881 = vpack.c.b16 %v2791, %v2789
    %v2882 = vpack.c.b16 %v2792, %v2790
    %v2883 = vpack.c.b16 %v2795, %v2793
    %v2884 = vpack.c.b16 %v2796, %v2794
    %v2885 = vpack.c.b16 %v2799, %v2797
    %v2886 = vpack.c.b16 %v2800, %v2798
    %v2887 = vpack.c.b16 %v2803, %v2801
    %v2888 = vpack.c.b16 %v2804, %v2802
    %v2889 = vpack.c.b16 %v2807, %v2805
    %v2890 = vpack.c.b16 %v2808, %v2806
    %v2891 = vpack.c.b16 %v2811, %v2809
    %v2892 = vpack.c.b16 %v2812, %v2810
    %v2893 = vpack.c.b16 %v2815, %v2813
    %v2894 = vpack.c.b16 %v2816, %v2814
    %v2895 = vpack.c.b16 %v2819, %v2817
    %v2896 = vpack.c.b16 %v2820, %v2818
    %v2897 = vpack.c.b16 %v2823, %v2821
    %v2898 = vpack.c.b16 %v2824, %v2822
    %v2899 = vpack.c.b16 %v2827, %v2825
    %v2900 = vpack.c.b16 %v2828, %v2826
    %v2901 = vpack.c.b16 %v2831, %v2829
    %v2902 = vpack.c.b16 %v2832, %v2830
    %v2903 = vpack.c.b16 %v2835, %v2833
    %v2904 = vpack.c.b16 %v2836, %v2834
    %v2905 = vpack.c.b16 %v2839, %v2837
    %v2906 = vpack.c.b16 %v2840, %v2838
    %v2907 = vpack.c.b16 %v2843, %v2841
    %v2908 = vpack.c.b16 %v2844, %v2842
    %2973 = vmatprep.subr.bf16.mxu0 %v2846
    %2974 = vmatpush1.bf16.msra.mxu0 %v2845
    %2975 = vmatprep.subr.bf16.mxu0 %v2848
    %2976 = vmatpush1.bf16.msra.mxu0 %v2847
    %2977 = vmatprep.subr.bf16.mxu0 %v2850
    %2978 = vmatpush1.bf16.msra.mxu0 %v2849
    %2979 = vmatprep.subr.bf16.mxu0 %v2852
    %2980 = vmatpush1.bf16.msra.mxu0 %v2851
    %2981 = vmatprep.subr.bf16.mxu0 %v2854
    %2982 = vmatpush1.bf16.msra.mxu0 %v2853
    %2983 = vmatprep.subr.bf16.mxu0 %v2856
    %2984 = vmatpush1.bf16.msra.mxu0 %v2855
    %2985 = vmatprep.subr.bf16.mxu0 %v2858
    %2986 = vmatpush1.bf16.msra.mxu0 %v2857
    %2987 = vmatprep.subr.bf16.mxu0 %v2860
    %2988 = vmatpush1.bf16.msra.mxu0 %v2859
    %2989 = vmatprep.subr.bf16.mxu0 %v2862
    %2990 = vmatpush1.bf16.msra.mxu0 %v2861
    %2991 = vmatprep.subr.bf16.mxu0 %v2864
    %2992 = vmatpush1.bf16.msra.mxu0 %v2863
    %2993 = vmatprep.subr.bf16.mxu0 %v2866
    %2994 = vmatpush1.bf16.msra.mxu0 %v2865
    %2995 = vmatprep.subr.bf16.mxu0 %v2868
    %2996 = vmatpush1.bf16.msra.mxu0 %v2867
    %2997 = vmatprep.subr.bf16.mxu0 %v2870
    %2998 = vmatpush1.bf16.msra.mxu0 %v2869
    %2999 = vmatprep.subr.bf16.mxu0 %v2872
    %3000 = vmatpush1.bf16.msra.mxu0 %v2871
    %3001 = vmatprep.subr.bf16.mxu0 %v2874
    %3002 = vmatpush1.bf16.msra.mxu0 %v2873
    %3003 = vmatprep.subr.bf16.mxu0 %v2876
    %3004 = vmatpush1.bf16.msra.mxu0 %v2875
    %3005 = vmatprep.mubr.bf16.mxu0 %v2514
    %3006 = vmatmul.mubr.bf16.gmra.mrb[0].mxu0 %v2513
    %v3007 = vpop.f32.mrb[0].mxu0
    %v3008 = vadd.f32 %v2646, %v3007
    %v3009 = vpop.f32.mrb[0].mxu0
    %v3010 = vadd.f32 %v2650, %v3009
    %v3011 = vpop.f32.mrb[0].mxu0
    %v3012 = vadd.f32 %v2646, %v3011
    %v3013 = vpop.f32.mrb[0].mxu0
    %v3014 = vadd.f32 %v2650, %v3013
    %3015 = vmatprep.mubr.bf16.mxu0 %v2518
    %3016 = vmatmul.mubr.bf16.gmra.mrb[0].mxu0 %v2517
    %v3017 = vpop.f32.mrb[0].mxu0
    %v3018 = vadd.f32 %v2646, %v3017
    %v3019 = vpop.f32.mrb[0].mxu0
    %v3020 = vadd.f32 %v2650, %v3019
    %v3021 = vpop.f32.mrb[0].mxu0
    %v3022 = vadd.f32 %v2646, %v3021
    %v3023 = vpop.f32.mrb[0].mxu0
    %v3024 = vadd.f32 %v2650, %v3023
    %3025 = vmatprep.mubr.bf16.mxu0 %v2522
    %3026 = vmatmul.mubr.bf16.gmra.mrb[0].mxu0 %v2521
    %v3027 = vpop.f32.mrb[0].mxu0
    %v3028 = vadd.f32 %v2646, %v3027
    %v3029 = vpop.f32.mrb[0].mxu0
    %v3030 = vadd.f32 %v2650, %v3029
    %v3031 = vpop.f32.mrb[0].mxu0
    %v3032 = vadd.f32 %v2646, %v3031
    %v3033 = vpop.f32.mrb[0].mxu0
    %v3034 = vadd.f32 %v2650, %v3033
    %3035 = vmatprep.mubr.bf16.mxu0 %v2526
    %3036 = vmatmul.mubr.bf16.gmra.mrb[0].mxu0 %v2525
    %v3037 = vpop.f32.mrb[0].mxu0
    %v3038 = vadd.f32 %v2646, %v3037
    %v3039 = vpop.f32.mrb[0].mxu0
    %v3040 = vadd.f32 %v2650, %v3039
    %v3041 = vpop.f32.mrb[0].mxu0
    %v3042 = vadd.f32 %v2646, %v3041
    %v3043 = vpop.f32.mrb[0].mxu0
    %v3044 = vadd.f32 %v2650, %v3043
    %3045 = vmatprep.mubr.bf16.mxu0 %v2530
    %3046 = vmatmul.mubr.bf16.gmra.mrb[0].mxu0 %v2529
    %v3047 = vpop.f32.mrb[0].mxu0
    %v3048 = vadd.f32 %v2646, %v3047
    %v3049 = vpop.f32.mrb[0].mxu0
    %v3050 = vadd.f32 %v2650, %v3049
    %v3051 = vpop.f32.mrb[0].mxu0
    %v3052 = vadd.f32 %v2646, %v3051
    %v3053 = vpop.f32.mrb[0].mxu0
    %v3054 = vadd.f32 %v2650, %v3053
    %3055 = vmatprep.mubr.bf16.mxu0 %v2534
    %3056 = vmatmul.mubr.bf16.gmra.mrb[0].mxu0 %v2533
    %v3057 = vpop.f32.mrb[0].mxu0
    %v3058 = vadd.f32 %v2646, %v3057
    %v3059 = vpop.f32.mrb[0].mxu0
    %v3060 = vadd.f32 %v2650, %v3059
    %v3061 = vpop.f32.mrb[0].mxu0
    %v3062 = vadd.f32 %v2646, %v3061
    %v3063 = vpop.f32.mrb[0].mxu0
    %v3064 = vadd.f32 %v2650, %v3063
    %3065 = vmatprep.mubr.bf16.mxu0 %v2538
    %3066 = vmatmul.mubr.bf16.gmra.mrb[0].mxu0 %v2537
    %v3067 = vpop.f32.mrb[0].mxu0
    %v3068 = vadd.f32 %v2646, %v3067
    %v3069 = vpop.f32.mrb[0].mxu0
    %v3070 = vadd.f32 %v2650, %v3069
    %v3071 = vpop.f32.mrb[0].mxu0
    %v3072 = vadd.f32 %v2646, %v3071
    %v3073 = vpop.f32.mrb[0].mxu0
    %v3074 = vadd.f32 %v2650, %v3073
    %3075 = vmatprep.mubr.bf16.mxu0 %v2542
    %3076 = vmatmul.mubr.bf16.gmra.mrb[0].mxu0 %v2541
    %v3077 = vpop.f32.mrb[0].mxu0
    %v3078 = vadd.f32 %v2646, %v3077
    %v3079 = vpop.f32.mrb[0].mxu0
    %v3080 = vadd.f32 %v2650, %v3079
    %v3081 = vpop.f32.mrb[0].mxu0
    %v3082 = vadd.f32 %v2646, %v3081
    %v3083 = vpop.f32.mrb[0].mxu0
    %v3084 = vadd.f32 %v2650, %v3083
    %3085 = vmatprep.mubr.bf16.mxu0 %v2546
    %3086 = vmatmul.mubr.bf16.gmra.mrb[0].mxu0 %v2545
    %v3087 = vpop.f32.mrb[0].mxu0
    %v3088 = vadd.f32 %v2646, %v3087
    %v3089 = vpop.f32.mrb[0].mxu0
    %v3090 = vadd.f32 %v2650, %v3089
    %v3091 = vpop.f32.mrb[0].mxu0
    %v3092 = vadd.f32 %v2646, %v3091
    %v3093 = vpop.f32.mrb[0].mxu0
    %v3094 = vadd.f32 %v2650, %v3093
    %3095 = vmatprep.mubr.bf16.mxu0 %v2550
    %3096 = vmatmul.mubr.bf16.gmra.mrb[0].mxu0 %v2549
    %v3097 = vpop.f32.mrb[0].mxu0
    %v3098 = vadd.f32 %v2646, %v3097
    %v3099 = vpop.f32.mrb[0].mxu0
    %v3100 = vadd.f32 %v2650, %v3099
    %v3101 = vpop.f32.mrb[0].mxu0
    %v3102 = vadd.f32 %v2646, %v3101
    %v3103 = vpop.f32.mrb[0].mxu0
    %v3104 = vadd.f32 %v2650, %v3103
    %3105 = vmatprep.mubr.bf16.mxu0 %v2554
    %3106 = vmatmul.mubr.bf16.gmra.mrb[0].mxu0 %v2553
    %v3107 = vpop.f32.mrb[0].mxu0
    %v3108 = vadd.f32 %v2646, %v3107
    %v3109 = vpop.f32.mrb[0].mxu0
    %v3110 = vadd.f32 %v2650, %v3109
    %v3111 = vpop.f32.mrb[0].mxu0
    %v3112 = vadd.f32 %v2646, %v3111
    %v3113 = vpop.f32.mrb[0].mxu0
    %v3114 = vadd.f32 %v2650, %v3113
    %3115 = vmatprep.mubr.bf16.mxu0 %v2558
    %3116 = vmatmul.mubr.bf16.gmra.mrb[0].mxu0 %v2557
    %v3117 = vpop.f32.mrb[0].mxu0
    %v3118 = vadd.f32 %v2646, %v3117
    %v3119 = vpop.f32.mrb[0].mxu0
    %v3120 = vadd.f32 %v2650, %v3119
    %v3121 = vpop.f32.mrb[0].mxu0
    %v3122 = vadd.f32 %v2646, %v3121
    %v3123 = vpop.f32.mrb[0].mxu0
    %v3124 = vadd.f32 %v2650, %v3123
    %3125 = vmatprep.mubr.bf16.mxu0 %v2562
    %3126 = vmatmul.mubr.bf16.gmra.mrb[0].mxu0 %v2561
    %v3127 = vpop.f32.mrb[0].mxu0
    %v3128 = vadd.f32 %v2646, %v3127
    %v3129 = vpop.f32.mrb[0].mxu0
    %v3130 = vadd.f32 %v2650, %v3129
    %v3131 = vpop.f32.mrb[0].mxu0
    %v3132 = vadd.f32 %v2646, %v3131
    %v3133 = vpop.f32.mrb[0].mxu0
    %v3134 = vadd.f32 %v2650, %v3133
    %3135 = vmatprep.mubr.bf16.mxu0 %v2566
    %3136 = vmatmul.mubr.bf16.gmra.mrb[0].mxu0 %v2565
    %v3137 = vpop.f32.mrb[0].mxu0
    %v3138 = vadd.f32 %v2646, %v3137
    %v3139 = vpop.f32.mrb[0].mxu0
    %v3140 = vadd.f32 %v2650, %v3139
    %v3141 = vpop.f32.mrb[0].mxu0
    %v3142 = vadd.f32 %v2646, %v3141
    %v3143 = vpop.f32.mrb[0].mxu0
    %v3144 = vadd.f32 %v2650, %v3143
    %3145 = vmatprep.mubr.bf16.mxu0 %v2570
    %3146 = vmatmul.mubr.bf16.gmra.mrb[0].mxu0 %v2569
    %v3147 = vpop.f32.mrb[0].mxu0
    %v3148 = vadd.f32 %v2646, %v3147
    %v3149 = vpop.f32.mrb[0].mxu0
    %v3150 = vadd.f32 %v2650, %v3149
    %v3151 = vpop.f32.mrb[0].mxu0
    %v3152 = vadd.f32 %v2646, %v3151
    %v3153 = vpop.f32.mrb[0].mxu0
    %v3154 = vadd.f32 %v2650, %v3153
    %3155 = vmatprep.mubr.bf16.mxu0 %v2574
    %3156 = vmatmul.mubr.bf16.gmra.mrb[0].mxu0 %v2573
    %v3157 = vpop.f32.mrb[0].mxu0
    %v3158 = vadd.f32 %v2646, %v3157
    %v3159 = vpop.f32.mrb[0].mxu0
    %v3160 = vadd.f32 %v2650, %v3159
    %v3161 = vpop.f32.mrb[0].mxu0
    %v3162 = vadd.f32 %v2646, %v3161
    %v3163 = vpop.f32.mrb[0].mxu0
    %v3164 = vadd.f32 %v2650, %v3163
    %3165 = vdwg.mxu0
    %3166 = vmatprep.subr.bf16.mxu0 %v2878
    %3167 = vmatpush1.bf16.msra.mxu0 %v2877
    %3168 = vmatprep.subr.bf16.mxu0 %v2880
    %3169 = vmatpush1.bf16.msra.mxu0 %v2879
    %3170 = vmatprep.subr.bf16.mxu0 %v2882
    %3171 = vmatpush1.bf16.msra.mxu0 %v2881
    %3172 = vmatprep.subr.bf16.mxu0 %v2884
    %3173 = vmatpush1.bf16.msra.mxu0 %v2883
    %3174 = vmatprep.subr.bf16.mxu0 %v2886
    %3175 = vmatpush1.bf16.msra.mxu0 %v2885
    %3176 = vmatprep.subr.bf16.mxu0 %v2888
    %3177 = vmatpush1.bf16.msra.mxu0 %v2887
    %3178 = vmatprep.subr.bf16.mxu0 %v2890
    %3179 = vmatpush1.bf16.msra.mxu0 %v2889
    %3180 = vmatprep.subr.bf16.mxu0 %v2892
    %3181 = vmatpush1.bf16.msra.mxu0 %v2891
    %3182 = vmatprep.subr.bf16.mxu0 %v2894
    %3183 = vmatpush1.bf16.msra.mxu0 %v2893
    %3184 = vmatprep.subr.bf16.mxu0 %v2896
    %3185 = vmatpush1.bf16.msra.mxu0 %v2895
    %3186 = vmatprep.subr.bf16.mxu0 %v2898
    %3187 = vmatpush1.bf16.msra.mxu0 %v2897
    %3188 = vmatprep.subr.bf16.mxu0 %v2900
    %3189 = vmatpush1.bf16.msra.mxu0 %v2899
    %3190 = vmatprep.subr.bf16.mxu0 %v2902
    %3191 = vmatpush1.bf16.msra.mxu0 %v2901
    %3192 = vmatprep.subr.bf16.mxu0 %v2904
    %3193 = vmatpush1.bf16.msra.mxu0 %v2903
    %3194 = vmatprep.subr.bf16.mxu0 %v2906
    %3195 = vmatpush1.bf16.msra.mxu0 %v2905
    %3196 = vmatprep.subr.bf16.mxu0 %v2908
    %3197 = vmatpush1.bf16.msra.mxu0 %v2907
    %3198 = vmatprep.mubr.bf16.mxu0 %v2516
    %3199 = vmatmul.mubr.bf16.gmra.mrb[0].mxu0 %v2515
    %v3200 = vpop.f32.mrb[0].mxu0
    %v3201 = vadd.f32 %v3008, %v3200
    %v3202 = vpop.f32.mrb[0].mxu0
    %v3203 = vadd.f32 %v3010, %v3202
    %v3204 = vpop.f32.mrb[0].mxu0
    %v3205 = vadd.f32 %v3012, %v3204
    %v3206 = vpop.f32.mrb[0].mxu0
    %v3207 = vadd.f32 %v3014, %v3206
    %3208 = vmatprep.mubr.bf16.mxu0 %v2520
    %3209 = vmatmul.mubr.bf16.gmra.mrb[0].mxu0 %v2519
    %v3210 = vpop.f32.mrb[0].mxu0
    %v3211 = vadd.f32 %v3018, %v3210
    %v3212 = vpop.f32.mrb[0].mxu0
    %v3213 = vadd.f32 %v3020, %v3212
    %v3214 = vpop.f32.mrb[0].mxu0
    %v3215 = vadd.f32 %v3022, %v3214
    %v3216 = vpop.f32.mrb[0].mxu0
    %v3217 = vadd.f32 %v3024, %v3216
    %3218 = vmatprep.mubr.bf16.mxu0 %v2524
    %3219 = vmatmul.mubr.bf16.gmra.mrb[0].mxu0 %v2523
    %v3220 = vpop.f32.mrb[0].mxu0
    %v3221 = vadd.f32 %v3028, %v3220
    %v3222 = vpop.f32.mrb[0].mxu0
    %v3223 = vadd.f32 %v3030, %v3222
    %v3224 = vpop.f32.mrb[0].mxu0
    %v3225 = vadd.f32 %v3032, %v3224
    %v3226 = vpop.f32.mrb[0].mxu0
    %v3227 = vadd.f32 %v3034, %v3226
    %3228 = vmatprep.mubr.bf16.mxu0 %v2528
    %3229 = vmatmul.mubr.bf16.gmra.mrb[0].mxu0 %v2527
    %v3230 = vpop.f32.mrb[0].mxu0
    %v3231 = vadd.f32 %v3038, %v3230
    %v3232 = vpop.f32.mrb[0].mxu0
    %v3233 = vadd.f32 %v3040, %v3232
    %v3234 = vpop.f32.mrb[0].mxu0
    %v3235 = vadd.f32 %v3042, %v3234
    %v3236 = vpop.f32.mrb[0].mxu0
    %v3237 = vadd.f32 %v3044, %v3236
    %3238 = vmatprep.mubr.bf16.mxu0 %v2532
    %3239 = vmatmul.mubr.bf16.gmra.mrb[0].mxu0 %v2531
    %v3240 = vpop.f32.mrb[0].mxu0
    %v3241 = vadd.f32 %v3048, %v3240
    %v3242 = vpop.f32.mrb[0].mxu0
    %v3243 = vadd.f32 %v3050, %v3242
    %v3244 = vpop.f32.mrb[0].mxu0
    %v3245 = vadd.f32 %v3052, %v3244
    %v3246 = vpop.f32.mrb[0].mxu0
    %v3247 = vadd.f32 %v3054, %v3246
    %3248 = vmatprep.mubr.bf16.mxu0 %v2536
    %3249 = vmatmul.mubr.bf16.gmra.mrb[0].mxu0 %v2535
    %v3250 = vpop.f32.mrb[0].mxu0
    %v3251 = vadd.f32 %v3058, %v3250
    %v3252 = vpop.f32.mrb[0].mxu0
    %v3253 = vadd.f32 %v3060, %v3252
    %v3254 = vpop.f32.mrb[0].mxu0
    %v3255 = vadd.f32 %v3062, %v3254
    %v3256 = vpop.f32.mrb[0].mxu0
    %v3257 = vadd.f32 %v3064, %v3256
    %3258 = vmatprep.mubr.bf16.mxu0 %v2540
    %3259 = vmatmul.mubr.bf16.gmra.mrb[0].mxu0 %v2539
    %v3260 = vpop.f32.mrb[0].mxu0
    %v3261 = vadd.f32 %v3068, %v3260
    %v3262 = vpop.f32.mrb[0].mxu0
    %v3263 = vadd.f32 %v3070, %v3262
    %v3264 = vpop.f32.mrb[0].mxu0
    %v3265 = vadd.f32 %v3072, %v3264
    %v3266 = vpop.f32.mrb[0].mxu0
    %v3267 = vadd.f32 %v3074, %v3266
    %3268 = vmatprep.mubr.bf16.mxu0 %v2544
    %3269 = vmatmul.mubr.bf16.gmra.mrb[0].mxu0 %v2543
    %v3270 = vpop.f32.mrb[0].mxu0
    %v3271 = vadd.f32 %v3078, %v3270
    %v3272 = vpop.f32.mrb[0].mxu0
    %v3273 = vadd.f32 %v3080, %v3272
    %v3274 = vpop.f32.mrb[0].mxu0
    %v3275 = vadd.f32 %v3082, %v3274
    %v3276 = vpop.f32.mrb[0].mxu0
    %v3277 = vadd.f32 %v3084, %v3276
    %3278 = vmatprep.mubr.bf16.mxu0 %v2548
    %3279 = vmatmul.mubr.bf16.gmra.mrb[0].mxu0 %v2547
    %v3280 = vpop.f32.mrb[0].mxu0
    %v3281 = vadd.f32 %v3088, %v3280
    %v3282 = vpop.f32.mrb[0].mxu0
    %v3283 = vadd.f32 %v3090, %v3282
    %v3284 = vpop.f32.mrb[0].mxu0
    %v3285 = vadd.f32 %v3092, %v3284
    %v3286 = vpop.f32.mrb[0].mxu0
    %v3287 = vadd.f32 %v3094, %v3286
    %3288 = vmatprep.mubr.bf16.mxu0 %v2552
    %3289 = vmatmul.mubr.bf16.gmra.mrb[0].mxu0 %v2551
    %v3290 = vpop.f32.mrb[0].mxu0
    %v3291 = vadd.f32 %v3098, %v3290
    %v3292 = vpop.f32.mrb[0].mxu0
    %v3293 = vadd.f32 %v3100, %v3292
    %v3294 = vpop.f32.mrb[0].mxu0
    %v3295 = vadd.f32 %v3102, %v3294
    %v3296 = vpop.f32.mrb[0].mxu0
    %v3297 = vadd.f32 %v3104, %v3296
    %3298 = vmatprep.mubr.bf16.mxu0 %v2556
    %3299 = vmatmul.mubr.bf16.gmra.mrb[0].mxu0 %v2555
    %v3300 = vpop.f32.mrb[0].mxu0
    %v3301 = vadd.f32 %v3108, %v3300
    %v3302 = vpop.f32.mrb[0].mxu0
    %v3303 = vadd.f32 %v3110, %v3302
    %v3304 = vpop.f32.mrb[0].mxu0
    %v3305 = vadd.f32 %v3112, %v3304
    %v3306 = vpop.f32.mrb[0].mxu0
    %v3307 = vadd.f32 %v3114, %v3306
    %3308 = vmatprep.mubr.bf16.mxu0 %v2560
    %3309 = vmatmul.mubr.bf16.gmra.mrb[0].mxu0 %v2559
    %v3310 = vpop.f32.mrb[0].mxu0
    %v3311 = vadd.f32 %v3118, %v3310
    %v3312 = vpop.f32.mrb[0].mxu0
    %v3313 = vadd.f32 %v3120, %v3312
    %v3314 = vpop.f32.mrb[0].mxu0
    %v3315 = vadd.f32 %v3122, %v3314
    %v3316 = vpop.f32.mrb[0].mxu0
    %v3317 = vadd.f32 %v3124, %v3316
    %3318 = vmatprep.mubr.bf16.mxu0 %v2564
    %3319 = vmatmul.mubr.bf16.gmra.mrb[0].mxu0 %v2563
    %v3320 = vpop.f32.mrb[0].mxu0
    %v3321 = vadd.f32 %v3128, %v3320
    %v3322 = vpop.f32.mrb[0].mxu0
    %v3323 = vadd.f32 %v3130, %v3322
    %v3324 = vpop.f32.mrb[0].mxu0
    %v3325 = vadd.f32 %v3132, %v3324
    %v3326 = vpop.f32.mrb[0].mxu0
    %v3327 = vadd.f32 %v3134, %v3326
    %3328 = vmatprep.mubr.bf16.mxu0 %v2568
    %3329 = vmatmul.mubr.bf16.gmra.mrb[0].mxu0 %v2567
    %v3330 = vpop.f32.mrb[0].mxu0
    %v3331 = vadd.f32 %v3138, %v3330
    %v3332 = vpop.f32.mrb[0].mxu0
    %v3333 = vadd.f32 %v3140, %v3332
    %v3334 = vpop.f32.mrb[0].mxu0
    %v3335 = vadd.f32 %v3142, %v3334
    %v3336 = vpop.f32.mrb[0].mxu0
    %v3337 = vadd.f32 %v3144, %v3336
    %3338 = vmatprep.mubr.bf16.mxu0 %v2572
    %3339 = vmatmul.mubr.bf16.gmra.mrb[0].mxu0 %v2571
    %v3340 = vpop.f32.mrb[0].mxu0
    %v3341 = vadd.f32 %v3148, %v3340
    %v3342 = vpop.f32.mrb[0].mxu0
    %v3343 = vadd.f32 %v3150, %v3342
    %v3344 = vpop.f32.mrb[0].mxu0
    %v3345 = vadd.f32 %v3152, %v3344
    %v3346 = vpop.f32.mrb[0].mxu0
    %v3347 = vadd.f32 %v3154, %v3346
    %3348 = vmatprep.mubr.bf16.mxu0 %v2576
    %3349 = vmatmul.mubr.bf16.gmra.mrb[0].mxu0 %v2575
    %v3350 = vpop.f32.mrb[0].mxu0
    %v3351 = vadd.f32 %v3158, %v3350
    %v3352 = vpop.f32.mrb[0].mxu0
    %v3353 = vadd.f32 %v3160, %v3352
    %v3354 = vpop.f32.mrb[0].mxu0
    %v3355 = vadd.f32 %v3162, %v3354
    %v3356 = vpop.f32.mrb[0].mxu0
    %v3357 = vadd.f32 %v3164, %v3356
    %3358 = vdwg.mxu0
    %v3359 = vmax.f32 %v3201, %v3205
    %v3360 = vmax.f32 %v3359, %v3211
    %v3361 = vmax.f32 %v3360, %v3215
    %v3362 = vmax.f32 %v3361, %v3221
    %v3363 = vmax.f32 %v3362, %v3225
    %v3364 = vmax.f32 %v3363, %v3231
    %v3365 = vmax.f32 %v3364, %v3235
    %v3366 = vmax.f32 %v3365, %v3241
    %v3367 = vmax.f32 %v3366, %v3245
    %v3368 = vmax.f32 %v3367, %v3251
    %v3369 = vmax.f32 %v3368, %v3255
    %v3370 = vmax.f32 %v3369, %v3261
    %v3371 = vmax.f32 %v3370, %v3265
    %v3372 = vmax.f32 %v3371, %v3271
    %v3373 = vmax.f32 %v3372, %v3275
    %v3374 = vrot.slane %v3373, 4
    %v3375 = vmax.f32 %v3373, %v3374
    %v3376 = vrot.slane %v3375, 2
    %v3377 = vmax.f32 %v3375, %v3376
    %v3378 = vrot.slane %v3377, 1
    %v3379 = vmax.f32 %v3377, %v3378
    %v3380 = vmax.f32 %v3203, %v3207
    %v3381 = vmax.f32 %v3380, %v3213
    %v3382 = vmax.f32 %v3381, %v3217
    %v3383 = vmax.f32 %v3382, %v3223
    %v3384 = vmax.f32 %v3383, %v3227
    %v3385 = vmax.f32 %v3384, %v3233
    %v3386 = vmax.f32 %v3385, %v3237
    %v3387 = vmax.f32 %v3386, %v3243
    %v3388 = vmax.f32 %v3387, %v3247
    %v3389 = vmax.f32 %v3388, %v3253
    %v3390 = vmax.f32 %v3389, %v3257
    %v3391 = vmax.f32 %v3390, %v3263
    %v3392 = vmax.f32 %v3391, %v3267
    %v3393 = vmax.f32 %v3392, %v3273
    %v3394 = vmax.f32 %v3393, %v3277
    %v3395 = vrot.slane %v3394, 4
    %v3396 = vmax.f32 %v3394, %v3395
    %v3397 = vrot.slane %v3396, 2
    %v3398 = vmax.f32 %v3396, %v3397
    %v3399 = vrot.slane %v3398, 1
    %v3400 = vmax.f32 %v3398, %v3399
    %v3401 = vmax.f32 %v3281, %v3285
    %v3402 = vmax.f32 %v3401, %v3291
    %v3403 = vmax.f32 %v3402, %v3295
    %v3404 = vmax.f32 %v3403, %v3301
    %v3405 = vmax.f32 %v3404, %v3305
    %v3406 = vmax.f32 %v3405, %v3311
    %v3407 = vmax.f32 %v3406, %v3315
    %v3408 = vmax.f32 %v3407, %v3321
    %v3409 = vmax.f32 %v3408, %v3325
    %v3410 = vmax.f32 %v3409, %v3331
    %v3411 = vmax.f32 %v3410, %v3335
    %v3412 = vmax.f32 %v3411, %v3341
    %v3413 = vmax.f32 %v3412, %v3345
    %v3414 = vmax.f32 %v3413, %v3351
    %v3415 = vmax.f32 %v3414, %v3355
    %v3416 = vrot.slane %v3415, 4
    %v3417 = vmax.f32 %v3415, %v3416
    %v3418 = vrot.slane %v3417, 2
    %v3419 = vmax.f32 %v3417, %v3418
    %v3420 = vrot.slane %v3419, 1
    %v3421 = vmax.f32 %v3419, %v3420
    %v3422 = vmax.f32 %v3283, %v3287
    %v3423 = vmax.f32 %v3422, %v3293
    %v3424 = vmax.f32 %v3423, %v3297
    %v3425 = vmax.f32 %v3424, %v3303
    %v3426 = vmax.f32 %v3425, %v3307
    %v3427 = vmax.f32 %v3426, %v3313
    %v3428 = vmax.f32 %v3427, %v3317
    %v3429 = vmax.f32 %v3428, %v3323
    %v3430 = vmax.f32 %v3429, %v3327
    %v3431 = vmax.f32 %v3430, %v3333
    %v3432 = vmax.f32 %v3431, %v3337
    %v3433 = vmax.f32 %v3432, %v3343
    %v3434 = vmax.f32 %v3433, %v3347
    %v3435 = vmax.f32 %v3434, %v3353
    %v3436 = vmax.f32 %v3435, %v3357
    %v3437 = vrot.slane %v3436, 4
    %v3438 = vmax.f32 %v3436, %v3437
    %v3439 = vrot.slane %v3438, 2
    %v3440 = vmax.f32 %v3438, %v3439
    %v3441 = vrot.slane %v3440, 1
    %v3442 = vmax.f32 %v3440, %v3441
    %v3447 = vcombine.low %v3379, %v3400
    %v3449 = vunpack.c.l.s4 1983009808
    %v3450 = vunpack.c.0.s8 %v3449
    %v3451 = vlaneseq
    %v3452 = vshrl.u32 %v3451, 7
    %v3453 = vsub.s32 %v3450, %v3452
    %v3454 = vrot.slane %v3447, %v3453
    %v3455 = vcombine.low %v3421, %v3442
    %v3457 = vunpack.c.l.s4 1983009808
    %v3458 = vunpack.c.0.s8 %v3457
    %v3459 = vlaneseq
    %v3460 = vshrl.u32 %v3459, 7
    %v3461 = vsub.s32 %v3458, %v3460
    %v3462 = vrot.slane %v3455, %v3461
    %vm3463 = vcmask 1044484
    %v3464 = vsel %vm3463, %v3454, %v3454
    %vm3465 = vcmask 1046534
    %v3466 = vsel %vm3465, %v3454, %v3464
    %v3467 = vrot.slane %v3462, 7
    %v3468 = vsel %vm970, %v3467, %v3466
    %vm3469 = vcmask 1043459
    %v3470 = vsel %vm3469, %v3467, %v3468
    %vm3471 = vcmask 1045509
    %v3472 = vsel %vm3471, %v3467, %v3470
    %vm3473 = vcmask 1047559
    %v3474 = vsel %vm3473, %v3467, %v3472
    %3476 = vst [vmem:[#allocation10] sm:$0xf] %v3474
    %v3477 = vpack.c.bf16 %v3379, %v3379
    %v3478 = vpack.c.bf16 %v3400, %v3400
    %v3479 = vpack.c.bf16 %v3421, %v3421
    %v3480 = vpack.c.bf16 %v3442, %v3442
    %v3481 = vld [vmem:[#allocation8] sm:$0xff]
    %v3482 = vld [vmem:[#allocation8 + $0x8] sm:$0xff]
    %v3483 = vld [vmem:[#allocation8 + $0x10] sm:$0xff]
    %v3484 = vld [vmem:[#allocation8 + $0x18] sm:$0xff]
    %v3485 = vld [vmem:[#allocation8 + $0x20] sm:$0xff]
    %v3486 = vld [vmem:[#allocation8 + $0x28] sm:$0xff]
    %v3487 = vld [vmem:[#allocation8 + $0x30] sm:$0xff]
    %v3488 = vld [vmem:[#allocation8 + $0x38] sm:$0xff]
    %v3489 = vld [vmem:[#allocation8 + $0x40] sm:$0xff]
    %v3490 = vld [vmem:[#allocation8 + $0x48] sm:$0xff]
    %v3491 = vld [vmem:[#allocation8 + $0x50] sm:$0xff]
    %v3492 = vld [vmem:[#allocation8 + $0x58] sm:$0xff]
    %v3493 = vld [vmem:[#allocation8 + $0x60] sm:$0xff]
    %v3494 = vld [vmem:[#allocation8 + $0x68] sm:$0xff]
    %v3495 = vld [vmem:[#allocation8 + $0x70] sm:$0xff]
    %v3496 = vld [vmem:[#allocation8 + $0x78] sm:$0xff]
    %v3497 = vld [vmem:[#allocation8 + $0x80] sm:$0xff]
    %v3498 = vld [vmem:[#allocation8 + $0x88] sm:$0xff]
    %v3499 = vld [vmem:[#allocation8 + $0x90] sm:$0xff]
    %v3500 = vld [vmem:[#allocation8 + $0x98] sm:$0xff]
    %v3501 = vld [vmem:[#allocation8 + $0xa0] sm:$0xff]
    %v3502 = vld [vmem:[#allocation8 + $0xa8] sm:$0xff]
    %v3503 = vld [vmem:[#allocation8 + $0xb0] sm:$0xff]
    %v3504 = vld [vmem:[#allocation8 + $0xb8] sm:$0xff]
    %v3505 = vld [vmem:[#allocation8 + $0xc0] sm:$0xff]
    %v3506 = vld [vmem:[#allocation8 + $0xc8] sm:$0xff]
    %v3507 = vld [vmem:[#allocation8 + $0xd0] sm:$0xff]
    %v3508 = vld [vmem:[#allocation8 + $0xd8] sm:$0xff]
    %v3509 = vld [vmem:[#allocation8 + $0xe0] sm:$0xff]
    %v3510 = vld [vmem:[#allocation8 + $0xe8] sm:$0xff]
    %v3511 = vld [vmem:[#allocation8 + $0xf0] sm:$0xff]
    %v3512 = vld [vmem:[#allocation8 + $0xf8] sm:$0xff]
    %v3513 = vld [vmem:[%s11] sm:$0x3]
    %v3515 = vlaneseq
    %v3516 = vshrl.u32 %v3515, 7
    %v3517 = vsub.s32 0, %v3516
    %v3518 = vrot.slane %v3513, %v3517
    %v3519 = vlaneseq
    %v3520 = vshrl.u32 %v3519, 7
    %v3521 = vsub.s32 1, %v3520
    %v3522 = vrot.slane %v3513, %v3521
    %v3529 = vunpack.c.l.b16 %v3477
    %v3530 = vunpack.c.l.b16 %v3478
    %v3531 = vunpack.c.l.b16 %v3479
    %v3532 = vunpack.c.l.b16 %v3480
    %v3533 = vsel %vm970, %v3531, %v3529
    %v3534 = vsel %vm970, %v3532, %v3530
    %v3535 = vpack.c.b16 %v3533, %v3533
    %v3536 = vpack.c.b16 %v3534, %v3534
    %v3571 = vunpack.c.l.b16 %v3481
    %v3572 = vunpack.c.h.b16 %v3481
    %v3573 = vunpack.c.l.b16 %v3482
    %v3574 = vunpack.c.h.b16 %v3482
    %v3575 = vunpack.c.l.b16 %v3483
    %v3576 = vunpack.c.h.b16 %v3483
    %v3577 = vunpack.c.l.b16 %v3484
    %v3578 = vunpack.c.h.b16 %v3484
    %v3579 = vunpack.c.l.b16 %v3485
    %v3580 = vunpack.c.h.b16 %v3485
    %v3581 = vunpack.c.l.b16 %v3486
    %v3582 = vunpack.c.h.b16 %v3486
    %v3583 = vunpack.c.l.b16 %v3487
    %v3584 = vunpack.c.h.b16 %v3487
    %v3585 = vunpack.c.l.b16 %v3488
    %v3586 = vunpack.c.h.b16 %v3488
    %v3587 = vunpack.c.l.b16 %v3489
    %v3588 = vunpack.c.h.b16 %v3489
    %v3589 = vunpack.c.l.b16 %v3490
    %v3590 = vunpack.c.h.b16 %v3490
    %v3591 = vunpack.c.l.b16 %v3491
    %v3592 = vunpack.c.h.b16 %v3491
    %v3593 = vunpack.c.l.b16 %v3492
    %v3594 = vunpack.c.h.b16 %v3492
    %v3595 = vunpack.c.l.b16 %v3493
    %v3596 = vunpack.c.h.b16 %v3493
    %v3597 = vunpack.c.l.b16 %v3494
    %v3598 = vunpack.c.h.b16 %v3494
    %v3599 = vunpack.c.l.b16 %v3495
    %v3600 = vunpack.c.h.b16 %v3495
    %v3601 = vunpack.c.l.b16 %v3496
    %v3602 = vunpack.c.h.b16 %v3496
    %v3603 = vunpack.c.l.b16 %v3497
    %v3604 = vunpack.c.h.b16 %v3497
    %v3605 = vunpack.c.l.b16 %v3498
    %v3606 = vunpack.c.h.b16 %v3498
    %v3607 = vunpack.c.l.b16 %v3499
    %v3608 = vunpack.c.h.b16 %v3499
    %v3609 = vunpack.c.l.b16 %v3500
    %v3610 = vunpack.c.h.b16 %v3500
    %v3611 = vunpack.c.l.b16 %v3501
    %v3612 = vunpack.c.h.b16 %v3501
    %v3613 = vunpack.c.l.b16 %v3502
    %v3614 = vunpack.c.h.b16 %v3502
    %v3615 = vunpack.c.l.b16 %v3503
    %v3616 = vunpack.c.h.b16 %v3503
    %v3617 = vunpack.c.l.b16 %v3504
    %v3618 = vunpack.c.h.b16 %v3504
    %v3619 = vunpack.c.l.b16 %v3505
    %v3620 = vunpack.c.h.b16 %v3505
    %v3621 = vunpack.c.l.b16 %v3506
    %v3622 = vunpack.c.h.b16 %v3506
    %v3623 = vunpack.c.l.b16 %v3507
    %v3624 = vunpack.c.h.b16 %v3507
    %v3625 = vunpack.c.l.b16 %v3508
    %v3626 = vunpack.c.h.b16 %v3508
    %v3627 = vunpack.c.l.b16 %v3509
    %v3628 = vunpack.c.h.b16 %v3509
    %v3629 = vunpack.c.l.b16 %v3510
    %v3630 = vunpack.c.h.b16 %v3510
    %v3631 = vunpack.c.l.b16 %v3511
    %v3632 = vunpack.c.h.b16 %v3511
    %v3633 = vunpack.c.l.b16 %v3512
    %v3634 = vunpack.c.h.b16 %v3512
    %v3635 = vpack.c.b16 %v3573, %v3571
    %v3636 = vpack.c.b16 %v3574, %v3572
    %v3637 = vpack.c.b16 %v3577, %v3575
    %v3638 = vpack.c.b16 %v3578, %v3576
    %v3639 = vpack.c.b16 %v3581, %v3579
    %v3640 = vpack.c.b16 %v3582, %v3580
    %v3641 = vpack.c.b16 %v3585, %v3583
    %v3642 = vpack.c.b16 %v3586, %v3584
    %v3643 = vpack.c.b16 %v3589, %v3587
    %v3644 = vpack.c.b16 %v3590, %v3588
    %v3645 = vpack.c.b16 %v3593, %v3591
    %v3646 = vpack.c.b16 %v3594, %v3592
    %v3647 = vpack.c.b16 %v3597, %v3595
    %v3648 = vpack.c.b16 %v3598, %v3596
    %v3649 = vpack.c.b16 %v3601, %v3599
    %v3650 = vpack.c.b16 %v3602, %v3600
    %v3651 = vpack.c.b16 %v3605, %v3603
    %v3652 = vpack.c.b16 %v3606, %v3604
    %v3653 = vpack.c.b16 %v3609, %v3607
    %v3654 = vpack.c.b16 %v3610, %v3608
    %v3655 = vpack.c.b16 %v3613, %v3611
    %v3656 = vpack.c.b16 %v3614, %v3612
    %v3657 = vpack.c.b16 %v3617, %v3615
    %v3658 = vpack.c.b16 %v3618, %v3616
    %v3659 = vpack.c.b16 %v3621, %v3619
    %v3660 = vpack.c.b16 %v3622, %v3620
    %v3661 = vpack.c.b16 %v3625, %v3623
    %v3662 = vpack.c.b16 %v3626, %v3624
    %v3663 = vpack.c.b16 %v3629, %v3627
    %v3664 = vpack.c.b16 %v3630, %v3628
    %v3665 = vpack.c.b16 %v3633, %v3631
    %v3666 = vpack.c.b16 %v3634, %v3632
    %3699 = vmatprep.subr.bf16.mxu0 %v3636
    %3700 = vmatpush1.bf16.msra.mxu0 %v3635
    %3701 = vmatprep.subr.bf16.mxu0 %v3638
    %3702 = vmatpush1.bf16.msra.mxu0 %v3637
    %3703 = vmatprep.subr.bf16.mxu0 %v3640
    %3704 = vmatpush1.bf16.msra.mxu0 %v3639
    %3705 = vmatprep.subr.bf16.mxu0 %v3642
    %3706 = vmatpush1.bf16.msra.mxu0 %v3641
    %3707 = vmatprep.subr.bf16.mxu0 %v3644
    %3708 = vmatpush1.bf16.msra.mxu0 %v3643
    %3709 = vmatprep.subr.bf16.mxu0 %v3646
    %3710 = vmatpush1.bf16.msra.mxu0 %v3645
    %3711 = vmatprep.subr.bf16.mxu0 %v3648
    %3712 = vmatpush1.bf16.msra.mxu0 %v3647
    %3713 = vmatprep.subr.bf16.mxu0 %v3650
    %3714 = vmatpush1.bf16.msra.mxu0 %v3649
    %3715 = vmatprep.subr.bf16.mxu0 %v3652
    %3716 = vmatpush1.bf16.msra.mxu0 %v3651
    %3717 = vmatprep.subr.bf16.mxu0 %v3654
    %3718 = vmatpush1.bf16.msra.mxu0 %v3653
    %3719 = vmatprep.subr.bf16.mxu0 %v3656
    %3720 = vmatpush1.bf16.msra.mxu0 %v3655
    %3721 = vmatprep.subr.bf16.mxu0 %v3658
    %3722 = vmatpush1.bf16.msra.mxu0 %v3657
    %3723 = vmatprep.subr.bf16.mxu0 %v3660
    %3724 = vmatpush1.bf16.msra.mxu0 %v3659
    %3725 = vmatprep.subr.bf16.mxu0 %v3662
    %3726 = vmatpush1.bf16.msra.mxu0 %v3661
    %3727 = vmatprep.subr.bf16.mxu0 %v3664
    %3728 = vmatpush1.bf16.msra.mxu0 %v3663
    %3729 = vmatprep.subr.bf16.mxu0 %v3666
    %3730 = vmatpush1.bf16.msra.mxu0 %v3665
    %3731 = vmatprep.mubr.bf16.mxu0 %v3536
    %3732 = vmatmul.mubr.bf16.gmra.mrb[0].mxu0 %v3535
    %v3733 = vpop.f32.mrb[0].mxu0
    %v3734 = vadd.f32 %v3518, %v3733
    %v3735 = vpop.f32.mrb[0].mxu0
    %v3736 = vadd.f32 %v3522, %v3735
    %v3737 = vpop.f32.mrb[0].mxu0
    %v3738 = vpop.f32.mrb[0].mxu0
    %3739 = vdwg.mxu0
    %v3740 = vxor.u32 %v3734, 2147483648
    %v3741 = vmul.f32 %v3740, 1.442695
    %v3742 = vpow.pop %v3741
    %v3743 = vadd.f32 %v3742, 1.0
    %v3744 = vrcp.pop %v3743
    %v3745 = vmul.f32 1.0, %v3744
    %v3746 = vxor.u32 %v3736, 2147483648
    %v3747 = vmul.f32 %v3746, 1.442695
    %v3748 = vpow.pop %v3747
    %v3749 = vadd.f32 %v3748, 1.0
    %v3750 = vrcp.pop %v3749
    %v3751 = vmul.f32 1.0, %v3750
    %v3752 = vtanh.pop %v3736
    %v3753 = vld [vmem:[%s12] sm:$0x1]
    %v3755 = vlaneseq
    %v3756 = vshrl.u32 %v3755, 7
    %v3757 = vsub.s32 0, %v3756
    %v3758 = vrot.slane %v3753, %v3757
    %v3760 = vmul.f32 %v3745, %v3758
    %v3761 = vmul.f32 %v3745, %v3752
    %3763 = vrot.lane.b32.xlu0 %v3761, 64
    %v3764 = vpop.permute.xlu0 %3763
    %v3766 = vadd.f32 %v3760, %v3764
    %vm3767 = vcmask 517120
    %3768 = vst.msk [vmem:[#allocation13] sm:$0x3] %vm3767, %v3766
    %v3769 = vtanh.pop %v3766
    %v3770 = vmul.f32 %v3751, %v3769
    %3771 = vst.msk [vmem:[#allocation11] sm:$0x3] %vm3767, %v3770
    // Predicated region
    $region70: #{tpu_custom_call.1} parent=1 // pred_check
      _
    $region71: #{tpu_custom_call.1} parent=1 // pred_check_branch
      %3773 = sbr.rel (0) target = $region73
    $region72: #{tpu_custom_call.1} parent=1 // pred_region
      %s3775 = ssub.s32 64, 64
      %3776 = vsyncadd [#allocation4], %s3775
      %s3778 = sshll.u32 [#allocation10], 4
      %s3779 = int_to_ptr.vmem [resolvable:$true] %s3778
      %3781 = dma.vmem_to_hbm [thread:$0]  %s3779, 64, %s13, [#allocation4]
    $region73: #{tpu_custom_call.1} parent=1 // pred_fallthru
      _
    // Predicated region
    $region74: #{tpu_custom_call.1} parent=1 // pred_check
      _
    $region75: #{tpu_custom_call.1} parent=1 // pred_check_branch
      %3783 = sbr.rel (0) target = $region77
    $region76: #{tpu_custom_call.1} parent=1 // pred_region
      %s3785 = ssub.s32 32, 32
      %3786 = vsyncadd [#allocation12], %s3785
      %s3788 = sshll.u32 [#allocation11], 4
      %s3789 = int_to_ptr.vmem [resolvable:$true] %s3788
      %3791 = dma.vmem_to_hbm [thread:$0]  %s3789, 32, %s14, [#allocation12]
    $region77: #{tpu_custom_call.1} parent=1 // pred_fallthru
      _
    // Predicated region
    $region78: #{tpu_custom_call.1} parent=1 // pred_check
      _
    $region79: #{tpu_custom_call.1} parent=1 // pred_check_branch
      %3793 = sbr.rel (0) target = $region81
    $region80: #{tpu_custom_call.1} parent=1 // pred_region
      %s3795 = ssub.s32 32, 32
      %3796 = vsyncadd [#allocation12], %s3795
      %s3798 = sshll.u32 [#allocation13], 4
      %s3799 = int_to_ptr.vmem [resolvable:$true] %s3798
      %3801 = dma.vmem_to_hbm [thread:$0]  %s3799, 32, %s15, [#allocation12]
    $region81: #{tpu_custom_call.1} parent=1 // pred_fallthru
      _
    // Predicated region
    $region82: #{tpu_custom_call.1} parent=1 // pred_check
      _
    $region83: #{tpu_custom_call.1} parent=1 // pred_check_branch
      %3803 = sbr.rel (0) target = $region85
    $region84: #{tpu_custom_call.1} parent=1 // pred_region
      %3804 = dma.done [#allocation4], 64
    $region85: #{tpu_custom_call.1} parent=1 // pred_fallthru
      _
    // Predicated region
    $region86: #{tpu_custom_call.1} parent=1 // pred_check
      _
    $region87: #{tpu_custom_call.1} parent=1 // pred_check_branch
      %3806 = sbr.rel (0) target = $region89
    $region88: #{tpu_custom_call.1} parent=1 // pred_region
      %3807 = dma.done [#allocation12], 32
    $region89: #{tpu_custom_call.1} parent=1 // pred_fallthru
      _
    // Predicated region
    $region90: #{tpu_custom_call.1} parent=1 // pred_check
      _
    $region91: #{tpu_custom_call.1} parent=1 // pred_check_branch
      %3809 = sbr.rel (0) target = $region93
    $region92: #{tpu_custom_call.1} parent=1 // pred_region
      %3810 = dma.done [#allocation12], 32
    $region93: #{tpu_custom_call.1} parent=1 // pred_fallthru
      _
    %3811 = vsyncpa [#allocation3], 1
    %3812 = vsyncpa [#allocation6], 1
    %3813 = vsyncpa [#allocation9], 1
    %3814 = vsyncpa [#allocation4], 1
    %3815 = vsyncpa [#allocation12], 1

</llo_original>
